<compile_context>
chip_gen: v5e
topology: v5e:2x2
jax: 0.10.0
libtpu: 0.0.40
codegen_flags: <defaults>
</compile_context>

<pallas_src>
import functools

import jax
import jax.numpy as jnp
from jax.experimental import pallas as pl
from jax.experimental.pallas import tpu as pltpu


def _round_up(x, m):
    return ((x + m - 1) // m) * m


# ----------------------------- Pallas kernels --------------------------------

def _conv_tap_kernel(*refs, taps, lout, relu, has_res):
    """Shift-and-accumulate conv GEMM, fused BN (+residual) (+ReLU).

    x_ref     : (1, F, Cin)    bf16  flattened padded image
    w_ref     : (T, Cin, tn)   bf16  one (Cin, tn) weight slab per tap
    scale/bias: (1, tn)        f32   folded BatchNorm
    res_ref   : (1, lout, tn)  bf16  optional residual (same flat layout)
    o_ref     : (1, lout, tn)  bf16
    """
    if has_res:
        x_ref, w_ref, scale_ref, bias_ref, res_ref, o_ref = refs
    else:
        x_ref, w_ref, scale_ref, bias_ref, o_ref = refs
        res_ref = None

    tn = o_ref.shape[2]
    acc = jnp.zeros((lout, tn), jnp.float32)
    for t, d in enumerate(taps):                      # static, fully unrolled
        a = x_ref[0, pl.ds(d, lout), :]               # (lout, Cin) bf16
        acc = acc + jnp.dot(a, w_ref[t], preferred_element_type=jnp.float32)

    y = acc * scale_ref[...] + bias_ref[...]
    if has_res:
        y = y + res_ref[0].astype(jnp.float32)
    if relu:
        y = jnp.maximum(y, 0.0)
    o_ref[0, :, :] = y.astype(o_ref.dtype)


def _maxpool_tap_kernel(x_ref, o_ref, *, taps, lout, c):
    """3x3 / stride-2 max-pool as 9 shifted maxima over the s2d input.

    x_ref: (1, F, 4*c)   o_ref: (1, lout, c)
    taps : tuple of (flat_offset, parity) pairs.
    """
    m = None
    for d, p in taps:                                 # static, fully unrolled
        v = x_ref[0, pl.ds(d, lout), pl.ds(p * c, c)]
        m = v if m is None else jnp.maximum(m, v)
    o_ref[0, :, :] = m


# ------------------------------ layout helpers --------------------------------

def _space_to_depth2(x, pad_value=0.0):
    """(N, H, W, C) -> (N, ceil(H/2), ceil(W/2), 4*C), parity-major channels."""
    N, H, W, C = x.shape
    H2, W2 = _round_up(H, 2), _round_up(W, 2)
    if (H2, W2) != (H, W):
        x = jnp.pad(x, ((0, 0), (0, H2 - H), (0, W2 - W), (0, 0)),
                    constant_values=pad_value)
    x = x.reshape(N, H2 // 2, 2, W2 // 2, 2, C)
    x = jnp.transpose(x, (0, 1, 3, 2, 4, 5))          # (N, i, j, a, b, c)
    return x.reshape(N, H2 // 2, W2 // 2, 4 * C)


def _flatten_for_taps(x, flat_len, pad_value=0.0):
    """(N, Hf, Wf, C) -> (N, flat_len, C) row-major flat layout (padded tail)."""
    N, Hf, Wf, C = x.shape
    xf = x.reshape(N, Hf * Wf, C)
    if flat_len > Hf * Wf:
        xf = jnp.pad(xf, ((0, 0), (0, flat_len - Hf * Wf), (0, 0)),
                     constant_values=pad_value)
    return xf


# ------------------------------- conv wrapper ---------------------------------

def conv_bn(x, w, scale, bias, stride, padding, residual=None, relu=True):
    """Conv2d(bias=False) + folded BN (+residual) (+ReLU) as a Pallas tap-GEMM.

    x: (N, H, W, Cx) NHWC bf16, Cx >= w's Cin (extra channels are exact zeros).
    w: (Cout, Cin, KH, KW) f32 (PyTorch layout).
    Returns (N, OH, OW, Cout_p) bf16 with Cout_p = round_up(Cout, 128); the
    padded output channels are exactly zero.
    """
    N, H, W, Cx = x.shape
    Cout, Cin, KH, KW = w.shape
    assert stride in (1, 2)
    OH = (H + 2 * padding - KH) // stride + 1
    OW = (W + 2 * padding - KW) // stride + 1
    Cout_p = _round_up(Cout, 128)

    # (KH, KW, Cin, Cout) with Cin zero-padded to Cx and Cout to Cout_p.
    wt = jnp.transpose(w, (2, 3, 1, 0)).astype(jnp.float32)
    wt = jnp.pad(wt, ((0, 0), (0, 0), (0, Cx - Cin), (0, Cout_p - Cout)))

    if stride == 1:
        xs = x
        if padding:
            xs = jnp.pad(x, ((0, 0), (padding, padding),
                             (padding, padding), (0, 0)))
        KHe, KWe = KH, KW
        w_taps = wt.reshape(KH * KW, Cx, Cout_p)
    elif KH == 1:                        # 1x1 stride-2: subsample, then 1x1/s1.
        assert padding == 0
        xs = x[:, ::2, ::2, :]
        KHe, KWe = 1, 1
        w_taps = wt.reshape(1, Cx, Cout_p)
    else:                                # KxK stride-2 -> stride-1 conv on the
        xs = jnp.pad(x, ((0, 0), (padding, padding),   # 2x2 space-to-depth.
                         (padding, padding), (0, 0)))
        xs = _space_to_depth2(xs)
        KHe, KWe = (KH + 1) // 2, (KW + 1) // 2
        blocks = []
        for qh in range(KHe):
            for qw in range(KWe):
                parts = []
                for a in range(2):
                    for b in range(2):
                        kh, kw = 2 * qh + a, 2 * qw + b
                        if kh < KH and kw < KW:
                            parts.append(wt[kh, kw])
                        else:
                            parts.append(jnp.zeros((Cx, Cout_p), jnp.float32))
                blocks.append(jnp.concatenate(parts, axis=0))
        w_taps = jnp.stack(blocks, axis=0)             # (KHe*KWe, 4*Cx, Cout_p)

    _, Hf, Wf, Ce = xs.shape
    taps = tuple(qh * Wf + qw for qh in range(KHe) for qw in range(KWe))
    Lv = OH * Wf                               # valid flat output rows
    Lp = _round_up(Lv, 8)                      # sublane-aligned output rows
    flat_len = max(Hf * Wf, max(taps) + Lp)    # all tap slices stay in-bounds
    xflat = _flatten_for_taps(xs, flat_len).astype(jnp.bfloat16)

    scale_p = jnp.pad(scale.astype(jnp.float32), (0, Cout_p - Cout))
    bias_p = jnp.pad(bias.astype(jnp.float32), (0, Cout_p - Cout))
    scale_p = scale_p.reshape(1, Cout_p)
    bias_p = bias_p.reshape(1, Cout_p)

    has_res = residual is not None
    operands = [xflat, w_taps.astype(jnp.bfloat16), scale_p, bias_p]

    tn = Cout_p if Cout_p <= 256 else 256      # lane-dense Cout tile
    in_specs = [
        pl.BlockSpec((1, flat_len, Ce), lambda n, j: (n, 0, 0)),
        pl.BlockSpec((KHe * KWe, Ce, tn), lambda n, j: (0, 0, j)),
        pl.BlockSpec((1, tn), lambda n, j: (0, j)),
        pl.BlockSpec((1, tn), lambda n, j: (0, j)),
    ]
    if has_res:
        _, rH, rW, rC = residual.shape
        assert (rH, rW) == (OH, OW) and rC <= Cout_p
        res = jnp.pad(residual, ((0, 0), (0, 0), (0, Wf - OW),
                                 (0, Cout_p - rC)))
        res = res.reshape(N, Lv, Cout_p)
        if Lp > Lv:
            res = jnp.pad(res, ((0, 0), (0, Lp - Lv), (0, 0)))
        operands.append(res.astype(jnp.bfloat16))
        in_specs.append(pl.BlockSpec((1, Lp, tn), lambda n, j: (n, 0, j)))

    kernel = functools.partial(_conv_tap_kernel, taps=taps, lout=Lp,
                               relu=relu, has_res=has_res)
    out = pl.pallas_call(
        kernel,
        out_shape=jax.ShapeDtypeStruct((N, Lp, Cout_p), jnp.bfloat16),
        grid_spec=pltpu.PrefetchScalarGridSpec(
            num_scalar_prefetch=0,
            grid=(N, Cout_p // tn),
            in_specs=in_specs,
            out_specs=pl.BlockSpec((1, Lp, tn), lambda n, j: (n, 0, j)),
        ),
        compiler_params=pltpu.CompilerParams(
            dimension_semantics=("parallel", "parallel")),
    )(*operands)

    return out[:, :Lv, :].reshape(N, OH, Wf, Cout_p)[:, :, :OW, :]


def maxpool2d_3x3_s2_p1(x):
    """MaxPool2d(kernel_size=3, stride=2, padding=1) on NHWC bf16 input.
    Channel count must be a multiple of 128 (conv1 output is channel-padded)."""
    N, H, W, C = x.shape
    OH = (H + 2 - 3) // 2 + 1
    OW = (W + 2 - 3) // 2 + 1
    neg = float("-inf")
    xp = jnp.pad(x, ((0, 0), (1, 1), (1, 1), (0, 0)), constant_values=neg)
    xs = _space_to_depth2(xp, pad_value=neg)           # (N, Hs, Ws, 4*C)
    _, Hs, Ws, C4 = xs.shape
    taps = tuple(((kh // 2) * Ws + (kw // 2), (kh % 2) * 2 + (kw % 2))
                 for kh in range(3) for kw in range(3))
    Lv = OH * Ws
    Lp = _round_up(Lv, 8)
    flat_len = max(Hs * Ws, max(d for d, _ in taps) + Lp)
    xflat = _flatten_for_taps(xs, flat_len, pad_value=neg)

    kernel = functools.partial(_maxpool_tap_kernel, taps=taps, lout=Lp, c=C)
    out = pl.pallas_call(
        kernel,
        out_shape=jax.ShapeDtypeStruct((N, Lp, C), x.dtype),
        grid_spec=pltpu.PrefetchScalarGridSpec(
            num_scalar_prefetch=0,
            grid=(N,),
            in_specs=[pl.BlockSpec((1, flat_len, C4), lambda n: (n, 0, 0))],
            out_specs=pl.BlockSpec((1, Lp, C), lambda n: (n, 0, 0)),
        ),
        compiler_params=pltpu.CompilerParams(
            dimension_semantics=("parallel",)),
    )(xflat)
    return out[:, :Lv, :].reshape(N, OH, Ws, C)[:, :, :OW, :]


# ------------------------------ parameter init --------------------------------

def kaiming_conv(key, shape):
    # nn.init.kaiming_normal_(mode='fan_out', nonlinearity='relu')
    cout, cin, kh, kw = shape
    std = (2.0 / (cout * kh * kw)) ** 0.5
    return jax.random.normal(key, shape, jnp.float32) * std


def bn_folded(c, eps=1e-5):
    # gamma=1, beta=0, running_mean=0, running_var=1  (fresh nn.BatchNorm2d)
    scale = jnp.full((c,), 1.0 / jnp.sqrt(1.0 + eps), jnp.float32)
    bias = jnp.zeros((c,), jnp.float32)
    return scale, bias


def init_resnet18(key):
    params = {}
    keys = iter(jax.random.split(key, 64))
    params['conv1_w'] = kaiming_conv(next(keys), (64, 3, 7, 7))
    params['bn1_scale'], params['bn1_bias'] = bn_folded(64)

    layers = []
    inplanes = 64
    cfg = [(64, 2, 1), (128, 2, 2), (256, 2, 2), (512, 2, 2)]   # ResNet-18
    for planes, nblocks, stride in cfg:
        blocks = []
        for b in range(nblocks):
            s = stride if b == 0 else 1
            bp = {'stride': s}
            bp['conv1_w'] = kaiming_conv(next(keys), (planes, inplanes, 3, 3))
            bp['bn1_scale'], bp['bn1_bias'] = bn_folded(planes)
            bp['conv2_w'] = kaiming_conv(next(keys), (planes, planes, 3, 3))
            bp['bn2_scale'], bp['bn2_bias'] = bn_folded(planes)
            if s != 1 or inplanes != planes:
                bp['ds_w'] = kaiming_conv(next(keys), (planes, inplanes, 1, 1))
                bp['ds_scale'], bp['ds_bias'] = bn_folded(planes)
            inplanes = planes
            blocks.append(bp)
        layers.append(blocks)
    params['layers'] = layers
    return params


# -------------------------------- forward pass --------------------------------

def basic_block(x, bp):
    identity = x
    out = conv_bn(x, bp['conv1_w'], bp['bn1_scale'], bp['bn1_bias'],
                  stride=bp['stride'], padding=1, relu=True)
    if 'ds_w' in bp:
        identity = conv_bn(x, bp['ds_w'], bp['ds_scale'], bp['ds_bias'],
                           stride=bp['stride'], padding=0, relu=False)
    out = conv_bn(out, bp['conv2_w'], bp['bn2_scale'], bp['bn2_bias'],
                  stride=1, padding=1, residual=identity, relu=True)
    return out


def resnet18_forward(params, x_nchw):
    x = jnp.transpose(x_nchw, (0, 2, 3, 1)).astype(jnp.bfloat16)  # NCHW -> NHWC
    x = conv_bn(x, params['conv1_w'], params['bn1_scale'], params['bn1_bias'],
                stride=2, padding=3, relu=True)        # (N, 16, 16, 128) [64 real]
    x = maxpool2d_3x3_s2_p1(x)                         # (N, 8, 8, 128)
    for layer in params['layers']:                     # layer1..layer4
        for bp in layer:
            x = basic_block(x, bp)
    # x: (N, 1, 1, 512) -> C_5 in NCHW, f32
    return jnp.transpose(x, (0, 3, 1, 2)).astype(jnp.float32)


# ----------------------------------- main --------------------------------------

if __name__ == "__main__":
    key = jax.random.PRNGKey(0)
    pkey, xkey = jax.random.split(key)
    params = init_resnet18(pkey)

    # Small input consistent with the module (RGB images, NCHW).
    x = jax.random.normal(xkey, (2, 3, 32, 32), jnp.float32)

    c5 = resnet18_forward(params, x)
    c5 = jax.block_until_ready(c5)
    assert c5.shape == (2, 512, 1, 1), c5.shape
    print("KERNEL_OK")
</pallas_src>

<mosaic_0001>
module attributes {stable_mosaic.version = 11 : i64} {
  func.func @_conv_tap_kernel(%arg0: i32, %arg1: i32, %arg2: memref<1x364x12xbf16, #tpu.memory_space<vmem>>, %arg3: memref<16x12x128xbf16, #tpu.memory_space<vmem>>, %arg4: memref<1x128xf32, #tpu.memory_space<vmem>>, %arg5: memref<1x128xf32, #tpu.memory_space<vmem>>, %arg6: memref<1x304x128xbf16, #tpu.memory_space<vmem>>) attributes {dimension_semantics = [#tpu.dimension_semantics<parallel>, #tpu.dimension_semantics<parallel>], iteration_bounds = array<i64: 2, 1>, scalar_prefetch = 0 : i64, scratch_operands = 0 : i64, tpu.core_type = #tpu.core_type<tc>, window_params = [{transform_indices = @transform_0, window_bounds = array<i64: 1, 364, 12>}, {transform_indices = @transform_1, window_bounds = array<i64: 16, 12, 128>}, {transform_indices = @transform_2, window_bounds = array<i64: 1, 128>}, {transform_indices = @transform_3, window_bounds = array<i64: 1, 128>}, {transform_indices = @transform_4, window_bounds = array<i64: 1, 304, 128>}]} {
    %cst = arith.constant 0.000000e+00 : f32
    %0 = vector.broadcast %cst : f32 to vector<304x128xf32>
    %c0 = arith.constant 0 : index
    %c0_0 = arith.constant 0 : index
    %c0_1 = arith.constant 0 : index
    %1 = vector.load %arg2[%c0, %c0_0, %c0_1] : memref<1x364x12xbf16, #tpu.memory_space<vmem>>, vector<1x304x12xbf16>
    %2 = vector.shape_cast %1 : vector<1x304x12xbf16> to vector<304x12xbf16>
    %c0_2 = arith.constant 0 : index
    %c0_3 = arith.constant 0 : index
    %c0_4 = arith.constant 0 : index
    %3 = vector.load %arg3[%c0_2, %c0_3, %c0_4] : memref<16x12x128xbf16, #tpu.memory_space<vmem>>, vector<1x12x128xbf16>
    %4 = vector.shape_cast %3 : vector<1x12x128xbf16> to vector<12x128xbf16>
    %cst_5 = arith.constant dense<0.000000e+00> : vector<304x128xf32>
    %5 = tpu.matmul %2, %4, %cst_5 {dimension_numbers = #tpu.dot_dimension_numbers<[1], [0], [0], [1], [0, 0, 1, 1], [], []>} : vector<304x12xbf16>, vector<12x128xbf16>, vector<304x128xf32> -> vector<304x128xf32>
    %6 = arith.addf %0, %5 : vector<304x128xf32>
    %c0_6 = arith.constant 0 : index
    %c1 = arith.constant 1 : index
    %c0_7 = arith.constant 0 : index
    %7 = vector.load %arg2[%c0_6, %c1, %c0_7] : memref<1x364x12xbf16, #tpu.memory_space<vmem>>, vector<1x304x12xbf16>
    %8 = vector.shape_cast %7 : vector<1x304x12xbf16> to vector<304x12xbf16>
    %c1_8 = arith.constant 1 : index
    %c0_9 = arith.constant 0 : index
    %c0_10 = arith.constant 0 : index
    %9 = vector.load %arg3[%c1_8, %c0_9, %c0_10] : memref<16x12x128xbf16, #tpu.memory_space<vmem>>, vector<1x12x128xbf16>
    %10 = vector.shape_cast %9 : vector<1x12x128xbf16> to vector<12x128xbf16>
    %cst_11 = arith.constant dense<0.000000e+00> : vector<304x128xf32>
    %11 = tpu.matmul %8, %10, %cst_11 {dimension_numbers = #tpu.dot_dimension_numbers<[1], [0], [0], [1], [0, 0, 1, 1], [], []>} : vector<304x12xbf16>, vector<12x128xbf16>, vector<304x128xf32> -> vector<304x128xf32>
    %12 = arith.addf %6, %11 : vector<304x128xf32>
    %c0_12 = arith.constant 0 : index
    %c2 = arith.constant 2 : index
    %c0_13 = arith.constant 0 : index
    %13 = vector.load %arg2[%c0_12, %c2, %c0_13] : memref<1x364x12xbf16, #tpu.memory_space<vmem>>, vector<1x304x12xbf16>
    %14 = vector.shape_cast %13 : vector<1x304x12xbf16> to vector<304x12xbf16>
    %c2_14 = arith.constant 2 : index
    %c0_15 = arith.constant 0 : index
    %c0_16 = arith.constant 0 : index
    %15 = vector.load %arg3[%c2_14, %c0_15, %c0_16] : memref<16x12x128xbf16, #tpu.memory_space<vmem>>, vector<1x12x128xbf16>
    %16 = vector.shape_cast %15 : vector<1x12x128xbf16> to vector<12x128xbf16>
    %cst_17 = arith.constant dense<0.000000e+00> : vector<304x128xf32>
    %17 = tpu.matmul %14, %16, %cst_17 {dimension_numbers = #tpu.dot_dimension_numbers<[1], [0], [0], [1], [0, 0, 1, 1], [], []>} : vector<304x12xbf16>, vector<12x128xbf16>, vector<304x128xf32> -> vector<304x128xf32>
    %18 = arith.addf %12, %17 : vector<304x128xf32>
    %c0_18 = arith.constant 0 : index
    %c3 = arith.constant 3 : index
    %c0_19 = arith.constant 0 : index
    %19 = vector.load %arg2[%c0_18, %c3, %c0_19] : memref<1x364x12xbf16, #tpu.memory_space<vmem>>, vector<1x304x12xbf16>
    %20 = vector.shape_cast %19 : vector<1x304x12xbf16> to vector<304x12xbf16>
    %c3_20 = arith.constant 3 : index
    %c0_21 = arith.constant 0 : index
    %c0_22 = arith.constant 0 : index
    %21 = vector.load %arg3[%c3_20, %c0_21, %c0_22] : memref<16x12x128xbf16, #tpu.memory_space<vmem>>, vector<1x12x128xbf16>
    %22 = vector.shape_cast %21 : vector<1x12x128xbf16> to vector<12x128xbf16>
    %cst_23 = arith.constant dense<0.000000e+00> : vector<304x128xf32>
    %23 = tpu.matmul %20, %22, %cst_23 {dimension_numbers = #tpu.dot_dimension_numbers<[1], [0], [0], [1], [0, 0, 1, 1], [], []>} : vector<304x12xbf16>, vector<12x128xbf16>, vector<304x128xf32> -> vector<304x128xf32>
    %24 = arith.addf %18, %23 : vector<304x128xf32>
    %c0_24 = arith.constant 0 : index
    %c19 = arith.constant 19 : index
    %c0_25 = arith.constant 0 : index
    %25 = vector.load %arg2[%c0_24, %c19, %c0_25] : memref<1x364x12xbf16, #tpu.memory_space<vmem>>, vector<1x304x12xbf16>
    %26 = vector.shape_cast %25 : vector<1x304x12xbf16> to vector<304x12xbf16>
    %c4 = arith.constant 4 : index
    %c0_26 = arith.constant 0 : index
    %c0_27 = arith.constant 0 : index
    %27 = vector.load %arg3[%c4, %c0_26, %c0_27] : memref<16x12x128xbf16, #tpu.memory_space<vmem>>, vector<1x12x128xbf16>
    %28 = vector.shape_cast %27 : vector<1x12x128xbf16> to vector<12x128xbf16>
    %cst_28 = arith.constant dense<0.000000e+00> : vector<304x128xf32>
    %29 = tpu.matmul %26, %28, %cst_28 {dimension_numbers = #tpu.dot_dimension_numbers<[1], [0], [0], [1], [0, 0, 1, 1], [], []>} : vector<304x12xbf16>, vector<12x128xbf16>, vector<304x128xf32> -> vector<304x128xf32>
    %30 = arith.addf %24, %29 : vector<304x128xf32>
    %c0_29 = arith.constant 0 : index
    %c20 = arith.constant 20 : index
    %c0_30 = arith.constant 0 : index
    %31 = vector.load %arg2[%c0_29, %c20, %c0_30] : memref<1x364x12xbf16, #tpu.memory_space<vmem>>, vector<1x304x12xbf16>
    %32 = vector.shape_cast %31 : vector<1x304x12xbf16> to vector<304x12xbf16>
    %c5 = arith.constant 5 : index
    %c0_31 = arith.constant 0 : index
    %c0_32 = arith.constant 0 : index
    %33 = vector.load %arg3[%c5, %c0_31, %c0_32] : memref<16x12x128xbf16, #tpu.memory_space<vmem>>, vector<1x12x128xbf16>
    %34 = vector.shape_cast %33 : vector<1x12x128xbf16> to vector<12x128xbf16>
    %cst_33 = arith.constant dense<0.000000e+00> : vector<304x128xf32>
    %35 = tpu.matmul %32, %34, %cst_33 {dimension_numbers = #tpu.dot_dimension_numbers<[1], [0], [0], [1], [0, 0, 1, 1], [], []>} : vector<304x12xbf16>, vector<12x128xbf16>, vector<304x128xf32> -> vector<304x128xf32>
    %36 = arith.addf %30, %35 : vector<304x128xf32>
    %c0_34 = arith.constant 0 : index
    %c21 = arith.constant 21 : index
    %c0_35 = arith.constant 0 : index
    %37 = vector.load %arg2[%c0_34, %c21, %c0_35] : memref<1x364x12xbf16, #tpu.memory_space<vmem>>, vector<1x304x12xbf16>
    %38 = vector.shape_cast %37 : vector<1x304x12xbf16> to vector<304x12xbf16>
    %c6 = arith.constant 6 : index
    %c0_36 = arith.constant 0 : index
    %c0_37 = arith.constant 0 : index
    %39 = vector.load %arg3[%c6, %c0_36, %c0_37] : memref<16x12x128xbf16, #tpu.memory_space<vmem>>, vector<1x12x128xbf16>
    %40 = vector.shape_cast %39 : vector<1x12x128xbf16> to vector<12x128xbf16>
    %cst_38 = arith.constant dense<0.000000e+00> : vector<304x128xf32>
    %41 = tpu.matmul %38, %40, %cst_38 {dimension_numbers = #tpu.dot_dimension_numbers<[1], [0], [0], [1], [0, 0, 1, 1], [], []>} : vector<304x12xbf16>, vector<12x128xbf16>, vector<304x128xf32> -> vector<304x128xf32>
    %42 = arith.addf %36, %41 : vector<304x128xf32>
    %c0_39 = arith.constant 0 : index
    %c22 = arith.constant 22 : index
    %c0_40 = arith.constant 0 : index
    %43 = vector.load %arg2[%c0_39, %c22, %c0_40] : memref<1x364x12xbf16, #tpu.memory_space<vmem>>, vector<1x304x12xbf16>
    %44 = vector.shape_cast %43 : vector<1x304x12xbf16> to vector<304x12xbf16>
    %c7 = arith.constant 7 : index
    %c0_41 = arith.constant 0 : index
    %c0_42 = arith.constant 0 : index
    %45 = vector.load %arg3[%c7, %c0_41, %c0_42] : memref<16x12x128xbf16, #tpu.memory_space<vmem>>, vector<1x12x128xbf16>
    %46 = vector.shape_cast %45 : vector<1x12x128xbf16> to vector<12x128xbf16>
    %cst_43 = arith.constant dense<0.000000e+00> : vector<304x128xf32>
    %47 = tpu.matmul %44, %46, %cst_43 {dimension_numbers = #tpu.dot_dimension_numbers<[1], [0], [0], [1], [0, 0, 1, 1], [], []>} : vector<304x12xbf16>, vector<12x128xbf16>, vector<304x128xf32> -> vector<304x128xf32>
    %48 = arith.addf %42, %47 : vector<304x128xf32>
    %c0_44 = arith.constant 0 : index
    %c38 = arith.constant 38 : index
    %c0_45 = arith.constant 0 : index
    %49 = vector.load %arg2[%c0_44, %c38, %c0_45] : memref<1x364x12xbf16, #tpu.memory_space<vmem>>, vector<1x304x12xbf16>
    %50 = vector.shape_cast %49 : vector<1x304x12xbf16> to vector<304x12xbf16>
    %c8 = arith.constant 8 : index
    %c0_46 = arith.constant 0 : index
    %c0_47 = arith.constant 0 : index
    %51 = vector.load %arg3[%c8, %c0_46, %c0_47] : memref<16x12x128xbf16, #tpu.memory_space<vmem>>, vector<1x12x128xbf16>
    %52 = vector.shape_cast %51 : vector<1x12x128xbf16> to vector<12x128xbf16>
    %cst_48 = arith.constant dense<0.000000e+00> : vector<304x128xf32>
    %53 = tpu.matmul %50, %52, %cst_48 {dimension_numbers = #tpu.dot_dimension_numbers<[1], [0], [0], [1], [0, 0, 1, 1], [], []>} : vector<304x12xbf16>, vector<12x128xbf16>, vector<304x128xf32> -> vector<304x128xf32>
    %54 = arith.addf %48, %53 : vector<304x128xf32>
    %c0_49 = arith.constant 0 : index
    %c39 = arith.constant 39 : index
    %c0_50 = arith.constant 0 : index
    %55 = vector.load %arg2[%c0_49, %c39, %c0_50] : memref<1x364x12xbf16, #tpu.memory_space<vmem>>, vector<1x304x12xbf16>
    %56 = vector.shape_cast %55 : vector<1x304x12xbf16> to vector<304x12xbf16>
    %c9 = arith.constant 9 : index
    %c0_51 = arith.constant 0 : index
    %c0_52 = arith.constant 0 : index
    %57 = vector.load %arg3[%c9, %c0_51, %c0_52] : memref<16x12x128xbf16, #tpu.memory_space<vmem>>, vector<1x12x128xbf16>
    %58 = vector.shape_cast %57 : vector<1x12x128xbf16> to vector<12x128xbf16>
    %cst_53 = arith.constant dense<0.000000e+00> : vector<304x128xf32>
    %59 = tpu.matmul %56, %58, %cst_53 {dimension_numbers = #tpu.dot_dimension_numbers<[1], [0], [0], [1], [0, 0, 1, 1], [], []>} : vector<304x12xbf16>, vector<12x128xbf16>, vector<304x128xf32> -> vector<304x128xf32>
    %60 = arith.addf %54, %59 : vector<304x128xf32>
    %c0_54 = arith.constant 0 : index
    %c40 = arith.constant 40 : index
    %c0_55 = arith.constant 0 : index
    %61 = vector.load %arg2[%c0_54, %c40, %c0_55] : memref<1x364x12xbf16, #tpu.memory_space<vmem>>, vector<1x304x12xbf16>
    %62 = vector.shape_cast %61 : vector<1x304x12xbf16> to vector<304x12xbf16>
    %c10 = arith.constant 10 : index
    %c0_56 = arith.constant 0 : index
    %c0_57 = arith.constant 0 : index
    %63 = vector.load %arg3[%c10, %c0_56, %c0_57] : memref<16x12x128xbf16, #tpu.memory_space<vmem>>, vector<1x12x128xbf16>
    %64 = vector.shape_cast %63 : vector<1x12x128xbf16> to vector<12x128xbf16>
    %cst_58 = arith.constant dense<0.000000e+00> : vector<304x128xf32>
    %65 = tpu.matmul %62, %64, %cst_58 {dimension_numbers = #tpu.dot_dimension_numbers<[1], [0], [0], [1], [0, 0, 1, 1], [], []>} : vector<304x12xbf16>, vector<12x128xbf16>, vector<304x128xf32> -> vector<304x128xf32>
    %66 = arith.addf %60, %65 : vector<304x128xf32>
    %c0_59 = arith.constant 0 : index
    %c41 = arith.constant 41 : index
    %c0_60 = arith.constant 0 : index
    %67 = vector.load %arg2[%c0_59, %c41, %c0_60] : memref<1x364x12xbf16, #tpu.memory_space<vmem>>, vector<1x304x12xbf16>
    %68 = vector.shape_cast %67 : vector<1x304x12xbf16> to vector<304x12xbf16>
    %c11 = arith.constant 11 : index
    %c0_61 = arith.constant 0 : index
    %c0_62 = arith.constant 0 : index
    %69 = vector.load %arg3[%c11, %c0_61, %c0_62] : memref<16x12x128xbf16, #tpu.memory_space<vmem>>, vector<1x12x128xbf16>
    %70 = vector.shape_cast %69 : vector<1x12x128xbf16> to vector<12x128xbf16>
    %cst_63 = arith.constant dense<0.000000e+00> : vector<304x128xf32>
    %71 = tpu.matmul %68, %70, %cst_63 {dimension_numbers = #tpu.dot_dimension_numbers<[1], [0], [0], [1], [0, 0, 1, 1], [], []>} : vector<304x12xbf16>, vector<12x128xbf16>, vector<304x128xf32> -> vector<304x128xf32>
    %72 = arith.addf %66, %71 : vector<304x128xf32>
    %c0_64 = arith.constant 0 : index
    %c57 = arith.constant 57 : index
    %c0_65 = arith.constant 0 : index
    %73 = vector.load %arg2[%c0_64, %c57, %c0_65] : memref<1x364x12xbf16, #tpu.memory_space<vmem>>, vector<1x304x12xbf16>
    %74 = vector.shape_cast %73 : vector<1x304x12xbf16> to vector<304x12xbf16>
    %c12 = arith.constant 12 : index
    %c0_66 = arith.constant 0 : index
    %c0_67 = arith.constant 0 : index
    %75 = vector.load %arg3[%c12, %c0_66, %c0_67] : memref<16x12x128xbf16, #tpu.memory_space<vmem>>, vector<1x12x128xbf16>
    %76 = vector.shape_cast %75 : vector<1x12x128xbf16> to vector<12x128xbf16>
    %cst_68 = arith.constant dense<0.000000e+00> : vector<304x128xf32>
    %77 = tpu.matmul %74, %76, %cst_68 {dimension_numbers = #tpu.dot_dimension_numbers<[1], [0], [0], [1], [0, 0, 1, 1], [], []>} : vector<304x12xbf16>, vector<12x128xbf16>, vector<304x128xf32> -> vector<304x128xf32>
    %78 = arith.addf %72, %77 : vector<304x128xf32>
    %c0_69 = arith.constant 0 : index
    %c58 = arith.constant 58 : index
    %c0_70 = arith.constant 0 : index
    %79 = vector.load %arg2[%c0_69, %c58, %c0_70] : memref<1x364x12xbf16, #tpu.memory_space<vmem>>, vector<1x304x12xbf16>
    %80 = vector.shape_cast %79 : vector<1x304x12xbf16> to vector<304x12xbf16>
    %c13 = arith.constant 13 : index
    %c0_71 = arith.constant 0 : index
    %c0_72 = arith.constant 0 : index
    %81 = vector.load %arg3[%c13, %c0_71, %c0_72] : memref<16x12x128xbf16, #tpu.memory_space<vmem>>, vector<1x12x128xbf16>
    %82 = vector.shape_cast %81 : vector<1x12x128xbf16> to vector<12x128xbf16>
    %cst_73 = arith.constant dense<0.000000e+00> : vector<304x128xf32>
    %83 = tpu.matmul %80, %82, %cst_73 {dimension_numbers = #tpu.dot_dimension_numbers<[1], [0], [0], [1], [0, 0, 1, 1], [], []>} : vector<304x12xbf16>, vector<12x128xbf16>, vector<304x128xf32> -> vector<304x128xf32>
    %84 = arith.addf %78, %83 : vector<304x128xf32>
    %c0_74 = arith.constant 0 : index
    %c59 = arith.constant 59 : index
    %c0_75 = arith.constant 0 : index
    %85 = vector.load %arg2[%c0_74, %c59, %c0_75] : memref<1x364x12xbf16, #tpu.memory_space<vmem>>, vector<1x304x12xbf16>
    %86 = vector.shape_cast %85 : vector<1x304x12xbf16> to vector<304x12xbf16>
    %c14 = arith.constant 14 : index
    %c0_76 = arith.constant 0 : index
    %c0_77 = arith.constant 0 : index
    %87 = vector.load %arg3[%c14, %c0_76, %c0_77] : memref<16x12x128xbf16, #tpu.memory_space<vmem>>, vector<1x12x128xbf16>
    %88 = vector.shape_cast %87 : vector<1x12x128xbf16> to vector<12x128xbf16>
    %cst_78 = arith.constant dense<0.000000e+00> : vector<304x128xf32>
    %89 = tpu.matmul %86, %88, %cst_78 {dimension_numbers = #tpu.dot_dimension_numbers<[1], [0], [0], [1], [0, 0, 1, 1], [], []>} : vector<304x12xbf16>, vector<12x128xbf16>, vector<304x128xf32> -> vector<304x128xf32>
    %90 = arith.addf %84, %89 : vector<304x128xf32>
    %c0_79 = arith.constant 0 : index
    %c60 = arith.constant 60 : index
    %c0_80 = arith.constant 0 : index
    %91 = vector.load %arg2[%c0_79, %c60, %c0_80] : memref<1x364x12xbf16, #tpu.memory_space<vmem>>, vector<1x304x12xbf16>
    %92 = vector.shape_cast %91 : vector<1x304x12xbf16> to vector<304x12xbf16>
    %c15 = arith.constant 15 : index
    %c0_81 = arith.constant 0 : index
    %c0_82 = arith.constant 0 : index
    %93 = vector.load %arg3[%c15, %c0_81, %c0_82] : memref<16x12x128xbf16, #tpu.memory_space<vmem>>, vector<1x12x128xbf16>
    %94 = vector.shape_cast %93 : vector<1x12x128xbf16> to vector<12x128xbf16>
    %cst_83 = arith.constant dense<0.000000e+00> : vector<304x128xf32>
    %95 = tpu.matmul %92, %94, %cst_83 {dimension_numbers = #tpu.dot_dimension_numbers<[1], [0], [0], [1], [0, 0, 1, 1], [], []>} : vector<304x12xbf16>, vector<12x128xbf16>, vector<304x128xf32> -> vector<304x128xf32>
    %96 = arith.addf %90, %95 : vector<304x128xf32>
    %c0_84 = arith.constant 0 : index
    %c0_85 = arith.constant 0 : index
    %97 = vector.load %arg4[%c0_84, %c0_85] : memref<1x128xf32, #tpu.memory_space<vmem>>, vector<1x128xf32>
    %98 = vector.broadcast %97 : vector<1x128xf32> to vector<304x128xf32>
    %99 = arith.mulf %96, %98 : vector<304x128xf32>
    %c0_86 = arith.constant 0 : index
    %c0_87 = arith.constant 0 : index
    %100 = vector.load %arg5[%c0_86, %c0_87] : memref<1x128xf32, #tpu.memory_space<vmem>>, vector<1x128xf32>
    %101 = vector.broadcast %100 : vector<1x128xf32> to vector<304x128xf32>
    %102 = arith.addf %99, %101 : vector<304x128xf32>
    %cst_88 = arith.constant 0.000000e+00 : f32
    %103 = vector.broadcast %cst_88 : f32 to vector<304x128xf32>
    %104 = arith.maximumf %102, %103 : vector<304x128xf32>
    %105 = arith.truncf %104 : vector<304x128xf32> to vector<304x128xbf16>
    %c0_89 = arith.constant 0 : index
    %c0_90 = arith.constant 0 : index
    %c0_91 = arith.constant 0 : index
    %106 = vector.load %arg6[%c0_89, %c0_90, %c0_91] : memref<1x304x128xbf16, #tpu.memory_space<vmem>>, vector<1x304x128xbf16>
    %107 = vector.shape_cast %106 : vector<1x304x128xbf16> to vector<304x128xbf16>
    %108 = vector.shape_cast %105 : vector<304x128xbf16> to vector<1x304x128xbf16>
    tpu.vector_store %arg6[%c0_89, %c0_90, %c0_91], %108 {strides = array<i32>} : memref<1x304x128xbf16, #tpu.memory_space<vmem>>, vector<1x304x128xbf16>,
    return
  }
  func.func @transform_0(%arg0: i32, %arg1: i32) -> (i32, i32, i32) {
    %c0_i32 = arith.constant 0 : i32
    %c0_i32_0 = arith.constant 0 : i32
    %c0_i32_1 = arith.constant 0 : i32
    return %arg0, %c0_i32, %c0_i32_0 : i32, i32, i32
  }
  func.func @transform_1(%arg0: i32, %arg1: i32) -> (i32, i32, i32) {
    %c0_i32 = arith.constant 0 : i32
    %c0_i32_0 = arith.constant 0 : i32
    %c0_i32_1 = arith.constant 0 : i32
    return %c0_i32, %c0_i32_0, %arg1 : i32, i32, i32
  }
  func.func @transform_2(%arg0: i32, %arg1: i32) -> (i32, i32) {
    %c0_i32 = arith.constant 0 : i32
    %c0_i32_0 = arith.constant 0 : i32
    return %c0_i32, %arg1 : i32, i32
  }
  func.func @transform_3(%arg0: i32, %arg1: i32) -> (i32, i32) {
    %c0_i32 = arith.constant 0 : i32
    %c0_i32_0 = arith.constant 0 : i32
    return %c0_i32, %arg1 : i32, i32
  }
  func.func @transform_4(%arg0: i32, %arg1: i32) -> (i32, i32, i32) {
    %c0_i32 = arith.constant 0 : i32
    %c0_i32_0 = arith.constant 0 : i32
    return %arg0, %c0_i32, %arg1 : i32, i32, i32
  }
}

</mosaic_0001>

<llo_original>
// kernel: tpu_custom_call.1
$region0: #{tpu_custom_call.1}
  #allocation0 [shape = 'u32[]', space=smem, size = 0x4, offset = 0x4, fixed_abs, tag = 'smem constant byte address 0x4 - core index']
  #allocation1 [shape = 'u32[72,128]{1,0:T(1,128)}', space=vmem, size = 0x9000, scoped, tag = 'internal scratch']
  %s0 = inlined_call_operand.vmem [shape: bf16[2,364,12], index: 0, kind: input, shape index: {}]
  %s1 = inlined_call_operand.vmem [shape: bf16[16,12,128], index: 1, kind: input, shape index: {}]
  %s2 = inlined_call_operand.vmem [shape: f32[1,128], index: 2, kind: input, shape index: {}]
  %s3 = inlined_call_operand.vmem [shape: f32[1,128], index: 3, kind: input, shape index: {}]
  %s4 = inlined_call_operand.hbm [shape: bf16[2,304,128], index: 4, kind: output, shape index: {}]
  %s5 = sld [smem:[#allocation0]]
  $region49: #{tpu_custom_call.1} parent=0
    _
  %s7 = ssub.s32 1, %s5
  %s8 = scalar_select 0, %s7, %s5
  $region1: #{tpu_custom_call.1} parent=0
    #allocation2 [shape = 'u8[155648]{0}', space=vmem, size = 0x26000, scoped, tag = 'output window, operand 0']
    #allocation3 [shape = 's32[2]{0}', space=sflag, size = 0x8, scoped, tag = 'scoped memory for tpu_custom_call.1']
    %9 = vsyncpa [#allocation3], 0
    %s10 = scalar_lea.sflag [#allocation3], 1
    %11 = vsyncpa %s10, 0
    loop: start=0, step=1, limit=4
    $region2: #{tpu_custom_call.1} parent=1 // loop_pre_header
      _
    $region3: #{tpu_custom_call.1} parent=1 // loop_header
      %s13 = sphi 0, %s17
      %p14 = scmp.ge.s32.totalorder %s13, 4
      %s20 = sphi 0, %s32
      %s21 = sphi 0, %s28
      %s22 = sphi 0, %s20
      %s23 = sphi 0, %s21
      %s24 = sphi 0, %s22
      %s25 = sphi 0, %s23
      %s35 = sphi 0, %s37
      %s38 = sphi 0, %s35
      %s39 = sphi 0, %s38
      %s55 = sphi 0, %s39
      %s61 = sphi 0, %s63
      %s64 = sphi 0, %s61
      %s65 = sphi 0, %s64
      %s81 = sphi 0, %s65
      %s87 = sphi 0, %s89
      %s90 = sphi 0, %s87
      %s91 = sphi 0, %s90
      %s107 = sphi 0, %s91
      %s113 = sphi 0, %s115
      %s116 = sphi 0, %s113
      %s117 = sphi 0, %s116
      %s133 = sphi 0, %s117
      %s141 = sphi 0, %s143
      %s144 = sphi 0, %s141
      %s145 = sphi 0, %s144
      %s161 = sphi 0, %s145
    $region4: #{tpu_custom_call.1} parent=1 // loop_header_branch
      %16 = sbr.rel (%p14) target = $region8
    $region5: #{tpu_custom_call.1} parent=1 // loop_body
      %s18 = ssub.s32 %s13, 1
      %s19 = ssub.s32 %s13, 2
      %s26 = sadd.s32 1, %s21
      %p27 = scmp.ge.s32.totalorder %s26, 1
      %s28 = scalar_select %p27, 0, %s26
      %s29 = sadd.s32 1, %s20
      %s30 = scalar_select %p27, %s29, %s20
      %p31 = scmp.ge.s32.totalorder %s30, 2
      %s32 = scalar_select %p31, 0, %s30
      %s33 = ssub.s32 %s20, %s32
      %p34 = scmp.eq.s32.totalorder %s33, 0
      %s36 = sadd.s32 %s35, 1
      %s37 = scalar_select %p34, %s35, %s36
      %p40 = pneg %p34
      %p41 = scmp.eq.s32.totalorder %s13, 1
      %p42 = por %p40, %p41
      %p43 = scmp.ne.s32.totalorder %s35, %s38
      %p44 = scmp.eq.s32.totalorder %s13, 0
      %p45 = por %p43, %p44
      %p46 = scmp.ne.s32.totalorder %s35, %s38
      %p47 = scmp.eq.s32.totalorder %s18, 1
      %p48 = por %p46, %p47
      %p49 = scmp.ne.s32.totalorder %s38, %s39
      %p50 = scmp.eq.s32.totalorder %s18, 0
      %p51 = por %p49, %p50
      %p52 = scmp.ne.s32.totalorder %s38, %s39
      %p53 = scmp.eq.s32.totalorder %s19, 1
      %p54 = por %p52, %p53
      %p56 = scmp.ne.s32.totalorder %s39, %s55
      %p57 = scmp.eq.s32.totalorder %s19, 0
      %p58 = por %p56, %p57
      %s59 = ssub.s32 %s21, %s28
      %p60 = scmp.eq.s32.totalorder %s59, 0
      %s62 = sadd.s32 %s61, 1
      %s63 = scalar_select %p60, %s61, %s62
      %p66 = pneg %p60
      %p67 = scmp.eq.s32.totalorder %s13, 1
      %p68 = por %p66, %p67
      %p69 = scmp.ne.s32.totalorder %s61, %s64
      %p70 = scmp.eq.s32.totalorder %s13, 0
      %p71 = por %p69, %p70
      %p72 = scmp.ne.s32.totalorder %s61, %s64
      %p73 = scmp.eq.s32.totalorder %s18, 1
      %p74 = por %p72, %p73
      %p75 = scmp.ne.s32.totalorder %s64, %s65
      %p76 = scmp.eq.s32.totalorder %s18, 0
      %p77 = por %p75, %p76
      %p78 = scmp.ne.s32.totalorder %s64, %s65
      %p79 = scmp.eq.s32.totalorder %s19, 1
      %p80 = por %p78, %p79
      %p82 = scmp.ne.s32.totalorder %s65, %s81
      %p83 = scmp.eq.s32.totalorder %s19, 0
      %p84 = por %p82, %p83
      %s85 = ssub.s32 %s21, %s28
      %p86 = scmp.eq.s32.totalorder %s85, 0
      %s88 = sadd.s32 %s87, 1
      %s89 = scalar_select %p86, %s87, %s88
      %p92 = pneg %p86
      %p93 = scmp.eq.s32.totalorder %s13, 1
      %p94 = por %p92, %p93
      %p95 = scmp.ne.s32.totalorder %s87, %s90
      %p96 = scmp.eq.s32.totalorder %s13, 0
      %p97 = por %p95, %p96
      %p98 = scmp.ne.s32.totalorder %s87, %s90
      %p99 = scmp.eq.s32.totalorder %s18, 1
      %p100 = por %p98, %p99
      %p101 = scmp.ne.s32.totalorder %s90, %s91
      %p102 = scmp.eq.s32.totalorder %s18, 0
      %p103 = por %p101, %p102
      %p104 = scmp.ne.s32.totalorder %s90, %s91
      %p105 = scmp.eq.s32.totalorder %s19, 1
      %p106 = por %p104, %p105
      %p108 = scmp.ne.s32.totalorder %s91, %s107
      %p109 = scmp.eq.s32.totalorder %s19, 0
      %p110 = por %p108, %p109
      %s111 = ssub.s32 %s21, %s28
      %p112 = scmp.eq.s32.totalorder %s111, 0
      %s114 = sadd.s32 %s113, 1
      %s115 = scalar_select %p112, %s113, %s114
      %p118 = pneg %p112
      %p119 = scmp.eq.s32.totalorder %s13, 1
      %p120 = por %p118, %p119
      %p121 = scmp.ne.s32.totalorder %s113, %s116
      %p122 = scmp.eq.s32.totalorder %s13, 0
      %p123 = por %p121, %p122
      %p124 = scmp.ne.s32.totalorder %s113, %s116
      %p125 = scmp.eq.s32.totalorder %s18, 1
      %p126 = por %p124, %p125
      %p127 = scmp.ne.s32.totalorder %s116, %s117
      %p128 = scmp.eq.s32.totalorder %s18, 0
      %p129 = por %p127, %p128
      %p130 = scmp.ne.s32.totalorder %s116, %s117
      %p131 = scmp.eq.s32.totalorder %s19, 1
      %p132 = por %p130, %p131
      %p134 = scmp.ne.s32.totalorder %s117, %s133
      %p135 = scmp.eq.s32.totalorder %s19, 0
      %p136 = por %p134, %p135
      %s137 = ssub.s32 %s20, %s32
      %s138 = ssub.s32 %s21, %s28
      %s139 = sor.u32 %s137, %s138
      %p140 = scmp.eq.s32.totalorder %s139, 0
      %s142 = sadd.s32 %s141, 1
      %s143 = scalar_select %p140, %s141, %s142
      %p146 = pneg %p140
      %p147 = scmp.eq.s32.totalorder %s13, 1
      %p148 = por %p146, %p147
      %p149 = scmp.ne.s32.totalorder %s141, %s144
      %p150 = scmp.eq.s32.totalorder %s13, 0
      %p151 = por %p149, %p150
      %p152 = scmp.ne.s32.totalorder %s141, %s144
      %p153 = scmp.eq.s32.totalorder %s18, 1
      %p154 = por %p152, %p153
      %p155 = scmp.ne.s32.totalorder %s144, %s145
      %p156 = scmp.eq.s32.totalorder %s18, 0
      %p157 = por %p155, %p156
      %p158 = scmp.ne.s32.totalorder %s144, %s145
      %p159 = scmp.eq.s32.totalorder %s19, 1
      %p160 = por %p158, %p159
      %p162 = scmp.ne.s32.totalorder %s145, %s161
      %p163 = scmp.eq.s32.totalorder %s19, 0
      %p164 = por %p162, %p163
      %p165 = scmp.le.s32.totalorder 1, %s13
      %p166 = scmp.lt.s32.totalorder %s13, 3
      %p167 = pnand %p165, %p166
      %p168 = pneg %p167
      // Predicated region
      $region9: #{tpu_custom_call.1} parent=5 // pred_check
        _
      $region10: #{tpu_custom_call.1} parent=5 // pred_check_branch
        %170 = sbr.rel (%p167) target = $region12
      $region11: #{tpu_custom_call.1} parent=5 // pred_region
        %s171 = ssub.s32 %s13, 1
        // Predicated region
        $region13: #{tpu_custom_call.1} parent=11 // pred_check
          %p172 = pneg %p77
        $region14: #{tpu_custom_call.1} parent=11 // pred_check_branch
          %174 = sbr.rel (%p172) target = $region16
        $region15: #{tpu_custom_call.1} parent=11 // pred_region
          %p175 = scmp.lt.s32.totalorder %s23, 0
          %s176 = scalar_select %p175, %s23, 0
          %s177 = smul.addr %s176, 4
          %s178 = scalar_lea.vmem %s1, %s177
        $region16: #{tpu_custom_call.1} parent=11 // pred_fallthru
          _
        // Predicated region
        $region17: #{tpu_custom_call.1} parent=11 // pred_check
          %p179 = pneg %p103
        $region18: #{tpu_custom_call.1} parent=11 // pred_check_branch
          %181 = sbr.rel (%p179) target = $region20
        $region19: #{tpu_custom_call.1} parent=11 // pred_region
          %p182 = scmp.lt.s32.totalorder %s23, 0
          %s183 = scalar_select %p182, %s23, 0
          %s184 = scalar_lea.vmem %s2, %s183
        $region20: #{tpu_custom_call.1} parent=11 // pred_fallthru
          _
        // Predicated region
        $region21: #{tpu_custom_call.1} parent=11 // pred_check
          %p185 = pneg %p129
        $region22: #{tpu_custom_call.1} parent=11 // pred_check_branch
          %187 = sbr.rel (%p185) target = $region24
        $region23: #{tpu_custom_call.1} parent=11 // pred_region
          %p188 = scmp.lt.s32.totalorder %s23, 0
          %s189 = scalar_select %p188, %s23, 0
          %s190 = scalar_lea.vmem %s3, %s189
        $region24: #{tpu_custom_call.1} parent=11 // pred_fallthru
          _
      $region12: #{tpu_custom_call.1} parent=5 // pred_fallthru
        _
      %p191 = scmp.lt.s32.totalorder %s13, 2
      // Predicated region
      $region25: #{tpu_custom_call.1} parent=5 // pred_check
        %p192 = pneg %p191
      $region26: #{tpu_custom_call.1} parent=5 // pred_check_branch
        %194 = sbr.rel (%p192) target = $region28
      $region27: #{tpu_custom_call.1} parent=5 // pred_region
        // Predicated region
        $region29: #{tpu_custom_call.1} parent=27 // pred_check
          %p195 = pneg %p45
        $region30: #{tpu_custom_call.1} parent=27 // pred_check_branch
          %197 = sbr.rel (%p195) target = $region32
        $region31: #{tpu_custom_call.1} parent=27 // pred_region
          %p198 = scmp.lt.s32.totalorder %s20, 1
          %s199 = scalar_select %p198, %s20, 1
          %s200 = smul.addr %s199, 46
          %s201 = smul.addr %s200, 4
          %s202 = scalar_lea.vmem %s0, %s201
        $region32: #{tpu_custom_call.1} parent=27 // pred_fallthru
          _
      $region28: #{tpu_custom_call.1} parent=5 // pred_fallthru
        _
      %p203 = scmp.le.s32.totalorder 1, %s13
      %p204 = scmp.lt.s32.totalorder %s13, 3
      %p205 = pnand %p203, %p204
      %p206 = pneg %p205
      // Predicated region
      $region33: #{tpu_custom_call.1} parent=5 // pred_check
        _
      $region34: #{tpu_custom_call.1} parent=5 // pred_check_branch
        %208 = sbr.rel (%p205) target = $region36
      $region35: #{tpu_custom_call.1} parent=5 // pred_region
        %s209 = ssub.s32 %s13, 1
        %p210 = scmp.lt.s32.totalorder %s22, 1
        %s211 = scalar_select %p210, %s22, 1
        %s212 = smul.addr %s211, 46
        %s213 = smul.addr %s212, 4
        %s214 = scalar_lea.vmem %s0, %s213
        %p215 = pneg %p51
        %p216 = pneg %p48
        %p217 = scmp.lt.s32.totalorder %s23, 0
        %s218 = scalar_select %p217, %s23, 0
        %s219 = smul.addr %s218, 4
        %s220 = scalar_lea.vmem %s1, %s219
        %p221 = pneg %p77
        %p222 = pneg %p74
        %p223 = scmp.lt.s32.totalorder %s23, 0
        %s224 = scalar_select %p223, %s23, 0
        %s225 = scalar_lea.vmem %s2, %s224
        %p226 = pneg %p103
        %p227 = pneg %p100
        %p228 = scmp.lt.s32.totalorder %s23, 0
        %s229 = scalar_select %p228, %s23, 0
        %s230 = scalar_lea.vmem %s3, %s229
        %p231 = pneg %p129
        %p232 = pneg %p126
        %p233 = pneg %p157
        %p234 = pneg %p154
        %s235 = sand.u32 %s144, 1
        %s236 = scalar_lea.sflag [#allocation3], %s235
        %s237 = sand.u32 %s144, 1
        %s238 = smul.addr %s237, 152
        %s239 = scalar_lea.vmem [#allocation2], %s238
        %p240 = scmp.lt.s32.totalorder %s22, 1
        %s241 = scalar_select %p240, %s22, 1
        %s242 = smul.addr %s241, 46
        %s243 = smul.addr %s242, 4
        %s244 = scalar_lea.vmem %s0, %s243
        %p245 = scmp.lt.s32.totalorder %s23, 0
        %s246 = scalar_select %p245, %s23, 0
        %s247 = smul.addr %s246, 4
        %s248 = scalar_lea.vmem %s1, %s247
        %p249 = scmp.lt.s32.totalorder %s23, 0
        %s250 = scalar_select %p249, %s23, 0
        %s251 = scalar_lea.vmem %s2, %s250
        %p252 = scmp.lt.s32.totalorder %s23, 0
        %s253 = scalar_select %p252, %s23, 0
        %s254 = scalar_lea.vmem %s3, %s253
        %v256 = vld [vmem:[%s244] sm:$0xf]
        %v257 = vld [vmem:[%s244 + $0x4] sm:$0xf]
        %v258 = vld [vmem:[%s244 + $0x8] sm:$0xf]
        %v259 = vld [vmem:[%s244 + $0xc] sm:$0xf]
        %v260 = vld [vmem:[%s244 + $0x10] sm:$0xf]
        %v261 = vld [vmem:[%s244 + $0x14] sm:$0xf]
        %v262 = vld [vmem:[%s244 + $0x18] sm:$0xf]
        %v263 = vld [vmem:[%s244 + $0x1c] sm:$0xf]
        %v264 = vld [vmem:[%s244 + $0x20] sm:$0xf]
        %v265 = vld [vmem:[%s244 + $0x24] sm:$0xf]
        %v266 = vld [vmem:[%s244 + $0x28] sm:$0xf]
        %v267 = vld [vmem:[%s244 + $0x2c] sm:$0xf]
        %v268 = vld [vmem:[%s244 + $0x30] sm:$0xf]
        %v269 = vld [vmem:[%s244 + $0x34] sm:$0xf]
        %v270 = vld [vmem:[%s244 + $0x38] sm:$0xf]
        %v271 = vld [vmem:[%s244 + $0x3c] sm:$0xf]
        %v272 = vld [vmem:[%s244 + $0x40] sm:$0xf]
        %v273 = vld [vmem:[%s244 + $0x44] sm:$0xf]
        %v274 = vld [vmem:[%s244 + $0x48] sm:$0xf]
        %v275 = vld [vmem:[%s244 + $0x4c] sm:$0xf]
        %v276 = vld [vmem:[%s244 + $0x50] sm:$0xf]
        %v277 = vld [vmem:[%s244 + $0x54] sm:$0xf]
        %v278 = vld [vmem:[%s244 + $0x58] sm:$0xf]
        %v279 = vld [vmem:[%s244 + $0x5c] sm:$0xf]
        %v280 = vld [vmem:[%s244 + $0x60] sm:$0xf]
        %v281 = vld [vmem:[%s244 + $0x64] sm:$0xf]
        %v282 = vld [vmem:[%s244 + $0x68] sm:$0xf]
        %v283 = vld [vmem:[%s244 + $0x6c] sm:$0xf]
        %v284 = vld [vmem:[%s244 + $0x70] sm:$0xf]
        %v285 = vld [vmem:[%s244 + $0x74] sm:$0xf]
        %v286 = vld [vmem:[%s244 + $0x78] sm:$0xf]
        %v287 = vld [vmem:[%s244 + $0x7c] sm:$0xf]
        %v288 = vld [vmem:[%s244 + $0x80] sm:$0xf]
        %v289 = vld [vmem:[%s244 + $0x84] sm:$0xf]
        %v290 = vld [vmem:[%s244 + $0x88] sm:$0xf]
        %v291 = vld [vmem:[%s244 + $0x8c] sm:$0xf]
        %v292 = vld [vmem:[%s244 + $0x90] sm:$0xf]
        %v293 = vld [vmem:[%s244 + $0x94] sm:$0xf]
        %v294 = vld [vmem:[%s248] sm:$0xf]
        %v295 = vld [vmem:[%s248 + $0x4] sm:$0x3]
        %v296 = vld [vmem:[%s244 + $0x98] sm:$0x1]
        %s297 = scalar_lea.vmem %s248, 8
        %v298 = vld [vmem:[%s297] sm:$0xf]
        %v299 = vld [vmem:[%s297 + $0x4] sm:$0x3]
        %v339 = vunpack.c.l.b16 %v256
        %v340 = vunpack.c.l.b16 %v257
        %v341 = vunpack.c.l.b16 %v258
        %v342 = vunpack.c.l.b16 %v259
        %v343 = vunpack.c.l.b16 %v260
        %v344 = vunpack.c.l.b16 %v261
        %v345 = vunpack.c.l.b16 %v262
        %v346 = vunpack.c.l.b16 %v263
        %v347 = vunpack.c.l.b16 %v264
        %v348 = vunpack.c.l.b16 %v265
        %v349 = vunpack.c.l.b16 %v266
        %v350 = vunpack.c.l.b16 %v267
        %v351 = vunpack.c.l.b16 %v268
        %v352 = vunpack.c.l.b16 %v269
        %v353 = vunpack.c.l.b16 %v270
        %v354 = vunpack.c.l.b16 %v271
        %v355 = vunpack.c.l.b16 %v272
        %v356 = vunpack.c.l.b16 %v273
        %v357 = vunpack.c.l.b16 %v274
        %v358 = vunpack.c.l.b16 %v275
        %v359 = vunpack.c.l.b16 %v276
        %v360 = vunpack.c.l.b16 %v277
        %v361 = vunpack.c.l.b16 %v278
        %v362 = vunpack.c.l.b16 %v279
        %v363 = vunpack.c.l.b16 %v280
        %v364 = vunpack.c.l.b16 %v281
        %v365 = vunpack.c.l.b16 %v282
        %v366 = vunpack.c.l.b16 %v283
        %v367 = vunpack.c.l.b16 %v284
        %v368 = vunpack.c.l.b16 %v285
        %v369 = vunpack.c.l.b16 %v286
        %v370 = vunpack.c.l.b16 %v287
        %v371 = vunpack.c.l.b16 %v288
        %v372 = vunpack.c.l.b16 %v289
        %v373 = vunpack.c.l.b16 %v290
        %v374 = vunpack.c.l.b16 %v291
        %v375 = vunpack.c.l.b16 %v292
        %v376 = vunpack.c.l.b16 %v293
        %v377 = vunpack.c.l.b16 %v296
        %v378 = vpack.c.b16 %v340, %v339
        %v379 = vpack.c.b16 %v342, %v341
        %v380 = vpack.c.b16 %v344, %v343
        %v381 = vpack.c.b16 %v346, %v345
        %v382 = vpack.c.b16 %v348, %v347
        %v383 = vpack.c.b16 %v350, %v349
        %v384 = vpack.c.b16 %v352, %v351
        %v385 = vpack.c.b16 %v354, %v353
        %v386 = vpack.c.b16 %v356, %v355
        %v387 = vpack.c.b16 %v358, %v357
        %v388 = vpack.c.b16 %v360, %v359
        %v389 = vpack.c.b16 %v362, %v361
        %v390 = vpack.c.b16 %v364, %v363
        %v391 = vpack.c.b16 %v366, %v365
        %v392 = vpack.c.b16 %v368, %v367
        %v393 = vpack.c.b16 %v370, %v369
        %v394 = vpack.c.b16 %v372, %v371
        %v395 = vpack.c.b16 %v374, %v373
        %v396 = vpack.c.b16 %v376, %v375
        %v397 = vpack.c.b16 %v377, %v377
        %vm398 = vsmask.f32 7424
        %v400 = vshrl.u32 %v378, 16
        %v402 = vshll.u32 %v378, 16
        %v404 = vrot.slane %v402, 1
        %v405 = vor.u32 %v400, %v404
        %v407 = vshll.u32 %v379, 16
        %v409 = vrot.slane %v407, 1
        %v410 = vsel %vm398, %v405, %v409
        %v411 = vshrl.u32 %v379, 16
        %v413 = vor.u32 %v411, %v409
        %v415 = vshll.u32 %v380, 16
        %v417 = vrot.slane %v415, 1
        %v418 = vsel %vm398, %v413, %v417
        %v419 = vshrl.u32 %v380, 16
        %v421 = vor.u32 %v419, %v417
        %v423 = vshll.u32 %v381, 16
        %v425 = vrot.slane %v423, 1
        %v426 = vsel %vm398, %v421, %v425
        %v427 = vshrl.u32 %v381, 16
        %v429 = vor.u32 %v427, %v425
        %v431 = vshll.u32 %v382, 16
        %v433 = vrot.slane %v431, 1
        %v434 = vsel %vm398, %v429, %v433
        %v435 = vshrl.u32 %v382, 16
        %v437 = vor.u32 %v435, %v433
        %v439 = vshll.u32 %v383, 16
        %v441 = vrot.slane %v439, 1
        %v442 = vsel %vm398, %v437, %v441
        %v443 = vshrl.u32 %v383, 16
        %v445 = vor.u32 %v443, %v441
        %v447 = vshll.u32 %v384, 16
        %v449 = vrot.slane %v447, 1
        %v450 = vsel %vm398, %v445, %v449
        %v451 = vshrl.u32 %v384, 16
        %v453 = vor.u32 %v451, %v449
        %v455 = vshll.u32 %v385, 16
        %v457 = vrot.slane %v455, 1
        %v458 = vsel %vm398, %v453, %v457
        %v459 = vshrl.u32 %v385, 16
        %v461 = vor.u32 %v459, %v457
        %v463 = vshll.u32 %v386, 16
        %v465 = vrot.slane %v463, 1
        %v466 = vsel %vm398, %v461, %v465
        %v467 = vshrl.u32 %v386, 16
        %v469 = vor.u32 %v467, %v465
        %v471 = vshll.u32 %v387, 16
        %v473 = vrot.slane %v471, 1
        %v474 = vsel %vm398, %v469, %v473
        %v475 = vshrl.u32 %v387, 16
        %v477 = vor.u32 %v475, %v473
        %v479 = vshll.u32 %v388, 16
        %v481 = vrot.slane %v479, 1
        %v482 = vsel %vm398, %v477, %v481
        %v483 = vshrl.u32 %v388, 16
        %v485 = vor.u32 %v483, %v481
        %v487 = vshll.u32 %v389, 16
        %v489 = vrot.slane %v487, 1
        %v490 = vsel %vm398, %v485, %v489
        %v491 = vshrl.u32 %v389, 16
        %v493 = vor.u32 %v491, %v489
        %v495 = vshll.u32 %v390, 16
        %v497 = vrot.slane %v495, 1
        %v498 = vsel %vm398, %v493, %v497
        %v499 = vshrl.u32 %v390, 16
        %v501 = vor.u32 %v499, %v497
        %v503 = vshll.u32 %v391, 16
        %v505 = vrot.slane %v503, 1
        %v506 = vsel %vm398, %v501, %v505
        %v507 = vshrl.u32 %v391, 16
        %v509 = vor.u32 %v507, %v505
        %v511 = vshll.u32 %v392, 16
        %v513 = vrot.slane %v511, 1
        %v514 = vsel %vm398, %v509, %v513
        %v515 = vshrl.u32 %v392, 16
        %v517 = vor.u32 %v515, %v513
        %v519 = vshll.u32 %v393, 16
        %v521 = vrot.slane %v519, 1
        %v522 = vsel %vm398, %v517, %v521
        %v523 = vshrl.u32 %v393, 16
        %v525 = vor.u32 %v523, %v521
        %v527 = vshll.u32 %v394, 16
        %v529 = vrot.slane %v527, 1
        %v530 = vsel %vm398, %v525, %v529
        %v531 = vshrl.u32 %v394, 16
        %v533 = vor.u32 %v531, %v529
        %v535 = vshll.u32 %v395, 16
        %v537 = vrot.slane %v535, 1
        %v538 = vsel %vm398, %v533, %v537
        %v539 = vshrl.u32 %v395, 16
        %v541 = vor.u32 %v539, %v537
        %v543 = vshll.u32 %v396, 16
        %v545 = vrot.slane %v543, 1
        %v546 = vsel %vm398, %v541, %v545
        %v547 = vshrl.u32 %v396, 16
        %v549 = vor.u32 %v547, %v545
        %v551 = vshll.u32 %v397, 16
        %v553 = vrot.slane %v551, 1
        %v554 = vsel %vm398, %v549, %v553
        %v557 = vunpack.c.l.b16 %v298
        %v558 = vunpack.c.l.b16 %v299
        %v559 = vpack.c.b16 %v558, %v557
        %vm560 = vcmask 97280
        %v562 = vsel %vm560, %v410, 0
        %v565 = vsel %vm560, %v418, 0
        %v568 = vsel %vm560, %v426, 0
        %v571 = vsel %vm560, %v434, 0
        %v574 = vsel %vm560, %v442, 0
        %v577 = vsel %vm560, %v450, 0
        %v580 = vsel %vm560, %v458, 0
        %v583 = vsel %vm560, %v466, 0
        %v586 = vsel %vm560, %v474, 0
        %v589 = vsel %vm560, %v482, 0
        %v592 = vsel %vm560, %v490, 0
        %v595 = vsel %vm560, %v498, 0
        %v598 = vsel %vm560, %v506, 0
        %v601 = vsel %vm560, %v514, 0
        %v604 = vsel %vm560, %v522, 0
        %v607 = vsel %vm560, %v530, 0
        %v610 = vsel %vm560, %v538, 0
        %v613 = vsel %vm560, %v546, 0
        %v616 = vsel %vm560, %v554, 0
        %vm618 = vcmask 1045504
        %v620 = vsel %vm618, %v559, 0
        %622 = vmatpush.bf16.msra.mxu0 0
        %623 = vmatpush.bf16.msra.mxu0 0
        %624 = vmatpush.bf16.msra.mxu0 0
        %625 = vmatpush.bf16.msra.mxu0 0
        %626 = vmatpush.bf16.msra.mxu0 0
        %627 = vmatpush.bf16.msra.mxu0 0
        %628 = vmatpush.bf16.msra.mxu0 0
        %629 = vmatpush.bf16.msra.mxu0 %v620
        %630 = vmatmul.bf16.gmra.mxu0 %v562
        %v631 = vpop.f32.mrf.mxu0
        %v632 = vadd.f32 0.0, %v631
        %v633 = vpop.f32.mrf.mxu0
        %v634 = vadd.f32 0.0, %v633
        %635 = vmatmul.bf16.gmra.mxu0 %v565
        %v636 = vpop.f32.mrf.mxu0
        %v637 = vadd.f32 0.0, %v636
        %v638 = vpop.f32.mrf.mxu0
        %v639 = vadd.f32 0.0, %v638
        %640 = vmatmul.bf16.gmra.mxu0 %v568
        %v641 = vpop.f32.mrf.mxu0
        %v642 = vadd.f32 0.0, %v641
        %v643 = vpop.f32.mrf.mxu0
        %v644 = vadd.f32 0.0, %v643
        %645 = vmatmul.bf16.gmra.mxu0 %v571
        %v646 = vpop.f32.mrf.mxu0
        %v647 = vadd.f32 0.0, %v646
        %v648 = vpop.f32.mrf.mxu0
        %v649 = vadd.f32 0.0, %v648
        %650 = vmatmul.bf16.gmra.mxu0 %v574
        %v651 = vpop.f32.mrf.mxu0
        %v652 = vadd.f32 0.0, %v651
        %v653 = vpop.f32.mrf.mxu0
        %v654 = vadd.f32 0.0, %v653
        %655 = vmatmul.bf16.gmra.mxu0 %v577
        %v656 = vpop.f32.mrf.mxu0
        %v657 = vadd.f32 0.0, %v656
        %v658 = vpop.f32.mrf.mxu0
        %v659 = vadd.f32 0.0, %v658
        %660 = vmatmul.bf16.gmra.mxu0 %v580
        %v661 = vpop.f32.mrf.mxu0
        %v662 = vadd.f32 0.0, %v661
        %v663 = vpop.f32.mrf.mxu0
        %v664 = vadd.f32 0.0, %v663
        %665 = vmatmul.bf16.gmra.mxu0 %v583
        %v666 = vpop.f32.mrf.mxu0
        %v667 = vadd.f32 0.0, %v666
        %v668 = vpop.f32.mrf.mxu0
        %v669 = vadd.f32 0.0, %v668
        %670 = vmatmul.bf16.gmra.mxu0 %v586
        %v671 = vpop.f32.mrf.mxu0
        %v672 = vadd.f32 0.0, %v671
        %v673 = vpop.f32.mrf.mxu0
        %v674 = vadd.f32 0.0, %v673
        %675 = vmatmul.bf16.gmra.mxu0 %v589
        %v676 = vpop.f32.mrf.mxu0
        %v677 = vadd.f32 0.0, %v676
        %v678 = vpop.f32.mrf.mxu0
        %v679 = vadd.f32 0.0, %v678
        %680 = vmatmul.bf16.gmra.mxu0 %v592
        %v681 = vpop.f32.mrf.mxu0
        %v682 = vadd.f32 0.0, %v681
        %v683 = vpop.f32.mrf.mxu0
        %v684 = vadd.f32 0.0, %v683
        %685 = vmatmul.bf16.gmra.mxu0 %v595
        %v686 = vpop.f32.mrf.mxu0
        %v687 = vadd.f32 0.0, %v686
        %v688 = vpop.f32.mrf.mxu0
        %v689 = vadd.f32 0.0, %v688
        %690 = vmatmul.bf16.gmra.mxu0 %v598
        %v691 = vpop.f32.mrf.mxu0
        %v692 = vadd.f32 0.0, %v691
        %v693 = vpop.f32.mrf.mxu0
        %v694 = vadd.f32 0.0, %v693
        %695 = vmatmul.bf16.gmra.mxu0 %v601
        %v696 = vpop.f32.mrf.mxu0
        %v697 = vadd.f32 0.0, %v696
        %v698 = vpop.f32.mrf.mxu0
        %v699 = vadd.f32 0.0, %v698
        %700 = vmatmul.bf16.gmra.mxu0 %v604
        %v701 = vpop.f32.mrf.mxu0
        %v702 = vadd.f32 0.0, %v701
        %v703 = vpop.f32.mrf.mxu0
        %v704 = vadd.f32 0.0, %v703
        %705 = vmatmul.bf16.gmra.mxu0 %v607
        %v706 = vpop.f32.mrf.mxu0
        %v707 = vadd.f32 0.0, %v706
        %v708 = vpop.f32.mrf.mxu0
        %v709 = vadd.f32 0.0, %v708
        %710 = vmatmul.bf16.gmra.mxu0 %v610
        %v711 = vpop.f32.mrf.mxu0
        %v712 = vadd.f32 0.0, %v711
        %v713 = vpop.f32.mrf.mxu0
        %v714 = vadd.f32 0.0, %v713
        %715 = vmatmul.bf16.gmra.mxu0 %v613
        %v716 = vpop.f32.mrf.mxu0
        %v717 = vadd.f32 0.0, %v716
        %v718 = vpop.f32.mrf.mxu0
        %v719 = vadd.f32 0.0, %v718
        %720 = vmatmul.bf16.gmra.mxu0 %v616
        %v721 = vpop.f32.mrf.mxu0
        %v722 = vadd.f32 0.0, %v721
        %v723 = vpop.f32.mrf.mxu0
        %v724 = vadd.f32 0.0, %v723
        %725 = vdwg.mxu0
        %v728 = vunpack.c.l.b16 %v294
        %v729 = vunpack.c.l.b16 %v295
        %v730 = vpack.c.b16 %v729, %v728
        %v731 = vsel %vm560, %v378, 0
        %v733 = vsel %vm560, %v379, 0
        %v735 = vsel %vm560, %v380, 0
        %v737 = vsel %vm560, %v381, 0
        %v739 = vsel %vm560, %v382, 0
        %v741 = vsel %vm560, %v383, 0
        %v743 = vsel %vm560, %v384, 0
        %v745 = vsel %vm560, %v385, 0
        %v747 = vsel %vm560, %v386, 0
        %v749 = vsel %vm560, %v387, 0
        %v751 = vsel %vm560, %v388, 0
        %v753 = vsel %vm560, %v389, 0
        %v755 = vsel %vm560, %v390, 0
        %v757 = vsel %vm560, %v391, 0
        %v759 = vsel %vm560, %v392, 0
        %v761 = vsel %vm560, %v393, 0
        %v763 = vsel %vm560, %v394, 0
        %v765 = vsel %vm560, %v395, 0
        %v767 = vsel %vm560, %v396, 0
        %v770 = vsel %vm618, %v730, 0
        %772 = vmatpush.bf16.msra.mxu0 0
        %773 = vmatpush.bf16.msra.mxu0 0
        %774 = vmatpush.bf16.msra.mxu0 0
        %775 = vmatpush.bf16.msra.mxu0 0
        %776 = vmatpush.bf16.msra.mxu0 0
        %777 = vmatpush.bf16.msra.mxu0 0
        %778 = vmatpush.bf16.msra.mxu0 0
        %779 = vmatpush.bf16.msra.mxu0 %v770
        %780 = vmatmul.bf16.gmra.mxu0 %v731
        %v781 = vpop.f32.mrf.mxu0
        %v782 = vadd.f32 %v632, %v781
        %v783 = vpop.f32.mrf.mxu0
        %v784 = vadd.f32 %v634, %v783
        %785 = vmatmul.bf16.gmra.mxu0 %v733
        %v786 = vpop.f32.mrf.mxu0
        %v787 = vadd.f32 %v637, %v786
        %v788 = vpop.f32.mrf.mxu0
        %v789 = vadd.f32 %v639, %v788
        %790 = vmatmul.bf16.gmra.mxu0 %v735
        %v791 = vpop.f32.mrf.mxu0
        %v792 = vadd.f32 %v642, %v791
        %v793 = vpop.f32.mrf.mxu0
        %v794 = vadd.f32 %v644, %v793
        %795 = vmatmul.bf16.gmra.mxu0 %v737
        %v796 = vpop.f32.mrf.mxu0
        %v797 = vadd.f32 %v647, %v796
        %v798 = vpop.f32.mrf.mxu0
        %v799 = vadd.f32 %v649, %v798
        %800 = vmatmul.bf16.gmra.mxu0 %v739
        %v801 = vpop.f32.mrf.mxu0
        %v802 = vadd.f32 %v652, %v801
        %v803 = vpop.f32.mrf.mxu0
        %v804 = vadd.f32 %v654, %v803
        %805 = vmatmul.bf16.gmra.mxu0 %v741
        %v806 = vpop.f32.mrf.mxu0
        %v807 = vadd.f32 %v657, %v806
        %v808 = vpop.f32.mrf.mxu0
        %v809 = vadd.f32 %v659, %v808
        %810 = vmatmul.bf16.gmra.mxu0 %v743
        %v811 = vpop.f32.mrf.mxu0
        %v812 = vadd.f32 %v662, %v811
        %v813 = vpop.f32.mrf.mxu0
        %v814 = vadd.f32 %v664, %v813
        %815 = vmatmul.bf16.gmra.mxu0 %v745
        %v816 = vpop.f32.mrf.mxu0
        %v817 = vadd.f32 %v667, %v816
        %v818 = vpop.f32.mrf.mxu0
        %v819 = vadd.f32 %v669, %v818
        %820 = vmatmul.bf16.gmra.mxu0 %v747
        %v821 = vpop.f32.mrf.mxu0
        %v822 = vadd.f32 %v672, %v821
        %v823 = vpop.f32.mrf.mxu0
        %v824 = vadd.f32 %v674, %v823
        %825 = vmatmul.bf16.gmra.mxu0 %v749
        %v826 = vpop.f32.mrf.mxu0
        %v827 = vadd.f32 %v677, %v826
        %v828 = vpop.f32.mrf.mxu0
        %v829 = vadd.f32 %v679, %v828
        %830 = vmatmul.bf16.gmra.mxu0 %v751
        %v831 = vpop.f32.mrf.mxu0
        %v832 = vadd.f32 %v682, %v831
        %v833 = vpop.f32.mrf.mxu0
        %v834 = vadd.f32 %v684, %v833
        %835 = vmatmul.bf16.gmra.mxu0 %v753
        %v836 = vpop.f32.mrf.mxu0
        %v837 = vadd.f32 %v687, %v836
        %v838 = vpop.f32.mrf.mxu0
        %v839 = vadd.f32 %v689, %v838
        %840 = vmatmul.bf16.gmra.mxu0 %v755
        %v841 = vpop.f32.mrf.mxu0
        %v842 = vadd.f32 %v692, %v841
        %v843 = vpop.f32.mrf.mxu0
        %v844 = vadd.f32 %v694, %v843
        %845 = vmatmul.bf16.gmra.mxu0 %v757
        %v846 = vpop.f32.mrf.mxu0
        %v847 = vadd.f32 %v697, %v846
        %v848 = vpop.f32.mrf.mxu0
        %v849 = vadd.f32 %v699, %v848
        %850 = vmatmul.bf16.gmra.mxu0 %v759
        %v851 = vpop.f32.mrf.mxu0
        %v852 = vadd.f32 %v702, %v851
        %v853 = vpop.f32.mrf.mxu0
        %v854 = vadd.f32 %v704, %v853
        %855 = vmatmul.bf16.gmra.mxu0 %v761
        %v856 = vpop.f32.mrf.mxu0
        %v857 = vadd.f32 %v707, %v856
        %v858 = vpop.f32.mrf.mxu0
        %v859 = vadd.f32 %v709, %v858
        %860 = vmatmul.bf16.gmra.mxu0 %v763
        %v861 = vpop.f32.mrf.mxu0
        %v862 = vadd.f32 %v712, %v861
        %v863 = vpop.f32.mrf.mxu0
        %v864 = vadd.f32 %v714, %v863
        %865 = vmatmul.bf16.gmra.mxu0 %v765
        %v866 = vpop.f32.mrf.mxu0
        %v867 = vadd.f32 %v717, %v866
        %v868 = vpop.f32.mrf.mxu0
        %v869 = vadd.f32 %v719, %v868
        %870 = vmatmul.bf16.gmra.mxu0 %v767
        %v871 = vpop.f32.mrf.mxu0
        %v872 = vadd.f32 %v722, %v871
        %v873 = vpop.f32.mrf.mxu0
        %v874 = vadd.f32 %v724, %v873
        %875 = vdwg.mxu0
        %v876 = vld [vmem:[%s244] sm:$0xe]
        %s877 = scalar_lea.vmem %s248, 16
        %v878 = vld [vmem:[%s877] sm:$0xf]
        %v879 = vld [vmem:[%s877 + $0x4] sm:$0x3]
        %v881 = vunpack.c.l.b16 %v876
        %v882 = vpack.c.b16 %v340, %v881
        %vm883 = vcmask 1046528
        %v884 = vrot.slane %v882, 1
        %v885 = vrot.slane %v379, 1
        %v886 = vsel %vm883, %v884, %v885
        %v887 = vrot.slane %v380, 1
        %v888 = vsel %vm883, %v885, %v887
        %v889 = vrot.slane %v381, 1
        %v890 = vsel %vm883, %v887, %v889
        %v891 = vrot.slane %v382, 1
        %v892 = vsel %vm883, %v889, %v891
        %v893 = vrot.slane %v383, 1
        %v894 = vsel %vm883, %v891, %v893
        %v895 = vrot.slane %v384, 1
        %v896 = vsel %vm883, %v893, %v895
        %v897 = vrot.slane %v385, 1
        %v898 = vsel %vm883, %v895, %v897
        %v899 = vrot.slane %v386, 1
        %v900 = vsel %vm883, %v897, %v899
        %v901 = vrot.slane %v387, 1
        %v902 = vsel %vm883, %v899, %v901
        %v903 = vrot.slane %v388, 1
        %v904 = vsel %vm883, %v901, %v903
        %v905 = vrot.slane %v389, 1
        %v906 = vsel %vm883, %v903, %v905
        %v907 = vrot.slane %v390, 1
        %v908 = vsel %vm883, %v905, %v907
        %v909 = vrot.slane %v391, 1
        %v910 = vsel %vm883, %v907, %v909
        %v911 = vrot.slane %v392, 1
        %v912 = vsel %vm883, %v909, %v911
        %v913 = vrot.slane %v393, 1
        %v914 = vsel %vm883, %v911, %v913
        %v915 = vrot.slane %v394, 1
        %v916 = vsel %vm883, %v913, %v915
        %v917 = vrot.slane %v395, 1
        %v918 = vsel %vm883, %v915, %v917
        %v919 = vrot.slane %v396, 1
        %v920 = vsel %vm883, %v917, %v919
        %v921 = vrot.slane %v397, 1
        %v922 = vsel %vm883, %v919, %v921
        %v925 = vunpack.c.l.b16 %v878
        %v926 = vunpack.c.l.b16 %v879
        %v927 = vpack.c.b16 %v926, %v925
        %v929 = vsel %vm560, %v886, 0
        %v932 = vsel %vm560, %v888, 0
        %v935 = vsel %vm560, %v890, 0
        %v938 = vsel %vm560, %v892, 0
        %v941 = vsel %vm560, %v894, 0
        %v944 = vsel %vm560, %v896, 0
        %v947 = vsel %vm560, %v898, 0
        %v950 = vsel %vm560, %v900, 0
        %v953 = vsel %vm560, %v902, 0
        %v956 = vsel %vm560, %v904, 0
        %v959 = vsel %vm560, %v906, 0
        %v962 = vsel %vm560, %v908, 0
        %v965 = vsel %vm560, %v910, 0
        %v968 = vsel %vm560, %v912, 0
        %v971 = vsel %vm560, %v914, 0
        %v974 = vsel %vm560, %v916, 0
        %v977 = vsel %vm560, %v918, 0
        %v980 = vsel %vm560, %v920, 0
        %v983 = vsel %vm560, %v922, 0
        %v986 = vsel %vm618, %v927, 0
        %988 = vmatpush.bf16.msra.mxu0 0
        %989 = vmatpush.bf16.msra.mxu0 0
        %990 = vmatpush.bf16.msra.mxu0 0
        %991 = vmatpush.bf16.msra.mxu0 0
        %992 = vmatpush.bf16.msra.mxu0 0
        %993 = vmatpush.bf16.msra.mxu0 0
        %994 = vmatpush.bf16.msra.mxu0 0
        %995 = vmatpush.bf16.msra.mxu0 %v986
        %996 = vmatmul.bf16.gmra.mxu0 %v929
        %v997 = vpop.f32.mrf.mxu0
        %v998 = vadd.f32 0.0, %v997
        %v999 = vpop.f32.mrf.mxu0
        %v1000 = vadd.f32 0.0, %v999
        %1001 = vmatmul.bf16.gmra.mxu0 %v932
        %v1002 = vpop.f32.mrf.mxu0
        %v1003 = vadd.f32 0.0, %v1002
        %v1004 = vpop.f32.mrf.mxu0
        %v1005 = vadd.f32 0.0, %v1004
        %1006 = vmatmul.bf16.gmra.mxu0 %v935
        %v1007 = vpop.f32.mrf.mxu0
        %v1008 = vadd.f32 0.0, %v1007
        %v1009 = vpop.f32.mrf.mxu0
        %v1010 = vadd.f32 0.0, %v1009
        %1011 = vmatmul.bf16.gmra.mxu0 %v938
        %v1012 = vpop.f32.mrf.mxu0
        %v1013 = vadd.f32 0.0, %v1012
        %v1014 = vpop.f32.mrf.mxu0
        %v1015 = vadd.f32 0.0, %v1014
        %1016 = vmatmul.bf16.gmra.mxu0 %v941
        %v1017 = vpop.f32.mrf.mxu0
        %v1018 = vadd.f32 0.0, %v1017
        %v1019 = vpop.f32.mrf.mxu0
        %v1020 = vadd.f32 0.0, %v1019
        %1021 = vmatmul.bf16.gmra.mxu0 %v944
        %v1022 = vpop.f32.mrf.mxu0
        %v1023 = vadd.f32 0.0, %v1022
        %v1024 = vpop.f32.mrf.mxu0
        %v1025 = vadd.f32 0.0, %v1024
        %1026 = vmatmul.bf16.gmra.mxu0 %v947
        %v1027 = vpop.f32.mrf.mxu0
        %v1028 = vadd.f32 0.0, %v1027
        %v1029 = vpop.f32.mrf.mxu0
        %v1030 = vadd.f32 0.0, %v1029
        %1031 = vmatmul.bf16.gmra.mxu0 %v950
        %v1032 = vpop.f32.mrf.mxu0
        %v1033 = vadd.f32 0.0, %v1032
        %v1034 = vpop.f32.mrf.mxu0
        %v1035 = vadd.f32 0.0, %v1034
        %1036 = vmatmul.bf16.gmra.mxu0 %v953
        %v1037 = vpop.f32.mrf.mxu0
        %v1038 = vadd.f32 0.0, %v1037
        %v1039 = vpop.f32.mrf.mxu0
        %v1040 = vadd.f32 0.0, %v1039
        %1041 = vmatmul.bf16.gmra.mxu0 %v956
        %v1042 = vpop.f32.mrf.mxu0
        %v1043 = vadd.f32 0.0, %v1042
        %v1044 = vpop.f32.mrf.mxu0
        %v1045 = vadd.f32 0.0, %v1044
        %1046 = vmatmul.bf16.gmra.mxu0 %v959
        %v1047 = vpop.f32.mrf.mxu0
        %v1048 = vadd.f32 0.0, %v1047
        %v1049 = vpop.f32.mrf.mxu0
        %v1050 = vadd.f32 0.0, %v1049
        %1051 = vmatmul.bf16.gmra.mxu0 %v962
        %v1052 = vpop.f32.mrf.mxu0
        %v1053 = vadd.f32 0.0, %v1052
        %v1054 = vpop.f32.mrf.mxu0
        %v1055 = vadd.f32 0.0, %v1054
        %1056 = vmatmul.bf16.gmra.mxu0 %v965
        %v1057 = vpop.f32.mrf.mxu0
        %v1058 = vadd.f32 0.0, %v1057
        %v1059 = vpop.f32.mrf.mxu0
        %v1060 = vadd.f32 0.0, %v1059
        %1061 = vmatmul.bf16.gmra.mxu0 %v968
        %v1062 = vpop.f32.mrf.mxu0
        %v1063 = vadd.f32 0.0, %v1062
        %v1064 = vpop.f32.mrf.mxu0
        %v1065 = vadd.f32 0.0, %v1064
        %1066 = vmatmul.bf16.gmra.mxu0 %v971
        %v1067 = vpop.f32.mrf.mxu0
        %v1068 = vadd.f32 0.0, %v1067
        %v1069 = vpop.f32.mrf.mxu0
        %v1070 = vadd.f32 0.0, %v1069
        %1071 = vmatmul.bf16.gmra.mxu0 %v974
        %v1072 = vpop.f32.mrf.mxu0
        %v1073 = vadd.f32 0.0, %v1072
        %v1074 = vpop.f32.mrf.mxu0
        %v1075 = vadd.f32 0.0, %v1074
        %1076 = vmatmul.bf16.gmra.mxu0 %v977
        %v1077 = vpop.f32.mrf.mxu0
        %v1078 = vadd.f32 0.0, %v1077
        %v1079 = vpop.f32.mrf.mxu0
        %v1080 = vadd.f32 0.0, %v1079
        %1081 = vmatmul.bf16.gmra.mxu0 %v980
        %v1082 = vpop.f32.mrf.mxu0
        %v1083 = vadd.f32 0.0, %v1082
        %v1084 = vpop.f32.mrf.mxu0
        %v1085 = vadd.f32 0.0, %v1084
        %1086 = vmatmul.bf16.gmra.mxu0 %v983
        %v1087 = vpop.f32.mrf.mxu0
        %v1088 = vadd.f32 0.0, %v1087
        %v1089 = vpop.f32.mrf.mxu0
        %v1090 = vadd.f32 0.0, %v1089
        %1091 = vdwg.mxu0
        %v1092 = vadd.f32 %v782, %v998
        %v1093 = vadd.f32 %v784, %v1000
        %v1094 = vadd.f32 %v787, %v1003
        %v1095 = vadd.f32 %v789, %v1005
        %v1096 = vadd.f32 %v792, %v1008
        %v1097 = vadd.f32 %v794, %v1010
        %v1098 = vadd.f32 %v797, %v1013
        %v1099 = vadd.f32 %v799, %v1015
        %v1100 = vadd.f32 %v802, %v1018
        %v1101 = vadd.f32 %v804, %v1020
        %v1102 = vadd.f32 %v807, %v1023
        %v1103 = vadd.f32 %v809, %v1025
        %v1104 = vadd.f32 %v812, %v1028
        %v1105 = vadd.f32 %v814, %v1030
        %v1106 = vadd.f32 %v817, %v1033
        %v1107 = vadd.f32 %v819, %v1035
        %v1108 = vadd.f32 %v822, %v1038
        %v1109 = vadd.f32 %v824, %v1040
        %v1110 = vadd.f32 %v827, %v1043
        %v1111 = vadd.f32 %v829, %v1045
        %v1112 = vadd.f32 %v832, %v1048
        %v1113 = vadd.f32 %v834, %v1050
        %v1114 = vadd.f32 %v837, %v1053
        %v1115 = vadd.f32 %v839, %v1055
        %v1116 = vadd.f32 %v842, %v1058
        %v1117 = vadd.f32 %v844, %v1060
        %v1118 = vadd.f32 %v847, %v1063
        %v1119 = vadd.f32 %v849, %v1065
        %v1120 = vadd.f32 %v852, %v1068
        %v1121 = vadd.f32 %v854, %v1070
        %v1122 = vadd.f32 %v857, %v1073
        %v1123 = vadd.f32 %v859, %v1075
        %v1124 = vadd.f32 %v862, %v1078
        %v1125 = vadd.f32 %v864, %v1080
        %v1126 = vadd.f32 %v867, %v1083
        %v1127 = vadd.f32 %v869, %v1085
        %v1128 = vadd.f32 %v872, %v1088
        %v1129 = vadd.f32 %v874, %v1090
        %v1130 = vld [vmem:[%s244 + $0x98] sm:$0x3]
        %s1131 = scalar_lea.vmem %s248, 24
        %v1132 = vld [vmem:[%s1131] sm:$0xf]
        %v1133 = vld [vmem:[%s1131 + $0x4] sm:$0x3]
        %v1135 = vunpack.c.l.b16 %v1130
        %v1136 = vpack.c.b16 %v1135, %v1135
        %vm1137 = vsmask.f32 6400
        %v1139 = vshrl.u32 %v882, 16
        %v1141 = vrot.slane %v1139, 1
        %v1142 = vshll.u32 %v882, 16
        %v1144 = vrot.slane %v1142, 2
        %v1145 = vor.u32 %v1141, %v1144
        %v1146 = vrot.slane %v411, 1
        %v1147 = vrot.slane %v407, 2
        %v1148 = vor.u32 %v1146, %v1147
        %v1149 = vsel %vm1137, %v1145, %v1148
        %v1150 = vrot.slane %v419, 1
        %v1151 = vrot.slane %v415, 2
        %v1152 = vor.u32 %v1150, %v1151
        %v1153 = vsel %vm1137, %v1148, %v1152
        %v1154 = vrot.slane %v427, 1
        %v1155 = vrot.slane %v423, 2
        %v1156 = vor.u32 %v1154, %v1155
        %v1157 = vsel %vm1137, %v1152, %v1156
        %v1158 = vrot.slane %v435, 1
        %v1159 = vrot.slane %v431, 2
        %v1160 = vor.u32 %v1158, %v1159
        %v1161 = vsel %vm1137, %v1156, %v1160
        %v1162 = vrot.slane %v443, 1
        %v1163 = vrot.slane %v439, 2
        %v1164 = vor.u32 %v1162, %v1163
        %v1165 = vsel %vm1137, %v1160, %v1164
        %v1166 = vrot.slane %v451, 1
        %v1167 = vrot.slane %v447, 2
        %v1168 = vor.u32 %v1166, %v1167
        %v1169 = vsel %vm1137, %v1164, %v1168
        %v1170 = vrot.slane %v459, 1
        %v1171 = vrot.slane %v455, 2
        %v1172 = vor.u32 %v1170, %v1171
        %v1173 = vsel %vm1137, %v1168, %v1172
        %v1174 = vrot.slane %v467, 1
        %v1175 = vrot.slane %v463, 2
        %v1176 = vor.u32 %v1174, %v1175
        %v1177 = vsel %vm1137, %v1172, %v1176
        %v1178 = vrot.slane %v475, 1
        %v1179 = vrot.slane %v471, 2
        %v1180 = vor.u32 %v1178, %v1179
        %v1181 = vsel %vm1137, %v1176, %v1180
        %v1182 = vrot.slane %v483, 1
        %v1183 = vrot.slane %v479, 2
        %v1184 = vor.u32 %v1182, %v1183
        %v1185 = vsel %vm1137, %v1180, %v1184
        %v1186 = vrot.slane %v491, 1
        %v1187 = vrot.slane %v487, 2
        %v1188 = vor.u32 %v1186, %v1187
        %v1189 = vsel %vm1137, %v1184, %v1188
        %v1190 = vrot.slane %v499, 1
        %v1191 = vrot.slane %v495, 2
        %v1192 = vor.u32 %v1190, %v1191
        %v1193 = vsel %vm1137, %v1188, %v1192
        %v1194 = vrot.slane %v507, 1
        %v1195 = vrot.slane %v503, 2
        %v1196 = vor.u32 %v1194, %v1195
        %v1197 = vsel %vm1137, %v1192, %v1196
        %v1198 = vrot.slane %v515, 1
        %v1199 = vrot.slane %v511, 2
        %v1200 = vor.u32 %v1198, %v1199
        %v1201 = vsel %vm1137, %v1196, %v1200
        %v1202 = vrot.slane %v523, 1
        %v1203 = vrot.slane %v519, 2
        %v1204 = vor.u32 %v1202, %v1203
        %v1205 = vsel %vm1137, %v1200, %v1204
        %v1206 = vrot.slane %v531, 1
        %v1207 = vrot.slane %v527, 2
        %v1208 = vor.u32 %v1206, %v1207
        %v1209 = vsel %vm1137, %v1204, %v1208
        %v1210 = vrot.slane %v539, 1
        %v1211 = vrot.slane %v535, 2
        %v1212 = vor.u32 %v1210, %v1211
        %v1213 = vsel %vm1137, %v1208, %v1212
        %v1214 = vrot.slane %v547, 1
        %v1215 = vrot.slane %v543, 2
        %v1216 = vor.u32 %v1214, %v1215
        %v1217 = vsel %vm1137, %v1212, %v1216
        %v1219 = vshrl.u32 %v1136, 16
        %v1221 = vrot.slane %v1219, 1
        %v1222 = vshll.u32 %v1136, 16
        %v1224 = vrot.slane %v1222, 2
        %v1225 = vor.u32 %v1221, %v1224
        %v1226 = vsel %vm1137, %v1216, %v1225
        %v1229 = vunpack.c.l.b16 %v1132
        %v1230 = vunpack.c.l.b16 %v1133
        %v1231 = vpack.c.b16 %v1230, %v1229
        %v1233 = vsel %vm560, %v1149, 0
        %v1236 = vsel %vm560, %v1153, 0
        %v1239 = vsel %vm560, %v1157, 0
        %v1242 = vsel %vm560, %v1161, 0
        %v1245 = vsel %vm560, %v1165, 0
        %v1248 = vsel %vm560, %v1169, 0
        %v1251 = vsel %vm560, %v1173, 0
        %v1254 = vsel %vm560, %v1177, 0
        %v1257 = vsel %vm560, %v1181, 0
        %v1260 = vsel %vm560, %v1185, 0
        %v1263 = vsel %vm560, %v1189, 0
        %v1266 = vsel %vm560, %v1193, 0
        %v1269 = vsel %vm560, %v1197, 0
        %v1272 = vsel %vm560, %v1201, 0
        %v1275 = vsel %vm560, %v1205, 0
        %v1278 = vsel %vm560, %v1209, 0
        %v1281 = vsel %vm560, %v1213, 0
        %v1284 = vsel %vm560, %v1217, 0
        %v1287 = vsel %vm560, %v1226, 0
        %v1290 = vsel %vm618, %v1231, 0
        %1292 = vmatpush.bf16.msra.mxu0 0
        %1293 = vmatpush.bf16.msra.mxu0 0
        %1294 = vmatpush.bf16.msra.mxu0 0
        %1295 = vmatpush.bf16.msra.mxu0 0
        %1296 = vmatpush.bf16.msra.mxu0 0
        %1297 = vmatpush.bf16.msra.mxu0 0
        %1298 = vmatpush.bf16.msra.mxu0 0
        %1299 = vmatpush.bf16.msra.mxu0 %v1290
        %1300 = vmatmul.bf16.gmra.mxu0 %v1233
        %v1301 = vpop.f32.mrf.mxu0
        %v1302 = vadd.f32 0.0, %v1301
        %v1303 = vpop.f32.mrf.mxu0
        %v1304 = vadd.f32 0.0, %v1303
        %1305 = vmatmul.bf16.gmra.mxu0 %v1236
        %v1306 = vpop.f32.mrf.mxu0
        %v1307 = vadd.f32 0.0, %v1306
        %v1308 = vpop.f32.mrf.mxu0
        %v1309 = vadd.f32 0.0, %v1308
        %1310 = vmatmul.bf16.gmra.mxu0 %v1239
        %v1311 = vpop.f32.mrf.mxu0
        %v1312 = vadd.f32 0.0, %v1311
        %v1313 = vpop.f32.mrf.mxu0
        %v1314 = vadd.f32 0.0, %v1313
        %1315 = vmatmul.bf16.gmra.mxu0 %v1242
        %v1316 = vpop.f32.mrf.mxu0
        %v1317 = vadd.f32 0.0, %v1316
        %v1318 = vpop.f32.mrf.mxu0
        %v1319 = vadd.f32 0.0, %v1318
        %1320 = vmatmul.bf16.gmra.mxu0 %v1245
        %v1321 = vpop.f32.mrf.mxu0
        %v1322 = vadd.f32 0.0, %v1321
        %v1323 = vpop.f32.mrf.mxu0
        %v1324 = vadd.f32 0.0, %v1323
        %1325 = vmatmul.bf16.gmra.mxu0 %v1248
        %v1326 = vpop.f32.mrf.mxu0
        %v1327 = vadd.f32 0.0, %v1326
        %v1328 = vpop.f32.mrf.mxu0
        %v1329 = vadd.f32 0.0, %v1328
        %1330 = vmatmul.bf16.gmra.mxu0 %v1251
        %v1331 = vpop.f32.mrf.mxu0
        %v1332 = vadd.f32 0.0, %v1331
        %v1333 = vpop.f32.mrf.mxu0
        %v1334 = vadd.f32 0.0, %v1333
        %1335 = vmatmul.bf16.gmra.mxu0 %v1254
        %v1336 = vpop.f32.mrf.mxu0
        %v1337 = vadd.f32 0.0, %v1336
        %v1338 = vpop.f32.mrf.mxu0
        %v1339 = vadd.f32 0.0, %v1338
        %1340 = vmatmul.bf16.gmra.mxu0 %v1257
        %v1341 = vpop.f32.mrf.mxu0
        %v1342 = vadd.f32 0.0, %v1341
        %v1343 = vpop.f32.mrf.mxu0
        %v1344 = vadd.f32 0.0, %v1343
        %1345 = vmatmul.bf16.gmra.mxu0 %v1260
        %v1346 = vpop.f32.mrf.mxu0
        %v1347 = vadd.f32 0.0, %v1346
        %v1348 = vpop.f32.mrf.mxu0
        %v1349 = vadd.f32 0.0, %v1348
        %1350 = vmatmul.bf16.gmra.mxu0 %v1263
        %v1351 = vpop.f32.mrf.mxu0
        %v1352 = vadd.f32 0.0, %v1351
        %v1353 = vpop.f32.mrf.mxu0
        %v1354 = vadd.f32 0.0, %v1353
        %1355 = vmatmul.bf16.gmra.mxu0 %v1266
        %v1356 = vpop.f32.mrf.mxu0
        %v1357 = vadd.f32 0.0, %v1356
        %v1358 = vpop.f32.mrf.mxu0
        %v1359 = vadd.f32 0.0, %v1358
        %1360 = vmatmul.bf16.gmra.mxu0 %v1269
        %v1361 = vpop.f32.mrf.mxu0
        %v1362 = vadd.f32 0.0, %v1361
        %v1363 = vpop.f32.mrf.mxu0
        %v1364 = vadd.f32 0.0, %v1363
        %1365 = vmatmul.bf16.gmra.mxu0 %v1272
        %v1366 = vpop.f32.mrf.mxu0
        %v1367 = vadd.f32 0.0, %v1366
        %v1368 = vpop.f32.mrf.mxu0
        %v1369 = vadd.f32 0.0, %v1368
        %1370 = vmatmul.bf16.gmra.mxu0 %v1275
        %v1371 = vpop.f32.mrf.mxu0
        %v1372 = vadd.f32 0.0, %v1371
        %v1373 = vpop.f32.mrf.mxu0
        %v1374 = vadd.f32 0.0, %v1373
        %1375 = vmatmul.bf16.gmra.mxu0 %v1278
        %v1376 = vpop.f32.mrf.mxu0
        %v1377 = vadd.f32 0.0, %v1376
        %v1378 = vpop.f32.mrf.mxu0
        %v1379 = vadd.f32 0.0, %v1378
        %1380 = vmatmul.bf16.gmra.mxu0 %v1281
        %v1381 = vpop.f32.mrf.mxu0
        %v1382 = vadd.f32 0.0, %v1381
        %v1383 = vpop.f32.mrf.mxu0
        %v1384 = vadd.f32 0.0, %v1383
        %1385 = vmatmul.bf16.gmra.mxu0 %v1284
        %v1386 = vpop.f32.mrf.mxu0
        %v1387 = vadd.f32 0.0, %v1386
        %v1388 = vpop.f32.mrf.mxu0
        %v1389 = vadd.f32 0.0, %v1388
        %1390 = vmatmul.bf16.gmra.mxu0 %v1287
        %v1391 = vpop.f32.mrf.mxu0
        %v1392 = vadd.f32 0.0, %v1391
        %v1393 = vpop.f32.mrf.mxu0
        %v1394 = vadd.f32 0.0, %v1393
        %1395 = vdwg.mxu0
        %v1396 = vadd.f32 %v1092, %v1302
        %v1397 = vadd.f32 %v1093, %v1304
        %v1398 = vadd.f32 %v1094, %v1307
        %v1399 = vadd.f32 %v1095, %v1309
        %v1400 = vadd.f32 %v1096, %v1312
        %v1401 = vadd.f32 %v1097, %v1314
        %v1402 = vadd.f32 %v1098, %v1317
        %v1403 = vadd.f32 %v1099, %v1319
        %v1404 = vadd.f32 %v1100, %v1322
        %v1405 = vadd.f32 %v1101, %v1324
        %v1406 = vadd.f32 %v1102, %v1327
        %v1407 = vadd.f32 %v1103, %v1329
        %v1408 = vadd.f32 %v1104, %v1332
        %v1409 = vadd.f32 %v1105, %v1334
        %v1410 = vadd.f32 %v1106, %v1337
        %v1411 = vadd.f32 %v1107, %v1339
        %v1412 = vadd.f32 %v1108, %v1342
        %v1413 = vadd.f32 %v1109, %v1344
        %v1414 = vadd.f32 %v1110, %v1347
        %v1415 = vadd.f32 %v1111, %v1349
        %v1416 = vadd.f32 %v1112, %v1352
        %v1417 = vadd.f32 %v1113, %v1354
        %v1418 = vadd.f32 %v1114, %v1357
        %v1419 = vadd.f32 %v1115, %v1359
        %v1420 = vadd.f32 %v1116, %v1362
        %v1421 = vadd.f32 %v1117, %v1364
        %v1422 = vadd.f32 %v1118, %v1367
        %v1423 = vadd.f32 %v1119, %v1369
        %v1424 = vadd.f32 %v1120, %v1372
        %v1425 = vadd.f32 %v1121, %v1374
        %v1426 = vadd.f32 %v1122, %v1377
        %v1427 = vadd.f32 %v1123, %v1379
        %v1428 = vadd.f32 %v1124, %v1382
        %v1429 = vadd.f32 %v1125, %v1384
        %v1430 = vadd.f32 %v1126, %v1387
        %v1431 = vadd.f32 %v1127, %v1389
        %v1432 = vadd.f32 %v1128, %v1392
        %v1433 = vadd.f32 %v1129, %v1394
        %v1434 = vld [vmem:[%s244 + $0x8] sm:$0xe]
        %v1435 = vld [vmem:[%s244 + $0xc] sm:$0xf]
        %v1436 = vld [vmem:[%s244 + $0x10] sm:$0xf]
        %v1437 = vld [vmem:[%s244 + $0x14] sm:$0xf]
        %v1438 = vld [vmem:[%s244 + $0x18] sm:$0xf]
        %v1439 = vld [vmem:[%s244 + $0x1c] sm:$0xf]
        %v1440 = vld [vmem:[%s244 + $0x20] sm:$0xf]
        %v1441 = vld [vmem:[%s244 + $0x24] sm:$0xf]
        %v1442 = vld [vmem:[%s244 + $0x28] sm:$0xf]
        %v1443 = vld [vmem:[%s244 + $0x2c] sm:$0xf]
        %v1444 = vld [vmem:[%s244 + $0x30] sm:$0xf]
        %v1445 = vld [vmem:[%s244 + $0x34] sm:$0xf]
        %v1446 = vld [vmem:[%s244 + $0x38] sm:$0xf]
        %v1447 = vld [vmem:[%s244 + $0x3c] sm:$0xf]
        %v1448 = vld [vmem:[%s244 + $0x40] sm:$0xf]
        %v1449 = vld [vmem:[%s244 + $0x44] sm:$0xf]
        %v1450 = vld [vmem:[%s244 + $0x48] sm:$0xf]
        %v1451 = vld [vmem:[%s244 + $0x4c] sm:$0xf]
        %v1452 = vld [vmem:[%s244 + $0x50] sm:$0xf]
        %v1453 = vld [vmem:[%s244 + $0x54] sm:$0xf]
        %v1454 = vld [vmem:[%s244 + $0x58] sm:$0xf]
        %v1455 = vld [vmem:[%s244 + $0x5c] sm:$0xf]
        %v1456 = vld [vmem:[%s244 + $0x60] sm:$0xf]
        %v1457 = vld [vmem:[%s244 + $0x64] sm:$0xf]
        %v1458 = vld [vmem:[%s244 + $0x68] sm:$0xf]
        %v1459 = vld [vmem:[%s244 + $0x6c] sm:$0xf]
        %v1460 = vld [vmem:[%s244 + $0x70] sm:$0xf]
        %v1461 = vld [vmem:[%s244 + $0x74] sm:$0xf]
        %v1462 = vld [vmem:[%s244 + $0x78] sm:$0xf]
        %v1463 = vld [vmem:[%s244 + $0x7c] sm:$0xf]
        %v1464 = vld [vmem:[%s244 + $0x80] sm:$0xf]
        %v1465 = vld [vmem:[%s244 + $0x84] sm:$0xf]
        %v1466 = vld [vmem:[%s244 + $0x88] sm:$0xf]
        %v1467 = vld [vmem:[%s244 + $0x8c] sm:$0xf]
        %v1468 = vld [vmem:[%s244 + $0x90] sm:$0xf]
        %v1469 = vld [vmem:[%s244 + $0x94] sm:$0xf]
        %v1470 = vld [vmem:[%s244 + $0x98] sm:$0xf]
        %v1471 = vld [vmem:[%s244 + $0x9c] sm:$0xf]
        %v1472 = vld [vmem:[%s244 + $0xa0] sm:$0x3]
        %s1473 = scalar_lea.vmem %s248, 32
        %v1474 = vld [vmem:[%s1473] sm:$0xf]
        %v1475 = vld [vmem:[%s1473 + $0x4] sm:$0x3]
        %v1515 = vunpack.c.l.b16 %v1434
        %v1516 = vunpack.c.l.b16 %v1435
        %v1517 = vunpack.c.l.b16 %v1436
        %v1518 = vunpack.c.l.b16 %v1437
        %v1519 = vunpack.c.l.b16 %v1438
        %v1520 = vunpack.c.l.b16 %v1439
        %v1521 = vunpack.c.l.b16 %v1440
        %v1522 = vunpack.c.l.b16 %v1441
        %v1523 = vunpack.c.l.b16 %v1442
        %v1524 = vunpack.c.l.b16 %v1443
        %v1525 = vunpack.c.l.b16 %v1444
        %v1526 = vunpack.c.l.b16 %v1445
        %v1527 = vunpack.c.l.b16 %v1446
        %v1528 = vunpack.c.l.b16 %v1447
        %v1529 = vunpack.c.l.b16 %v1448
        %v1530 = vunpack.c.l.b16 %v1449
        %v1531 = vunpack.c.l.b16 %v1450
        %v1532 = vunpack.c.l.b16 %v1451
        %v1533 = vunpack.c.l.b16 %v1452
        %v1534 = vunpack.c.l.b16 %v1453
        %v1535 = vunpack.c.l.b16 %v1454
        %v1536 = vunpack.c.l.b16 %v1455
        %v1537 = vunpack.c.l.b16 %v1456
        %v1538 = vunpack.c.l.b16 %v1457
        %v1539 = vunpack.c.l.b16 %v1458
        %v1540 = vunpack.c.l.b16 %v1459
        %v1541 = vunpack.c.l.b16 %v1460
        %v1542 = vunpack.c.l.b16 %v1461
        %v1543 = vunpack.c.l.b16 %v1462
        %v1544 = vunpack.c.l.b16 %v1463
        %v1545 = vunpack.c.l.b16 %v1464
        %v1546 = vunpack.c.l.b16 %v1465
        %v1547 = vunpack.c.l.b16 %v1466
        %v1548 = vunpack.c.l.b16 %v1467
        %v1549 = vunpack.c.l.b16 %v1468
        %v1550 = vunpack.c.l.b16 %v1469
        %v1551 = vunpack.c.l.b16 %v1470
        %v1552 = vunpack.c.l.b16 %v1471
        %v1553 = vunpack.c.l.b16 %v1472
        %v1554 = vpack.c.b16 %v1516, %v1515
        %v1555 = vpack.c.b16 %v1518, %v1517
        %v1556 = vpack.c.b16 %v1520, %v1519
        %v1557 = vpack.c.b16 %v1522, %v1521
        %v1558 = vpack.c.b16 %v1524, %v1523
        %v1559 = vpack.c.b16 %v1526, %v1525
        %v1560 = vpack.c.b16 %v1528, %v1527
        %v1561 = vpack.c.b16 %v1530, %v1529
        %v1562 = vpack.c.b16 %v1532, %v1531
        %v1563 = vpack.c.b16 %v1534, %v1533
        %v1564 = vpack.c.b16 %v1536, %v1535
        %v1565 = vpack.c.b16 %v1538, %v1537
        %v1566 = vpack.c.b16 %v1540, %v1539
        %v1567 = vpack.c.b16 %v1542, %v1541
        %v1568 = vpack.c.b16 %v1544, %v1543
        %v1569 = vpack.c.b16 %v1546, %v1545
        %v1570 = vpack.c.b16 %v1548, %v1547
        %v1571 = vpack.c.b16 %v1550, %v1549
        %v1572 = vpack.c.b16 %v1552, %v1551
        %v1573 = vpack.c.b16 %v1553, %v1553
        %v1575 = vshrl.u32 %v1554, 16
        %v1577 = vrot.slane %v1575, 1
        %v1578 = vshll.u32 %v1554, 16
        %v1580 = vrot.slane %v1578, 2
        %v1581 = vor.u32 %v1577, %v1580
        %v1583 = vshrl.u32 %v1555, 16
        %v1585 = vrot.slane %v1583, 1
        %v1586 = vshll.u32 %v1555, 16
        %v1588 = vrot.slane %v1586, 2
        %v1589 = vor.u32 %v1585, %v1588
        %v1590 = vsel %vm1137, %v1581, %v1589
        %v1592 = vshrl.u32 %v1556, 16
        %v1594 = vrot.slane %v1592, 1
        %v1595 = vshll.u32 %v1556, 16
        %v1597 = vrot.slane %v1595, 2
        %v1598 = vor.u32 %v1594, %v1597
        %v1599 = vsel %vm1137, %v1589, %v1598
        %v1601 = vshrl.u32 %v1557, 16
        %v1603 = vrot.slane %v1601, 1
        %v1604 = vshll.u32 %v1557, 16
        %v1606 = vrot.slane %v1604, 2
        %v1607 = vor.u32 %v1603, %v1606
        %v1608 = vsel %vm1137, %v1598, %v1607
        %v1610 = vshrl.u32 %v1558, 16
        %v1612 = vrot.slane %v1610, 1
        %v1613 = vshll.u32 %v1558, 16
        %v1615 = vrot.slane %v1613, 2
        %v1616 = vor.u32 %v1612, %v1615
        %v1617 = vsel %vm1137, %v1607, %v1616
        %v1619 = vshrl.u32 %v1559, 16
        %v1621 = vrot.slane %v1619, 1
        %v1622 = vshll.u32 %v1559, 16
        %v1624 = vrot.slane %v1622, 2
        %v1625 = vor.u32 %v1621, %v1624
        %v1626 = vsel %vm1137, %v1616, %v1625
        %v1628 = vshrl.u32 %v1560, 16
        %v1630 = vrot.slane %v1628, 1
        %v1631 = vshll.u32 %v1560, 16
        %v1633 = vrot.slane %v1631, 2
        %v1634 = vor.u32 %v1630, %v1633
        %v1635 = vsel %vm1137, %v1625, %v1634
        %v1637 = vshrl.u32 %v1561, 16
        %v1639 = vrot.slane %v1637, 1
        %v1640 = vshll.u32 %v1561, 16
        %v1642 = vrot.slane %v1640, 2
        %v1643 = vor.u32 %v1639, %v1642
        %v1644 = vsel %vm1137, %v1634, %v1643
        %v1646 = vshrl.u32 %v1562, 16
        %v1648 = vrot.slane %v1646, 1
        %v1649 = vshll.u32 %v1562, 16
        %v1651 = vrot.slane %v1649, 2
        %v1652 = vor.u32 %v1648, %v1651
        %v1653 = vsel %vm1137, %v1643, %v1652
        %v1655 = vshrl.u32 %v1563, 16
        %v1657 = vrot.slane %v1655, 1
        %v1658 = vshll.u32 %v1563, 16
        %v1660 = vrot.slane %v1658, 2
        %v1661 = vor.u32 %v1657, %v1660
        %v1662 = vsel %vm1137, %v1652, %v1661
        %v1664 = vshrl.u32 %v1564, 16
        %v1666 = vrot.slane %v1664, 1
        %v1667 = vshll.u32 %v1564, 16
        %v1669 = vrot.slane %v1667, 2
        %v1670 = vor.u32 %v1666, %v1669
        %v1671 = vsel %vm1137, %v1661, %v1670
        %v1673 = vshrl.u32 %v1565, 16
        %v1675 = vrot.slane %v1673, 1
        %v1676 = vshll.u32 %v1565, 16
        %v1678 = vrot.slane %v1676, 2
        %v1679 = vor.u32 %v1675, %v1678
        %v1680 = vsel %vm1137, %v1670, %v1679
        %v1682 = vshrl.u32 %v1566, 16
        %v1684 = vrot.slane %v1682, 1
        %v1685 = vshll.u32 %v1566, 16
        %v1687 = vrot.slane %v1685, 2
        %v1688 = vor.u32 %v1684, %v1687
        %v1689 = vsel %vm1137, %v1679, %v1688
        %v1691 = vshrl.u32 %v1567, 16
        %v1693 = vrot.slane %v1691, 1
        %v1694 = vshll.u32 %v1567, 16
        %v1696 = vrot.slane %v1694, 2
        %v1697 = vor.u32 %v1693, %v1696
        %v1698 = vsel %vm1137, %v1688, %v1697
        %v1700 = vshrl.u32 %v1568, 16
        %v1702 = vrot.slane %v1700, 1
        %v1703 = vshll.u32 %v1568, 16
        %v1705 = vrot.slane %v1703, 2
        %v1706 = vor.u32 %v1702, %v1705
        %v1707 = vsel %vm1137, %v1697, %v1706
        %v1709 = vshrl.u32 %v1569, 16
        %v1711 = vrot.slane %v1709, 1
        %v1712 = vshll.u32 %v1569, 16
        %v1714 = vrot.slane %v1712, 2
        %v1715 = vor.u32 %v1711, %v1714
        %v1716 = vsel %vm1137, %v1706, %v1715
        %v1718 = vshrl.u32 %v1570, 16
        %v1720 = vrot.slane %v1718, 1
        %v1721 = vshll.u32 %v1570, 16
        %v1723 = vrot.slane %v1721, 2
        %v1724 = vor.u32 %v1720, %v1723
        %v1725 = vsel %vm1137, %v1715, %v1724
        %v1727 = vshrl.u32 %v1571, 16
        %v1729 = vrot.slane %v1727, 1
        %v1730 = vshll.u32 %v1571, 16
        %v1732 = vrot.slane %v1730, 2
        %v1733 = vor.u32 %v1729, %v1732
        %v1734 = vsel %vm1137, %v1724, %v1733
        %v1736 = vshrl.u32 %v1572, 16
        %v1738 = vrot.slane %v1736, 1
        %v1739 = vshll.u32 %v1572, 16
        %v1741 = vrot.slane %v1739, 2
        %v1742 = vor.u32 %v1738, %v1741
        %v1743 = vsel %vm1137, %v1733, %v1742
        %v1745 = vshrl.u32 %v1573, 16
        %v1747 = vrot.slane %v1745, 1
        %v1748 = vshll.u32 %v1573, 16
        %v1750 = vrot.slane %v1748, 2
        %v1751 = vor.u32 %v1747, %v1750
        %v1752 = vsel %vm1137, %v1742, %v1751
        %v1755 = vunpack.c.l.b16 %v1474
        %v1756 = vunpack.c.l.b16 %v1475
        %v1757 = vpack.c.b16 %v1756, %v1755
        %v1759 = vsel %vm560, %v1590, 0
        %v1762 = vsel %vm560, %v1599, 0
        %v1765 = vsel %vm560, %v1608, 0
        %v1768 = vsel %vm560, %v1617, 0
        %v1771 = vsel %vm560, %v1626, 0
        %v1774 = vsel %vm560, %v1635, 0
        %v1777 = vsel %vm560, %v1644, 0
        %v1780 = vsel %vm560, %v1653, 0
        %v1783 = vsel %vm560, %v1662, 0
        %v1786 = vsel %vm560, %v1671, 0
        %v1789 = vsel %vm560, %v1680, 0
        %v1792 = vsel %vm560, %v1689, 0
        %v1795 = vsel %vm560, %v1698, 0
        %v1798 = vsel %vm560, %v1707, 0
        %v1801 = vsel %vm560, %v1716, 0
        %v1804 = vsel %vm560, %v1725, 0
        %v1807 = vsel %vm560, %v1734, 0
        %v1810 = vsel %vm560, %v1743, 0
        %v1813 = vsel %vm560, %v1752, 0
        %v1816 = vsel %vm618, %v1757, 0
        %1818 = vmatpush.bf16.msra.mxu0 0
        %1819 = vmatpush.bf16.msra.mxu0 0
        %1820 = vmatpush.bf16.msra.mxu0 0
        %1821 = vmatpush.bf16.msra.mxu0 0
        %1822 = vmatpush.bf16.msra.mxu0 0
        %1823 = vmatpush.bf16.msra.mxu0 0
        %1824 = vmatpush.bf16.msra.mxu0 0
        %1825 = vmatpush.bf16.msra.mxu0 %v1816
        %1826 = vmatmul.bf16.gmra.mxu0 %v1759
        %v1827 = vpop.f32.mrf.mxu0
        %v1828 = vadd.f32 0.0, %v1827
        %v1829 = vpop.f32.mrf.mxu0
        %v1830 = vadd.f32 0.0, %v1829
        %1831 = vmatmul.bf16.gmra.mxu0 %v1762
        %v1832 = vpop.f32.mrf.mxu0
        %v1833 = vadd.f32 0.0, %v1832
        %v1834 = vpop.f32.mrf.mxu0
        %v1835 = vadd.f32 0.0, %v1834
        %1836 = vmatmul.bf16.gmra.mxu0 %v1765
        %v1837 = vpop.f32.mrf.mxu0
        %v1838 = vadd.f32 0.0, %v1837
        %v1839 = vpop.f32.mrf.mxu0
        %v1840 = vadd.f32 0.0, %v1839
        %1841 = vmatmul.bf16.gmra.mxu0 %v1768
        %v1842 = vpop.f32.mrf.mxu0
        %v1843 = vadd.f32 0.0, %v1842
        %v1844 = vpop.f32.mrf.mxu0
        %v1845 = vadd.f32 0.0, %v1844
        %1846 = vmatmul.bf16.gmra.mxu0 %v1771
        %v1847 = vpop.f32.mrf.mxu0
        %v1848 = vadd.f32 0.0, %v1847
        %v1849 = vpop.f32.mrf.mxu0
        %v1850 = vadd.f32 0.0, %v1849
        %1851 = vmatmul.bf16.gmra.mxu0 %v1774
        %v1852 = vpop.f32.mrf.mxu0
        %v1853 = vadd.f32 0.0, %v1852
        %v1854 = vpop.f32.mrf.mxu0
        %v1855 = vadd.f32 0.0, %v1854
        %1856 = vmatmul.bf16.gmra.mxu0 %v1777
        %v1857 = vpop.f32.mrf.mxu0
        %v1858 = vadd.f32 0.0, %v1857
        %v1859 = vpop.f32.mrf.mxu0
        %v1860 = vadd.f32 0.0, %v1859
        %1861 = vmatmul.bf16.gmra.mxu0 %v1780
        %v1862 = vpop.f32.mrf.mxu0
        %v1863 = vadd.f32 0.0, %v1862
        %v1864 = vpop.f32.mrf.mxu0
        %v1865 = vadd.f32 0.0, %v1864
        %1866 = vmatmul.bf16.gmra.mxu0 %v1783
        %v1867 = vpop.f32.mrf.mxu0
        %v1868 = vadd.f32 0.0, %v1867
        %v1869 = vpop.f32.mrf.mxu0
        %v1870 = vadd.f32 0.0, %v1869
        %1871 = vmatmul.bf16.gmra.mxu0 %v1786
        %v1872 = vpop.f32.mrf.mxu0
        %v1873 = vadd.f32 0.0, %v1872
        %v1874 = vpop.f32.mrf.mxu0
        %v1875 = vadd.f32 0.0, %v1874
        %1876 = vmatmul.bf16.gmra.mxu0 %v1789
        %v1877 = vpop.f32.mrf.mxu0
        %v1878 = vadd.f32 0.0, %v1877
        %v1879 = vpop.f32.mrf.mxu0
        %v1880 = vadd.f32 0.0, %v1879
        %1881 = vmatmul.bf16.gmra.mxu0 %v1792
        %v1882 = vpop.f32.mrf.mxu0
        %v1883 = vadd.f32 0.0, %v1882
        %v1884 = vpop.f32.mrf.mxu0
        %v1885 = vadd.f32 0.0, %v1884
        %1886 = vmatmul.bf16.gmra.mxu0 %v1795
        %v1887 = vpop.f32.mrf.mxu0
        %v1888 = vadd.f32 0.0, %v1887
        %v1889 = vpop.f32.mrf.mxu0
        %v1890 = vadd.f32 0.0, %v1889
        %1891 = vmatmul.bf16.gmra.mxu0 %v1798
        %v1892 = vpop.f32.mrf.mxu0
        %v1893 = vadd.f32 0.0, %v1892
        %v1894 = vpop.f32.mrf.mxu0
        %v1895 = vadd.f32 0.0, %v1894
        %1896 = vmatmul.bf16.gmra.mxu0 %v1801
        %v1897 = vpop.f32.mrf.mxu0
        %v1898 = vadd.f32 0.0, %v1897
        %v1899 = vpop.f32.mrf.mxu0
        %v1900 = vadd.f32 0.0, %v1899
        %1901 = vmatmul.bf16.gmra.mxu0 %v1804
        %v1902 = vpop.f32.mrf.mxu0
        %v1903 = vadd.f32 0.0, %v1902
        %v1904 = vpop.f32.mrf.mxu0
        %v1905 = vadd.f32 0.0, %v1904
        %1906 = vmatmul.bf16.gmra.mxu0 %v1807
        %v1907 = vpop.f32.mrf.mxu0
        %v1908 = vadd.f32 0.0, %v1907
        %v1909 = vpop.f32.mrf.mxu0
        %v1910 = vadd.f32 0.0, %v1909
        %1911 = vmatmul.bf16.gmra.mxu0 %v1810
        %v1912 = vpop.f32.mrf.mxu0
        %v1913 = vadd.f32 0.0, %v1912
        %v1914 = vpop.f32.mrf.mxu0
        %v1915 = vadd.f32 0.0, %v1914
        %1916 = vmatmul.bf16.gmra.mxu0 %v1813
        %v1917 = vpop.f32.mrf.mxu0
        %v1918 = vadd.f32 0.0, %v1917
        %v1919 = vpop.f32.mrf.mxu0
        %v1920 = vadd.f32 0.0, %v1919
        %1921 = vdwg.mxu0
        %v1922 = vadd.f32 %v1396, %v1828
        %v1923 = vadd.f32 %v1397, %v1830
        %v1924 = vadd.f32 %v1398, %v1833
        %v1925 = vadd.f32 %v1399, %v1835
        %v1926 = vadd.f32 %v1400, %v1838
        %v1927 = vadd.f32 %v1401, %v1840
        %v1928 = vadd.f32 %v1402, %v1843
        %v1929 = vadd.f32 %v1403, %v1845
        %v1930 = vadd.f32 %v1404, %v1848
        %v1931 = vadd.f32 %v1405, %v1850
        %v1932 = vadd.f32 %v1406, %v1853
        %v1933 = vadd.f32 %v1407, %v1855
        %v1934 = vadd.f32 %v1408, %v1858
        %v1935 = vadd.f32 %v1409, %v1860
        %v1936 = vadd.f32 %v1410, %v1863
        %v1937 = vadd.f32 %v1411, %v1865
        %v1938 = vadd.f32 %v1412, %v1868
        %v1939 = vadd.f32 %v1413, %v1870
        %v1940 = vadd.f32 %v1414, %v1873
        %v1941 = vadd.f32 %v1415, %v1875
        %v1942 = vadd.f32 %v1416, %v1878
        %v1943 = vadd.f32 %v1417, %v1880
        %v1944 = vadd.f32 %v1418, %v1883
        %v1945 = vadd.f32 %v1419, %v1885
        %v1946 = vadd.f32 %v1420, %v1888
        %v1947 = vadd.f32 %v1421, %v1890
        %v1948 = vadd.f32 %v1422, %v1893
        %v1949 = vadd.f32 %v1423, %v1895
        %v1950 = vadd.f32 %v1424, %v1898
        %v1951 = vadd.f32 %v1425, %v1900
        %v1952 = vadd.f32 %v1426, %v1903
        %v1953 = vadd.f32 %v1427, %v1905
        %v1954 = vadd.f32 %v1428, %v1908
        %v1955 = vadd.f32 %v1429, %v1910
        %v1956 = vadd.f32 %v1430, %v1913
        %v1957 = vadd.f32 %v1431, %v1915
        %v1958 = vadd.f32 %v1432, %v1918
        %v1959 = vadd.f32 %v1433, %v1920
        %v1960 = vld [vmem:[%s244 + $0x8] sm:$0xc]
        %s1961 = scalar_lea.vmem %s248, 40
        %v1962 = vld [vmem:[%s1961] sm:$0xf]
        %v1963 = vld [vmem:[%s1961 + $0x4] sm:$0x3]
        %v1965 = vunpack.c.l.b16 %v1960
        %v1966 = vpack.c.b16 %v1516, %v1965
        %vm1967 = vcmask 1045504
        %v1968 = vrot.slane %v1966, 2
        %v1969 = vrot.slane %v1555, 2
        %v1970 = vsel %vm1967, %v1968, %v1969
        %v1971 = vrot.slane %v1556, 2
        %v1972 = vsel %vm1967, %v1969, %v1971
        %v1973 = vrot.slane %v1557, 2
        %v1974 = vsel %vm1967, %v1971, %v1973
        %v1975 = vrot.slane %v1558, 2
        %v1976 = vsel %vm1967, %v1973, %v1975
        %v1977 = vrot.slane %v1559, 2
        %v1978 = vsel %vm1967, %v1975, %v1977
        %v1979 = vrot.slane %v1560, 2
        %v1980 = vsel %vm1967, %v1977, %v1979
        %v1981 = vrot.slane %v1561, 2
        %v1982 = vsel %vm1967, %v1979, %v1981
        %v1983 = vrot.slane %v1562, 2
        %v1984 = vsel %vm1967, %v1981, %v1983
        %v1985 = vrot.slane %v1563, 2
        %v1986 = vsel %vm1967, %v1983, %v1985
        %v1987 = vrot.slane %v1564, 2
        %v1988 = vsel %vm1967, %v1985, %v1987
        %v1989 = vrot.slane %v1565, 2
        %v1990 = vsel %vm1967, %v1987, %v1989
        %v1991 = vrot.slane %v1566, 2
        %v1992 = vsel %vm1967, %v1989, %v1991
        %v1993 = vrot.slane %v1567, 2
        %v1994 = vsel %vm1967, %v1991, %v1993
        %v1995 = vrot.slane %v1568, 2
        %v1996 = vsel %vm1967, %v1993, %v1995
        %v1997 = vrot.slane %v1569, 2
        %v1998 = vsel %vm1967, %v1995, %v1997
        %v1999 = vrot.slane %v1570, 2
        %v2000 = vsel %vm1967, %v1997, %v1999
        %v2001 = vrot.slane %v1571, 2
        %v2002 = vsel %vm1967, %v1999, %v2001
        %v2003 = vrot.slane %v1572, 2
        %v2004 = vsel %vm1967, %v2001, %v2003
        %v2005 = vrot.slane %v1573, 2
        %v2006 = vsel %vm1967, %v2003, %v2005
        %v2009 = vunpack.c.l.b16 %v1962
        %v2010 = vunpack.c.l.b16 %v1963
        %v2011 = vpack.c.b16 %v2010, %v2009
        %v2013 = vsel %vm560, %v1970, 0
        %v2016 = vsel %vm560, %v1972, 0
        %v2019 = vsel %vm560, %v1974, 0
        %v2022 = vsel %vm560, %v1976, 0
        %v2025 = vsel %vm560, %v1978, 0
        %v2028 = vsel %vm560, %v1980, 0
        %v2031 = vsel %vm560, %v1982, 0
        %v2034 = vsel %vm560, %v1984, 0
        %v2037 = vsel %vm560, %v1986, 0
        %v2040 = vsel %vm560, %v1988, 0
        %v2043 = vsel %vm560, %v1990, 0
        %v2046 = vsel %vm560, %v1992, 0
        %v2049 = vsel %vm560, %v1994, 0
        %v2052 = vsel %vm560, %v1996, 0
        %v2055 = vsel %vm560, %v1998, 0
        %v2058 = vsel %vm560, %v2000, 0
        %v2061 = vsel %vm560, %v2002, 0
        %v2064 = vsel %vm560, %v2004, 0
        %v2067 = vsel %vm560, %v2006, 0
        %v2070 = vsel %vm618, %v2011, 0
        %2072 = vmatpush.bf16.msra.mxu0 0
        %2073 = vmatpush.bf16.msra.mxu0 0
        %2074 = vmatpush.bf16.msra.mxu0 0
        %2075 = vmatpush.bf16.msra.mxu0 0
        %2076 = vmatpush.bf16.msra.mxu0 0
        %2077 = vmatpush.bf16.msra.mxu0 0
        %2078 = vmatpush.bf16.msra.mxu0 0
        %2079 = vmatpush.bf16.msra.mxu0 %v2070
        %2080 = vmatmul.bf16.gmra.mxu0 %v2013
        %v2081 = vpop.f32.mrf.mxu0
        %v2082 = vadd.f32 0.0, %v2081
        %v2083 = vpop.f32.mrf.mxu0
        %v2084 = vadd.f32 0.0, %v2083
        %2085 = vmatmul.bf16.gmra.mxu0 %v2016
        %v2086 = vpop.f32.mrf.mxu0
        %v2087 = vadd.f32 0.0, %v2086
        %v2088 = vpop.f32.mrf.mxu0
        %v2089 = vadd.f32 0.0, %v2088
        %2090 = vmatmul.bf16.gmra.mxu0 %v2019
        %v2091 = vpop.f32.mrf.mxu0
        %v2092 = vadd.f32 0.0, %v2091
        %v2093 = vpop.f32.mrf.mxu0
        %v2094 = vadd.f32 0.0, %v2093
        %2095 = vmatmul.bf16.gmra.mxu0 %v2022
        %v2096 = vpop.f32.mrf.mxu0
        %v2097 = vadd.f32 0.0, %v2096
        %v2098 = vpop.f32.mrf.mxu0
        %v2099 = vadd.f32 0.0, %v2098
        %2100 = vmatmul.bf16.gmra.mxu0 %v2025
        %v2101 = vpop.f32.mrf.mxu0
        %v2102 = vadd.f32 0.0, %v2101
        %v2103 = vpop.f32.mrf.mxu0
        %v2104 = vadd.f32 0.0, %v2103
        %2105 = vmatmul.bf16.gmra.mxu0 %v2028
        %v2106 = vpop.f32.mrf.mxu0
        %v2107 = vadd.f32 0.0, %v2106
        %v2108 = vpop.f32.mrf.mxu0
        %v2109 = vadd.f32 0.0, %v2108
        %2110 = vmatmul.bf16.gmra.mxu0 %v2031
        %v2111 = vpop.f32.mrf.mxu0
        %v2112 = vadd.f32 0.0, %v2111
        %v2113 = vpop.f32.mrf.mxu0
        %v2114 = vadd.f32 0.0, %v2113
        %2115 = vmatmul.bf16.gmra.mxu0 %v2034
        %v2116 = vpop.f32.mrf.mxu0
        %v2117 = vadd.f32 0.0, %v2116
        %v2118 = vpop.f32.mrf.mxu0
        %v2119 = vadd.f32 0.0, %v2118
        %2120 = vmatmul.bf16.gmra.mxu0 %v2037
        %v2121 = vpop.f32.mrf.mxu0
        %v2122 = vadd.f32 0.0, %v2121
        %v2123 = vpop.f32.mrf.mxu0
        %v2124 = vadd.f32 0.0, %v2123
        %2125 = vmatmul.bf16.gmra.mxu0 %v2040
        %v2126 = vpop.f32.mrf.mxu0
        %v2127 = vadd.f32 0.0, %v2126
        %v2128 = vpop.f32.mrf.mxu0
        %v2129 = vadd.f32 0.0, %v2128
        %2130 = vmatmul.bf16.gmra.mxu0 %v2043
        %v2131 = vpop.f32.mrf.mxu0
        %v2132 = vadd.f32 0.0, %v2131
        %v2133 = vpop.f32.mrf.mxu0
        %v2134 = vadd.f32 0.0, %v2133
        %2135 = vmatmul.bf16.gmra.mxu0 %v2046
        %v2136 = vpop.f32.mrf.mxu0
        %v2137 = vadd.f32 0.0, %v2136
        %v2138 = vpop.f32.mrf.mxu0
        %v2139 = vadd.f32 0.0, %v2138
        %2140 = vmatmul.bf16.gmra.mxu0 %v2049
        %v2141 = vpop.f32.mrf.mxu0
        %v2142 = vadd.f32 0.0, %v2141
        %v2143 = vpop.f32.mrf.mxu0
        %v2144 = vadd.f32 0.0, %v2143
        %2145 = vmatmul.bf16.gmra.mxu0 %v2052
        %v2146 = vpop.f32.mrf.mxu0
        %v2147 = vadd.f32 0.0, %v2146
        %v2148 = vpop.f32.mrf.mxu0
        %v2149 = vadd.f32 0.0, %v2148
        %2150 = vmatmul.bf16.gmra.mxu0 %v2055
        %v2151 = vpop.f32.mrf.mxu0
        %v2152 = vadd.f32 0.0, %v2151
        %v2153 = vpop.f32.mrf.mxu0
        %v2154 = vadd.f32 0.0, %v2153
        %2155 = vmatmul.bf16.gmra.mxu0 %v2058
        %v2156 = vpop.f32.mrf.mxu0
        %v2157 = vadd.f32 0.0, %v2156
        %v2158 = vpop.f32.mrf.mxu0
        %v2159 = vadd.f32 0.0, %v2158
        %2160 = vmatmul.bf16.gmra.mxu0 %v2061
        %v2161 = vpop.f32.mrf.mxu0
        %v2162 = vadd.f32 0.0, %v2161
        %v2163 = vpop.f32.mrf.mxu0
        %v2164 = vadd.f32 0.0, %v2163
        %2165 = vmatmul.bf16.gmra.mxu0 %v2064
        %v2166 = vpop.f32.mrf.mxu0
        %v2167 = vadd.f32 0.0, %v2166
        %v2168 = vpop.f32.mrf.mxu0
        %v2169 = vadd.f32 0.0, %v2168
        %2170 = vmatmul.bf16.gmra.mxu0 %v2067
        %v2171 = vpop.f32.mrf.mxu0
        %v2172 = vadd.f32 0.0, %v2171
        %v2173 = vpop.f32.mrf.mxu0
        %v2174 = vadd.f32 0.0, %v2173
        %2175 = vdwg.mxu0
        %v2176 = vadd.f32 %v1922, %v2082
        %v2177 = vadd.f32 %v1923, %v2084
        %v2178 = vadd.f32 %v1924, %v2087
        %v2179 = vadd.f32 %v1925, %v2089
        %v2180 = vadd.f32 %v1926, %v2092
        %v2181 = vadd.f32 %v1927, %v2094
        %v2182 = vadd.f32 %v1928, %v2097
        %v2183 = vadd.f32 %v1929, %v2099
        %v2184 = vadd.f32 %v1930, %v2102
        %v2185 = vadd.f32 %v1931, %v2104
        %v2186 = vadd.f32 %v1932, %v2107
        %v2187 = vadd.f32 %v1933, %v2109
        %v2188 = vadd.f32 %v1934, %v2112
        %v2189 = vadd.f32 %v1935, %v2114
        %v2190 = vadd.f32 %v1936, %v2117
        %v2191 = vadd.f32 %v1937, %v2119
        %v2192 = vadd.f32 %v1938, %v2122
        %v2193 = vadd.f32 %v1939, %v2124
        %v2194 = vadd.f32 %v1940, %v2127
        %v2195 = vadd.f32 %v1941, %v2129
        %v2196 = vadd.f32 %v1942, %v2132
        %v2197 = vadd.f32 %v1943, %v2134
        %v2198 = vadd.f32 %v1944, %v2137
        %v2199 = vadd.f32 %v1945, %v2139
        %v2200 = vadd.f32 %v1946, %v2142
        %v2201 = vadd.f32 %v1947, %v2144
        %v2202 = vadd.f32 %v1948, %v2147
        %v2203 = vadd.f32 %v1949, %v2149
        %v2204 = vadd.f32 %v1950, %v2152
        %v2205 = vadd.f32 %v1951, %v2154
        %v2206 = vadd.f32 %v1952, %v2157
        %v2207 = vadd.f32 %v1953, %v2159
        %v2208 = vadd.f32 %v1954, %v2162
        %v2209 = vadd.f32 %v1955, %v2164
        %v2210 = vadd.f32 %v1956, %v2167
        %v2211 = vadd.f32 %v1957, %v2169
        %v2212 = vadd.f32 %v1958, %v2172
        %v2213 = vadd.f32 %v1959, %v2174
        %v2214 = vld [vmem:[%s244 + $0xa0] sm:$0x7]
        %s2215 = scalar_lea.vmem %s248, 48
        %v2216 = vld [vmem:[%s2215] sm:$0xf]
        %v2217 = vld [vmem:[%s2215 + $0x4] sm:$0x3]
        %v2219 = vunpack.c.l.b16 %v2214
        %v2220 = vpack.c.b16 %v2219, %v2219
        %vm2221 = vsmask.f32 5376
        %v2223 = vshrl.u32 %v1966, 16
        %v2225 = vrot.slane %v2223, 2
        %v2226 = vshll.u32 %v1966, 16
        %v2228 = vrot.slane %v2226, 3
        %v2229 = vor.u32 %v2225, %v2228
        %v2230 = vrot.slane %v1583, 2
        %v2231 = vrot.slane %v1586, 3
        %v2232 = vor.u32 %v2230, %v2231
        %v2233 = vsel %vm2221, %v2229, %v2232
        %v2234 = vrot.slane %v1592, 2
        %v2235 = vrot.slane %v1595, 3
        %v2236 = vor.u32 %v2234, %v2235
        %v2237 = vsel %vm2221, %v2232, %v2236
        %v2238 = vrot.slane %v1601, 2
        %v2239 = vrot.slane %v1604, 3
        %v2240 = vor.u32 %v2238, %v2239
        %v2241 = vsel %vm2221, %v2236, %v2240
        %v2242 = vrot.slane %v1610, 2
        %v2243 = vrot.slane %v1613, 3
        %v2244 = vor.u32 %v2242, %v2243
        %v2245 = vsel %vm2221, %v2240, %v2244
        %v2246 = vrot.slane %v1619, 2
        %v2247 = vrot.slane %v1622, 3
        %v2248 = vor.u32 %v2246, %v2247
        %v2249 = vsel %vm2221, %v2244, %v2248
        %v2250 = vrot.slane %v1628, 2
        %v2251 = vrot.slane %v1631, 3
        %v2252 = vor.u32 %v2250, %v2251
        %v2253 = vsel %vm2221, %v2248, %v2252
        %v2254 = vrot.slane %v1637, 2
        %v2255 = vrot.slane %v1640, 3
        %v2256 = vor.u32 %v2254, %v2255
        %v2257 = vsel %vm2221, %v2252, %v2256
        %v2258 = vrot.slane %v1646, 2
        %v2259 = vrot.slane %v1649, 3
        %v2260 = vor.u32 %v2258, %v2259
        %v2261 = vsel %vm2221, %v2256, %v2260
        %v2262 = vrot.slane %v1655, 2
        %v2263 = vrot.slane %v1658, 3
        %v2264 = vor.u32 %v2262, %v2263
        %v2265 = vsel %vm2221, %v2260, %v2264
        %v2266 = vrot.slane %v1664, 2
        %v2267 = vrot.slane %v1667, 3
        %v2268 = vor.u32 %v2266, %v2267
        %v2269 = vsel %vm2221, %v2264, %v2268
        %v2270 = vrot.slane %v1673, 2
        %v2271 = vrot.slane %v1676, 3
        %v2272 = vor.u32 %v2270, %v2271
        %v2273 = vsel %vm2221, %v2268, %v2272
        %v2274 = vrot.slane %v1682, 2
        %v2275 = vrot.slane %v1685, 3
        %v2276 = vor.u32 %v2274, %v2275
        %v2277 = vsel %vm2221, %v2272, %v2276
        %v2278 = vrot.slane %v1691, 2
        %v2279 = vrot.slane %v1694, 3
        %v2280 = vor.u32 %v2278, %v2279
        %v2281 = vsel %vm2221, %v2276, %v2280
        %v2282 = vrot.slane %v1700, 2
        %v2283 = vrot.slane %v1703, 3
        %v2284 = vor.u32 %v2282, %v2283
        %v2285 = vsel %vm2221, %v2280, %v2284
        %v2286 = vrot.slane %v1709, 2
        %v2287 = vrot.slane %v1712, 3
        %v2288 = vor.u32 %v2286, %v2287
        %v2289 = vsel %vm2221, %v2284, %v2288
        %v2290 = vrot.slane %v1718, 2
        %v2291 = vrot.slane %v1721, 3
        %v2292 = vor.u32 %v2290, %v2291
        %v2293 = vsel %vm2221, %v2288, %v2292
        %v2294 = vrot.slane %v1727, 2
        %v2295 = vrot.slane %v1730, 3
        %v2296 = vor.u32 %v2294, %v2295
        %v2297 = vsel %vm2221, %v2292, %v2296
        %v2298 = vrot.slane %v1736, 2
        %v2299 = vrot.slane %v1739, 3
        %v2300 = vor.u32 %v2298, %v2299
        %v2301 = vsel %vm2221, %v2296, %v2300
        %v2303 = vshrl.u32 %v2220, 16
        %v2305 = vrot.slane %v2303, 2
        %v2306 = vshll.u32 %v2220, 16
        %v2308 = vrot.slane %v2306, 3
        %v2309 = vor.u32 %v2305, %v2308
        %v2310 = vsel %vm2221, %v2300, %v2309
        %v2313 = vunpack.c.l.b16 %v2216
        %v2314 = vunpack.c.l.b16 %v2217
        %v2315 = vpack.c.b16 %v2314, %v2313
        %v2317 = vsel %vm560, %v2233, 0
        %v2320 = vsel %vm560, %v2237, 0
        %v2323 = vsel %vm560, %v2241, 0
        %v2326 = vsel %vm560, %v2245, 0
        %v2329 = vsel %vm560, %v2249, 0
        %v2332 = vsel %vm560, %v2253, 0
        %v2335 = vsel %vm560, %v2257, 0
        %v2338 = vsel %vm560, %v2261, 0
        %v2341 = vsel %vm560, %v2265, 0
        %v2344 = vsel %vm560, %v2269, 0
        %v2347 = vsel %vm560, %v2273, 0
        %v2350 = vsel %vm560, %v2277, 0
        %v2353 = vsel %vm560, %v2281, 0
        %v2356 = vsel %vm560, %v2285, 0
        %v2359 = vsel %vm560, %v2289, 0
        %v2362 = vsel %vm560, %v2293, 0
        %v2365 = vsel %vm560, %v2297, 0
        %v2368 = vsel %vm560, %v2301, 0
        %v2371 = vsel %vm560, %v2310, 0
        %v2374 = vsel %vm618, %v2315, 0
        %2376 = vmatpush.bf16.msra.mxu0 0
        %2377 = vmatpush.bf16.msra.mxu0 0
        %2378 = vmatpush.bf16.msra.mxu0 0
        %2379 = vmatpush.bf16.msra.mxu0 0
        %2380 = vmatpush.bf16.msra.mxu0 0
        %2381 = vmatpush.bf16.msra.mxu0 0
        %2382 = vmatpush.bf16.msra.mxu0 0
        %2383 = vmatpush.bf16.msra.mxu0 %v2374
        %2384 = vmatmul.bf16.gmra.mxu0 %v2317
        %v2385 = vpop.f32.mrf.mxu0
        %v2386 = vadd.f32 0.0, %v2385
        %v2387 = vpop.f32.mrf.mxu0
        %v2388 = vadd.f32 0.0, %v2387
        %2389 = vmatmul.bf16.gmra.mxu0 %v2320
        %v2390 = vpop.f32.mrf.mxu0
        %v2391 = vadd.f32 0.0, %v2390
        %v2392 = vpop.f32.mrf.mxu0
        %v2393 = vadd.f32 0.0, %v2392
        %2394 = vmatmul.bf16.gmra.mxu0 %v2323
        %v2395 = vpop.f32.mrf.mxu0
        %v2396 = vadd.f32 0.0, %v2395
        %v2397 = vpop.f32.mrf.mxu0
        %v2398 = vadd.f32 0.0, %v2397
        %2399 = vmatmul.bf16.gmra.mxu0 %v2326
        %v2400 = vpop.f32.mrf.mxu0
        %v2401 = vadd.f32 0.0, %v2400
        %v2402 = vpop.f32.mrf.mxu0
        %v2403 = vadd.f32 0.0, %v2402
        %2404 = vmatmul.bf16.gmra.mxu0 %v2329
        %v2405 = vpop.f32.mrf.mxu0
        %v2406 = vadd.f32 0.0, %v2405
        %v2407 = vpop.f32.mrf.mxu0
        %v2408 = vadd.f32 0.0, %v2407
        %2409 = vmatmul.bf16.gmra.mxu0 %v2332
        %v2410 = vpop.f32.mrf.mxu0
        %v2411 = vadd.f32 0.0, %v2410
        %v2412 = vpop.f32.mrf.mxu0
        %v2413 = vadd.f32 0.0, %v2412
        %2414 = vmatmul.bf16.gmra.mxu0 %v2335
        %v2415 = vpop.f32.mrf.mxu0
        %v2416 = vadd.f32 0.0, %v2415
        %v2417 = vpop.f32.mrf.mxu0
        %v2418 = vadd.f32 0.0, %v2417
        %2419 = vmatmul.bf16.gmra.mxu0 %v2338
        %v2420 = vpop.f32.mrf.mxu0
        %v2421 = vadd.f32 0.0, %v2420
        %v2422 = vpop.f32.mrf.mxu0
        %v2423 = vadd.f32 0.0, %v2422
        %2424 = vmatmul.bf16.gmra.mxu0 %v2341
        %v2425 = vpop.f32.mrf.mxu0
        %v2426 = vadd.f32 0.0, %v2425
        %v2427 = vpop.f32.mrf.mxu0
        %v2428 = vadd.f32 0.0, %v2427
        %2429 = vmatmul.bf16.gmra.mxu0 %v2344
        %v2430 = vpop.f32.mrf.mxu0
        %v2431 = vadd.f32 0.0, %v2430
        %v2432 = vpop.f32.mrf.mxu0
        %v2433 = vadd.f32 0.0, %v2432
        %2434 = vmatmul.bf16.gmra.mxu0 %v2347
        %v2435 = vpop.f32.mrf.mxu0
        %v2436 = vadd.f32 0.0, %v2435
        %v2437 = vpop.f32.mrf.mxu0
        %v2438 = vadd.f32 0.0, %v2437
        %2439 = vmatmul.bf16.gmra.mxu0 %v2350
        %v2440 = vpop.f32.mrf.mxu0
        %v2441 = vadd.f32 0.0, %v2440
        %v2442 = vpop.f32.mrf.mxu0
        %v2443 = vadd.f32 0.0, %v2442
        %2444 = vmatmul.bf16.gmra.mxu0 %v2353
        %v2445 = vpop.f32.mrf.mxu0
        %v2446 = vadd.f32 0.0, %v2445
        %v2447 = vpop.f32.mrf.mxu0
        %v2448 = vadd.f32 0.0, %v2447
        %2449 = vmatmul.bf16.gmra.mxu0 %v2356
        %v2450 = vpop.f32.mrf.mxu0
        %v2451 = vadd.f32 0.0, %v2450
        %v2452 = vpop.f32.mrf.mxu0
        %v2453 = vadd.f32 0.0, %v2452
        %2454 = vmatmul.bf16.gmra.mxu0 %v2359
        %v2455 = vpop.f32.mrf.mxu0
        %v2456 = vadd.f32 0.0, %v2455
        %v2457 = vpop.f32.mrf.mxu0
        %v2458 = vadd.f32 0.0, %v2457
        %2459 = vmatmul.bf16.gmra.mxu0 %v2362
        %v2460 = vpop.f32.mrf.mxu0
        %v2461 = vadd.f32 0.0, %v2460
        %v2462 = vpop.f32.mrf.mxu0
        %v2463 = vadd.f32 0.0, %v2462
        %2464 = vmatmul.bf16.gmra.mxu0 %v2365
        %v2465 = vpop.f32.mrf.mxu0
        %v2466 = vadd.f32 0.0, %v2465
        %v2467 = vpop.f32.mrf.mxu0
        %v2468 = vadd.f32 0.0, %v2467
        %2469 = vmatmul.bf16.gmra.mxu0 %v2368
        %v2470 = vpop.f32.mrf.mxu0
        %v2471 = vadd.f32 0.0, %v2470
        %v2472 = vpop.f32.mrf.mxu0
        %v2473 = vadd.f32 0.0, %v2472
        %2474 = vmatmul.bf16.gmra.mxu0 %v2371
        %v2475 = vpop.f32.mrf.mxu0
        %v2476 = vadd.f32 0.0, %v2475
        %v2477 = vpop.f32.mrf.mxu0
        %v2478 = vadd.f32 0.0, %v2477
        %2479 = vdwg.mxu0
        %v2480 = vadd.f32 %v2176, %v2386
        %v2481 = vadd.f32 %v2177, %v2388
        %v2482 = vadd.f32 %v2178, %v2391
        %v2483 = vadd.f32 %v2179, %v2393
        %v2484 = vadd.f32 %v2180, %v2396
        %v2485 = vadd.f32 %v2181, %v2398
        %v2486 = vadd.f32 %v2182, %v2401
        %v2487 = vadd.f32 %v2183, %v2403
        %v2488 = vadd.f32 %v2184, %v2406
        %v2489 = vadd.f32 %v2185, %v2408
        %v2490 = vadd.f32 %v2186, %v2411
        %v2491 = vadd.f32 %v2187, %v2413
        %v2492 = vadd.f32 %v2188, %v2416
        %v2493 = vadd.f32 %v2189, %v2418
        %v2494 = vadd.f32 %v2190, %v2421
        %v2495 = vadd.f32 %v2191, %v2423
        %v2496 = vadd.f32 %v2192, %v2426
        %v2497 = vadd.f32 %v2193, %v2428
        %v2498 = vadd.f32 %v2194, %v2431
        %v2499 = vadd.f32 %v2195, %v2433
        %v2500 = vadd.f32 %v2196, %v2436
        %v2501 = vadd.f32 %v2197, %v2438
        %v2502 = vadd.f32 %v2198, %v2441
        %v2503 = vadd.f32 %v2199, %v2443
        %v2504 = vadd.f32 %v2200, %v2446
        %v2505 = vadd.f32 %v2201, %v2448
        %v2506 = vadd.f32 %v2202, %v2451
        %v2507 = vadd.f32 %v2203, %v2453
        %v2508 = vadd.f32 %v2204, %v2456
        %v2509 = vadd.f32 %v2205, %v2458
        %v2510 = vadd.f32 %v2206, %v2461
        %v2511 = vadd.f32 %v2207, %v2463
        %v2512 = vadd.f32 %v2208, %v2466
        %v2513 = vadd.f32 %v2209, %v2468
        %v2514 = vadd.f32 %v2210, %v2471
        %v2515 = vadd.f32 %v2211, %v2473
        %v2516 = vadd.f32 %v2212, %v2476
        %v2517 = vadd.f32 %v2213, %v2478
        %v2518 = vld [vmem:[%s244 + $0x8] sm:$0x8]
        %s2519 = scalar_lea.vmem %s248, 56
        %v2520 = vld [vmem:[%s2519] sm:$0xf]
        %v2521 = vld [vmem:[%s2519 + $0x4] sm:$0x3]
        %v2523 = vunpack.c.l.b16 %v2518
        %v2524 = vpack.c.b16 %v1516, %v2523
        %vm2525 = vcmask 1044480
        %v2526 = vrot.slane %v2524, 3
        %v2527 = vrot.slane %v1555, 3
        %v2528 = vsel %vm2525, %v2526, %v2527
        %v2529 = vrot.slane %v1556, 3
        %v2530 = vsel %vm2525, %v2527, %v2529
        %v2531 = vrot.slane %v1557, 3
        %v2532 = vsel %vm2525, %v2529, %v2531
        %v2533 = vrot.slane %v1558, 3
        %v2534 = vsel %vm2525, %v2531, %v2533
        %v2535 = vrot.slane %v1559, 3
        %v2536 = vsel %vm2525, %v2533, %v2535
        %v2537 = vrot.slane %v1560, 3
        %v2538 = vsel %vm2525, %v2535, %v2537
        %v2539 = vrot.slane %v1561, 3
        %v2540 = vsel %vm2525, %v2537, %v2539
        %v2541 = vrot.slane %v1562, 3
        %v2542 = vsel %vm2525, %v2539, %v2541
        %v2543 = vrot.slane %v1563, 3
        %v2544 = vsel %vm2525, %v2541, %v2543
        %v2545 = vrot.slane %v1564, 3
        %v2546 = vsel %vm2525, %v2543, %v2545
        %v2547 = vrot.slane %v1565, 3
        %v2548 = vsel %vm2525, %v2545, %v2547
        %v2549 = vrot.slane %v1566, 3
        %v2550 = vsel %vm2525, %v2547, %v2549
        %v2551 = vrot.slane %v1567, 3
        %v2552 = vsel %vm2525, %v2549, %v2551
        %v2553 = vrot.slane %v1568, 3
        %v2554 = vsel %vm2525, %v2551, %v2553
        %v2555 = vrot.slane %v1569, 3
        %v2556 = vsel %vm2525, %v2553, %v2555
        %v2557 = vrot.slane %v1570, 3
        %v2558 = vsel %vm2525, %v2555, %v2557
        %v2559 = vrot.slane %v1571, 3
        %v2560 = vsel %vm2525, %v2557, %v2559
        %v2561 = vrot.slane %v1572, 3
        %v2562 = vsel %vm2525, %v2559, %v2561
        %v2563 = vrot.slane %v2220, 3
        %v2564 = vsel %vm2525, %v2561, %v2563
        %v2567 = vunpack.c.l.b16 %v2520
        %v2568 = vunpack.c.l.b16 %v2521
        %v2569 = vpack.c.b16 %v2568, %v2567
        %v2571 = vsel %vm560, %v2528, 0
        %v2574 = vsel %vm560, %v2530, 0
        %v2577 = vsel %vm560, %v2532, 0
        %v2580 = vsel %vm560, %v2534, 0
        %v2583 = vsel %vm560, %v2536, 0
        %v2586 = vsel %vm560, %v2538, 0
        %v2589 = vsel %vm560, %v2540, 0
        %v2592 = vsel %vm560, %v2542, 0
        %v2595 = vsel %vm560, %v2544, 0
        %v2598 = vsel %vm560, %v2546, 0
        %v2601 = vsel %vm560, %v2548, 0
        %v2604 = vsel %vm560, %v2550, 0
        %v2607 = vsel %vm560, %v2552, 0
        %v2610 = vsel %vm560, %v2554, 0
        %v2613 = vsel %vm560, %v2556, 0
        %v2616 = vsel %vm560, %v2558, 0
        %v2619 = vsel %vm560, %v2560, 0
        %v2622 = vsel %vm560, %v2562, 0
        %v2625 = vsel %vm560, %v2564, 0
        %v2628 = vsel %vm618, %v2569, 0
        %2630 = vmatpush.bf16.msra.mxu0 0
        %2631 = vmatpush.bf16.msra.mxu0 0
        %2632 = vmatpush.bf16.msra.mxu0 0
        %2633 = vmatpush.bf16.msra.mxu0 0
        %2634 = vmatpush.bf16.msra.mxu0 0
        %2635 = vmatpush.bf16.msra.mxu0 0
        %2636 = vmatpush.bf16.msra.mxu0 0
        %2637 = vmatpush.bf16.msra.mxu0 %v2628
        %2638 = vmatmul.bf16.gmra.mxu0 %v2571
        %v2639 = vpop.f32.mrf.mxu0
        %v2640 = vadd.f32 0.0, %v2639
        %v2641 = vpop.f32.mrf.mxu0
        %v2642 = vadd.f32 0.0, %v2641
        %2643 = vmatmul.bf16.gmra.mxu0 %v2574
        %v2644 = vpop.f32.mrf.mxu0
        %v2645 = vadd.f32 0.0, %v2644
        %v2646 = vpop.f32.mrf.mxu0
        %v2647 = vadd.f32 0.0, %v2646
        %2648 = vmatmul.bf16.gmra.mxu0 %v2577
        %v2649 = vpop.f32.mrf.mxu0
        %v2650 = vadd.f32 0.0, %v2649
        %v2651 = vpop.f32.mrf.mxu0
        %v2652 = vadd.f32 0.0, %v2651
        %2653 = vmatmul.bf16.gmra.mxu0 %v2580
        %v2654 = vpop.f32.mrf.mxu0
        %v2655 = vadd.f32 0.0, %v2654
        %v2656 = vpop.f32.mrf.mxu0
        %v2657 = vadd.f32 0.0, %v2656
        %2658 = vmatmul.bf16.gmra.mxu0 %v2583
        %v2659 = vpop.f32.mrf.mxu0
        %v2660 = vadd.f32 0.0, %v2659
        %v2661 = vpop.f32.mrf.mxu0
        %v2662 = vadd.f32 0.0, %v2661
        %2663 = vmatmul.bf16.gmra.mxu0 %v2586
        %v2664 = vpop.f32.mrf.mxu0
        %v2665 = vadd.f32 0.0, %v2664
        %v2666 = vpop.f32.mrf.mxu0
        %v2667 = vadd.f32 0.0, %v2666
        %2668 = vmatmul.bf16.gmra.mxu0 %v2589
        %v2669 = vpop.f32.mrf.mxu0
        %v2670 = vadd.f32 0.0, %v2669
        %v2671 = vpop.f32.mrf.mxu0
        %v2672 = vadd.f32 0.0, %v2671
        %2673 = vmatmul.bf16.gmra.mxu0 %v2592
        %v2674 = vpop.f32.mrf.mxu0
        %v2675 = vadd.f32 0.0, %v2674
        %v2676 = vpop.f32.mrf.mxu0
        %v2677 = vadd.f32 0.0, %v2676
        %2678 = vmatmul.bf16.gmra.mxu0 %v2595
        %v2679 = vpop.f32.mrf.mxu0
        %v2680 = vadd.f32 0.0, %v2679
        %v2681 = vpop.f32.mrf.mxu0
        %v2682 = vadd.f32 0.0, %v2681
        %2683 = vmatmul.bf16.gmra.mxu0 %v2598
        %v2684 = vpop.f32.mrf.mxu0
        %v2685 = vadd.f32 0.0, %v2684
        %v2686 = vpop.f32.mrf.mxu0
        %v2687 = vadd.f32 0.0, %v2686
        %2688 = vmatmul.bf16.gmra.mxu0 %v2601
        %v2689 = vpop.f32.mrf.mxu0
        %v2690 = vadd.f32 0.0, %v2689
        %v2691 = vpop.f32.mrf.mxu0
        %v2692 = vadd.f32 0.0, %v2691
        %2693 = vmatmul.bf16.gmra.mxu0 %v2604
        %v2694 = vpop.f32.mrf.mxu0
        %v2695 = vadd.f32 0.0, %v2694
        %v2696 = vpop.f32.mrf.mxu0
        %v2697 = vadd.f32 0.0, %v2696
        %2698 = vmatmul.bf16.gmra.mxu0 %v2607
        %v2699 = vpop.f32.mrf.mxu0
        %v2700 = vadd.f32 0.0, %v2699
        %v2701 = vpop.f32.mrf.mxu0
        %v2702 = vadd.f32 0.0, %v2701
        %2703 = vmatmul.bf16.gmra.mxu0 %v2610
        %v2704 = vpop.f32.mrf.mxu0
        %v2705 = vadd.f32 0.0, %v2704
        %v2706 = vpop.f32.mrf.mxu0
        %v2707 = vadd.f32 0.0, %v2706
        %2708 = vmatmul.bf16.gmra.mxu0 %v2613
        %v2709 = vpop.f32.mrf.mxu0
        %v2710 = vadd.f32 0.0, %v2709
        %v2711 = vpop.f32.mrf.mxu0
        %v2712 = vadd.f32 0.0, %v2711
        %2713 = vmatmul.bf16.gmra.mxu0 %v2616
        %v2714 = vpop.f32.mrf.mxu0
        %v2715 = vadd.f32 0.0, %v2714
        %v2716 = vpop.f32.mrf.mxu0
        %v2717 = vadd.f32 0.0, %v2716
        %2718 = vmatmul.bf16.gmra.mxu0 %v2619
        %v2719 = vpop.f32.mrf.mxu0
        %v2720 = vadd.f32 0.0, %v2719
        %v2721 = vpop.f32.mrf.mxu0
        %v2722 = vadd.f32 0.0, %v2721
        %2723 = vmatmul.bf16.gmra.mxu0 %v2622
        %v2724 = vpop.f32.mrf.mxu0
        %v2725 = vadd.f32 0.0, %v2724
        %v2726 = vpop.f32.mrf.mxu0
        %v2727 = vadd.f32 0.0, %v2726
        %2728 = vmatmul.bf16.gmra.mxu0 %v2625
        %v2729 = vpop.f32.mrf.mxu0
        %v2730 = vadd.f32 0.0, %v2729
        %v2731 = vpop.f32.mrf.mxu0
        %v2732 = vadd.f32 0.0, %v2731
        %2733 = vdwg.mxu0
        %v2734 = vadd.f32 %v2480, %v2640
        %v2735 = vadd.f32 %v2481, %v2642
        %v2736 = vadd.f32 %v2482, %v2645
        %v2737 = vadd.f32 %v2483, %v2647
        %v2738 = vadd.f32 %v2484, %v2650
        %v2739 = vadd.f32 %v2485, %v2652
        %v2740 = vadd.f32 %v2486, %v2655
        %v2741 = vadd.f32 %v2487, %v2657
        %v2742 = vadd.f32 %v2488, %v2660
        %v2743 = vadd.f32 %v2489, %v2662
        %v2744 = vadd.f32 %v2490, %v2665
        %v2745 = vadd.f32 %v2491, %v2667
        %v2746 = vadd.f32 %v2492, %v2670
        %v2747 = vadd.f32 %v2493, %v2672
        %v2748 = vadd.f32 %v2494, %v2675
        %v2749 = vadd.f32 %v2495, %v2677
        %v2750 = vadd.f32 %v2496, %v2680
        %v2751 = vadd.f32 %v2497, %v2682
        %v2752 = vadd.f32 %v2498, %v2685
        %v2753 = vadd.f32 %v2499, %v2687
        %v2754 = vadd.f32 %v2500, %v2690
        %v2755 = vadd.f32 %v2501, %v2692
        %v2756 = vadd.f32 %v2502, %v2695
        %v2757 = vadd.f32 %v2503, %v2697
        %v2758 = vadd.f32 %v2504, %v2700
        %v2759 = vadd.f32 %v2505, %v2702
        %v2760 = vadd.f32 %v2506, %v2705
        %v2761 = vadd.f32 %v2507, %v2707
        %v2762 = vadd.f32 %v2508, %v2710
        %v2763 = vadd.f32 %v2509, %v2712
        %v2764 = vadd.f32 %v2510, %v2715
        %v2765 = vadd.f32 %v2511, %v2717
        %v2766 = vadd.f32 %v2512, %v2720
        %v2767 = vadd.f32 %v2513, %v2722
        %v2768 = vadd.f32 %v2514, %v2725
        %v2769 = vadd.f32 %v2515, %v2727
        %v2770 = vadd.f32 %v2516, %v2730
        %v2771 = vadd.f32 %v2517, %v2732
        %v2772 = vld [vmem:[%s244 + $0x10] sm:$0x8]
        %v2773 = vld [vmem:[%s244 + $0x14] sm:$0xf]
        %v2774 = vld [vmem:[%s244 + $0x18] sm:$0xf]
        %v2775 = vld [vmem:[%s244 + $0x1c] sm:$0xf]
        %v2776 = vld [vmem:[%s244 + $0x20] sm:$0xf]
        %v2777 = vld [vmem:[%s244 + $0x24] sm:$0xf]
        %v2778 = vld [vmem:[%s244 + $0x28] sm:$0xf]
        %v2779 = vld [vmem:[%s244 + $0x2c] sm:$0xf]
        %v2780 = vld [vmem:[%s244 + $0x30] sm:$0xf]
        %v2781 = vld [vmem:[%s244 + $0x34] sm:$0xf]
        %v2782 = vld [vmem:[%s244 + $0x38] sm:$0xf]
        %v2783 = vld [vmem:[%s244 + $0x3c] sm:$0xf]
        %v2784 = vld [vmem:[%s244 + $0x40] sm:$0xf]
        %v2785 = vld [vmem:[%s244 + $0x44] sm:$0xf]
        %v2786 = vld [vmem:[%s244 + $0x48] sm:$0xf]
        %v2787 = vld [vmem:[%s244 + $0x4c] sm:$0xf]
        %v2788 = vld [vmem:[%s244 + $0x50] sm:$0xf]
        %v2789 = vld [vmem:[%s244 + $0x54] sm:$0xf]
        %v2790 = vld [vmem:[%s244 + $0x58] sm:$0xf]
        %v2791 = vld [vmem:[%s244 + $0x5c] sm:$0xf]
        %v2792 = vld [vmem:[%s244 + $0x60] sm:$0xf]
        %v2793 = vld [vmem:[%s244 + $0x64] sm:$0xf]
        %v2794 = vld [vmem:[%s244 + $0x68] sm:$0xf]
        %v2795 = vld [vmem:[%s244 + $0x6c] sm:$0xf]
        %v2796 = vld [vmem:[%s244 + $0x70] sm:$0xf]
        %v2797 = vld [vmem:[%s244 + $0x74] sm:$0xf]
        %v2798 = vld [vmem:[%s244 + $0x78] sm:$0xf]
        %v2799 = vld [vmem:[%s244 + $0x7c] sm:$0xf]
        %v2800 = vld [vmem:[%s244 + $0x80] sm:$0xf]
        %v2801 = vld [vmem:[%s244 + $0x84] sm:$0xf]
        %v2802 = vld [vmem:[%s244 + $0x88] sm:$0xf]
        %v2803 = vld [vmem:[%s244 + $0x8c] sm:$0xf]
        %v2804 = vld [vmem:[%s244 + $0x90] sm:$0xf]
        %v2805 = vld [vmem:[%s244 + $0x94] sm:$0xf]
        %v2806 = vld [vmem:[%s244 + $0x98] sm:$0xf]
        %v2807 = vld [vmem:[%s244 + $0x9c] sm:$0xf]
        %v2808 = vld [vmem:[%s244 + $0xa0] sm:$0xf]
        %v2809 = vld [vmem:[%s244 + $0xa4] sm:$0xf]
        %v2810 = vld [vmem:[%s244 + $0xa8] sm:$0x7]
        %s2811 = scalar_lea.vmem %s248, 64
        %v2812 = vld [vmem:[%s2811] sm:$0xf]
        %v2813 = vld [vmem:[%s2811 + $0x4] sm:$0x3]
        %v2853 = vunpack.c.l.b16 %v2772
        %v2854 = vunpack.c.l.b16 %v2773
        %v2855 = vunpack.c.l.b16 %v2774
        %v2856 = vunpack.c.l.b16 %v2775
        %v2857 = vunpack.c.l.b16 %v2776
        %v2858 = vunpack.c.l.b16 %v2777
        %v2859 = vunpack.c.l.b16 %v2778
        %v2860 = vunpack.c.l.b16 %v2779
        %v2861 = vunpack.c.l.b16 %v2780
        %v2862 = vunpack.c.l.b16 %v2781
        %v2863 = vunpack.c.l.b16 %v2782
        %v2864 = vunpack.c.l.b16 %v2783
        %v2865 = vunpack.c.l.b16 %v2784
        %v2866 = vunpack.c.l.b16 %v2785
        %v2867 = vunpack.c.l.b16 %v2786
        %v2868 = vunpack.c.l.b16 %v2787
        %v2869 = vunpack.c.l.b16 %v2788
        %v2870 = vunpack.c.l.b16 %v2789
        %v2871 = vunpack.c.l.b16 %v2790
        %v2872 = vunpack.c.l.b16 %v2791
        %v2873 = vunpack.c.l.b16 %v2792
        %v2874 = vunpack.c.l.b16 %v2793
        %v2875 = vunpack.c.l.b16 %v2794
        %v2876 = vunpack.c.l.b16 %v2795
        %v2877 = vunpack.c.l.b16 %v2796
        %v2878 = vunpack.c.l.b16 %v2797
        %v2879 = vunpack.c.l.b16 %v2798
        %v2880 = vunpack.c.l.b16 %v2799
        %v2881 = vunpack.c.l.b16 %v2800
        %v2882 = vunpack.c.l.b16 %v2801
        %v2883 = vunpack.c.l.b16 %v2802
        %v2884 = vunpack.c.l.b16 %v2803
        %v2885 = vunpack.c.l.b16 %v2804
        %v2886 = vunpack.c.l.b16 %v2805
        %v2887 = vunpack.c.l.b16 %v2806
        %v2888 = vunpack.c.l.b16 %v2807
        %v2889 = vunpack.c.l.b16 %v2808
        %v2890 = vunpack.c.l.b16 %v2809
        %v2891 = vunpack.c.l.b16 %v2810
        %v2892 = vpack.c.b16 %v2854, %v2853
        %v2893 = vpack.c.b16 %v2856, %v2855
        %v2894 = vpack.c.b16 %v2858, %v2857
        %v2895 = vpack.c.b16 %v2860, %v2859
        %v2896 = vpack.c.b16 %v2862, %v2861
        %v2897 = vpack.c.b16 %v2864, %v2863
        %v2898 = vpack.c.b16 %v2866, %v2865
        %v2899 = vpack.c.b16 %v2868, %v2867
        %v2900 = vpack.c.b16 %v2870, %v2869
        %v2901 = vpack.c.b16 %v2872, %v2871
        %v2902 = vpack.c.b16 %v2874, %v2873
        %v2903 = vpack.c.b16 %v2876, %v2875
        %v2904 = vpack.c.b16 %v2878, %v2877
        %v2905 = vpack.c.b16 %v2880, %v2879
        %v2906 = vpack.c.b16 %v2882, %v2881
        %v2907 = vpack.c.b16 %v2884, %v2883
        %v2908 = vpack.c.b16 %v2886, %v2885
        %v2909 = vpack.c.b16 %v2888, %v2887
        %v2910 = vpack.c.b16 %v2890, %v2889
        %v2911 = vpack.c.b16 %v2891, %v2891
        %v2912 = vrot.slane %v2892, 3
        %v2913 = vrot.slane %v2893, 3
        %v2914 = vsel %vm2525, %v2912, %v2913
        %v2915 = vrot.slane %v2894, 3
        %v2916 = vsel %vm2525, %v2913, %v2915
        %v2917 = vrot.slane %v2895, 3
        %v2918 = vsel %vm2525, %v2915, %v2917
        %v2919 = vrot.slane %v2896, 3
        %v2920 = vsel %vm2525, %v2917, %v2919
        %v2921 = vrot.slane %v2897, 3
        %v2922 = vsel %vm2525, %v2919, %v2921
        %v2923 = vrot.slane %v2898, 3
        %v2924 = vsel %vm2525, %v2921, %v2923
        %v2925 = vrot.slane %v2899, 3
        %v2926 = vsel %vm2525, %v2923, %v2925
        %v2927 = vrot.slane %v2900, 3
        %v2928 = vsel %vm2525, %v2925, %v2927
        %v2929 = vrot.slane %v2901, 3
        %v2930 = vsel %vm2525, %v2927, %v2929
        %v2931 = vrot.slane %v2902, 3
        %v2932 = vsel %vm2525, %v2929, %v2931
        %v2933 = vrot.slane %v2903, 3
        %v2934 = vsel %vm2525, %v2931, %v2933
        %v2935 = vrot.slane %v2904, 3
        %v2936 = vsel %vm2525, %v2933, %v2935
        %v2937 = vrot.slane %v2905, 3
        %v2938 = vsel %vm2525, %v2935, %v2937
        %v2939 = vrot.slane %v2906, 3
        %v2940 = vsel %vm2525, %v2937, %v2939
        %v2941 = vrot.slane %v2907, 3
        %v2942 = vsel %vm2525, %v2939, %v2941
        %v2943 = vrot.slane %v2908, 3
        %v2944 = vsel %vm2525, %v2941, %v2943
        %v2945 = vrot.slane %v2909, 3
        %v2946 = vsel %vm2525, %v2943, %v2945
        %v2947 = vrot.slane %v2910, 3
        %v2948 = vsel %vm2525, %v2945, %v2947
        %v2949 = vrot.slane %v2911, 3
        %v2950 = vsel %vm2525, %v2947, %v2949
        %v2953 = vunpack.c.l.b16 %v2812
        %v2954 = vunpack.c.l.b16 %v2813
        %v2955 = vpack.c.b16 %v2954, %v2953
        %v2957 = vsel %vm560, %v2914, 0
        %v2960 = vsel %vm560, %v2916, 0
        %v2963 = vsel %vm560, %v2918, 0
        %v2966 = vsel %vm560, %v2920, 0
        %v2969 = vsel %vm560, %v2922, 0
        %v2972 = vsel %vm560, %v2924, 0
        %v2975 = vsel %vm560, %v2926, 0
        %v2978 = vsel %vm560, %v2928, 0
        %v2981 = vsel %vm560, %v2930, 0
        %v2984 = vsel %vm560, %v2932, 0
        %v2987 = vsel %vm560, %v2934, 0
        %v2990 = vsel %vm560, %v2936, 0
        %v2993 = vsel %vm560, %v2938, 0
        %v2996 = vsel %vm560, %v2940, 0
        %v2999 = vsel %vm560, %v2942, 0
        %v3002 = vsel %vm560, %v2944, 0
        %v3005 = vsel %vm560, %v2946, 0
        %v3008 = vsel %vm560, %v2948, 0
        %v3011 = vsel %vm560, %v2950, 0
        %v3014 = vsel %vm618, %v2955, 0
        %3016 = vmatpush.bf16.msra.mxu0 0
        %3017 = vmatpush.bf16.msra.mxu0 0
        %3018 = vmatpush.bf16.msra.mxu0 0
        %3019 = vmatpush.bf16.msra.mxu0 0
        %3020 = vmatpush.bf16.msra.mxu0 0
        %3021 = vmatpush.bf16.msra.mxu0 0
        %3022 = vmatpush.bf16.msra.mxu0 0
        %3023 = vmatpush.bf16.msra.mxu0 %v3014
        %3024 = vmatmul.bf16.gmra.mxu0 %v2957
        %v3025 = vpop.f32.mrf.mxu0
        %v3026 = vadd.f32 0.0, %v3025
        %v3027 = vpop.f32.mrf.mxu0
        %v3028 = vadd.f32 0.0, %v3027
        %3029 = vmatmul.bf16.gmra.mxu0 %v2960
        %v3030 = vpop.f32.mrf.mxu0
        %v3031 = vadd.f32 0.0, %v3030
        %v3032 = vpop.f32.mrf.mxu0
        %v3033 = vadd.f32 0.0, %v3032
        %3034 = vmatmul.bf16.gmra.mxu0 %v2963
        %v3035 = vpop.f32.mrf.mxu0
        %v3036 = vadd.f32 0.0, %v3035
        %v3037 = vpop.f32.mrf.mxu0
        %v3038 = vadd.f32 0.0, %v3037
        %3039 = vmatmul.bf16.gmra.mxu0 %v2966
        %v3040 = vpop.f32.mrf.mxu0
        %v3041 = vadd.f32 0.0, %v3040
        %v3042 = vpop.f32.mrf.mxu0
        %v3043 = vadd.f32 0.0, %v3042
        %3044 = vmatmul.bf16.gmra.mxu0 %v2969
        %v3045 = vpop.f32.mrf.mxu0
        %v3046 = vadd.f32 0.0, %v3045
        %v3047 = vpop.f32.mrf.mxu0
        %v3048 = vadd.f32 0.0, %v3047
        %3049 = vmatmul.bf16.gmra.mxu0 %v2972
        %v3050 = vpop.f32.mrf.mxu0
        %v3051 = vadd.f32 0.0, %v3050
        %v3052 = vpop.f32.mrf.mxu0
        %v3053 = vadd.f32 0.0, %v3052
        %3054 = vmatmul.bf16.gmra.mxu0 %v2975
        %v3055 = vpop.f32.mrf.mxu0
        %v3056 = vadd.f32 0.0, %v3055
        %v3057 = vpop.f32.mrf.mxu0
        %v3058 = vadd.f32 0.0, %v3057
        %3059 = vmatmul.bf16.gmra.mxu0 %v2978
        %v3060 = vpop.f32.mrf.mxu0
        %v3061 = vadd.f32 0.0, %v3060
        %v3062 = vpop.f32.mrf.mxu0
        %v3063 = vadd.f32 0.0, %v3062
        %3064 = vmatmul.bf16.gmra.mxu0 %v2981
        %v3065 = vpop.f32.mrf.mxu0
        %v3066 = vadd.f32 0.0, %v3065
        %v3067 = vpop.f32.mrf.mxu0
        %v3068 = vadd.f32 0.0, %v3067
        %3069 = vmatmul.bf16.gmra.mxu0 %v2984
        %v3070 = vpop.f32.mrf.mxu0
        %v3071 = vadd.f32 0.0, %v3070
        %v3072 = vpop.f32.mrf.mxu0
        %v3073 = vadd.f32 0.0, %v3072
        %3074 = vmatmul.bf16.gmra.mxu0 %v2987
        %v3075 = vpop.f32.mrf.mxu0
        %v3076 = vadd.f32 0.0, %v3075
        %v3077 = vpop.f32.mrf.mxu0
        %v3078 = vadd.f32 0.0, %v3077
        %3079 = vmatmul.bf16.gmra.mxu0 %v2990
        %v3080 = vpop.f32.mrf.mxu0
        %v3081 = vadd.f32 0.0, %v3080
        %v3082 = vpop.f32.mrf.mxu0
        %v3083 = vadd.f32 0.0, %v3082
        %3084 = vmatmul.bf16.gmra.mxu0 %v2993
        %v3085 = vpop.f32.mrf.mxu0
        %v3086 = vadd.f32 0.0, %v3085
        %v3087 = vpop.f32.mrf.mxu0
        %v3088 = vadd.f32 0.0, %v3087
        %3089 = vmatmul.bf16.gmra.mxu0 %v2996
        %v3090 = vpop.f32.mrf.mxu0
        %v3091 = vadd.f32 0.0, %v3090
        %v3092 = vpop.f32.mrf.mxu0
        %v3093 = vadd.f32 0.0, %v3092
        %3094 = vmatmul.bf16.gmra.mxu0 %v2999
        %v3095 = vpop.f32.mrf.mxu0
        %v3096 = vadd.f32 0.0, %v3095
        %v3097 = vpop.f32.mrf.mxu0
        %v3098 = vadd.f32 0.0, %v3097
        %3099 = vmatmul.bf16.gmra.mxu0 %v3002
        %v3100 = vpop.f32.mrf.mxu0
        %v3101 = vadd.f32 0.0, %v3100
        %v3102 = vpop.f32.mrf.mxu0
        %v3103 = vadd.f32 0.0, %v3102
        %3104 = vmatmul.bf16.gmra.mxu0 %v3005
        %v3105 = vpop.f32.mrf.mxu0
        %v3106 = vadd.f32 0.0, %v3105
        %v3107 = vpop.f32.mrf.mxu0
        %v3108 = vadd.f32 0.0, %v3107
        %3109 = vmatmul.bf16.gmra.mxu0 %v3008
        %v3110 = vpop.f32.mrf.mxu0
        %v3111 = vadd.f32 0.0, %v3110
        %v3112 = vpop.f32.mrf.mxu0
        %v3113 = vadd.f32 0.0, %v3112
        %3114 = vmatmul.bf16.gmra.mxu0 %v3011
        %v3115 = vpop.f32.mrf.mxu0
        %v3116 = vadd.f32 0.0, %v3115
        %v3117 = vpop.f32.mrf.mxu0
        %v3118 = vadd.f32 0.0, %v3117
        %3119 = vdwg.mxu0
        %v3120 = vadd.f32 %v2734, %v3026
        %v3121 = vadd.f32 %v2735, %v3028
        %v3122 = vadd.f32 %v2736, %v3031
        %v3123 = vadd.f32 %v2737, %v3033
        %v3124 = vadd.f32 %v2738, %v3036
        %v3125 = vadd.f32 %v2739, %v3038
        %v3126 = vadd.f32 %v2740, %v3041
        %v3127 = vadd.f32 %v2741, %v3043
        %v3128 = vadd.f32 %v2742, %v3046
        %v3129 = vadd.f32 %v2743, %v3048
        %v3130 = vadd.f32 %v2744, %v3051
        %v3131 = vadd.f32 %v2745, %v3053
        %v3132 = vadd.f32 %v2746, %v3056
        %v3133 = vadd.f32 %v2747, %v3058
        %v3134 = vadd.f32 %v2748, %v3061
        %v3135 = vadd.f32 %v2749, %v3063
        %v3136 = vadd.f32 %v2750, %v3066
        %v3137 = vadd.f32 %v2751, %v3068
        %v3138 = vadd.f32 %v2752, %v3071
        %v3139 = vadd.f32 %v2753, %v3073
        %v3140 = vadd.f32 %v2754, %v3076
        %v3141 = vadd.f32 %v2755, %v3078
        %v3142 = vadd.f32 %v2756, %v3081
        %v3143 = vadd.f32 %v2757, %v3083
        %v3144 = vadd.f32 %v2758, %v3086
        %v3145 = vadd.f32 %v2759, %v3088
        %v3146 = vadd.f32 %v2760, %v3091
        %v3147 = vadd.f32 %v2761, %v3093
        %v3148 = vadd.f32 %v2762, %v3096
        %v3149 = vadd.f32 %v2763, %v3098
        %v3150 = vadd.f32 %v2764, %v3101
        %v3151 = vadd.f32 %v2765, %v3103
        %v3152 = vadd.f32 %v2766, %v3106
        %v3153 = vadd.f32 %v2767, %v3108
        %v3154 = vadd.f32 %v2768, %v3111
        %v3155 = vadd.f32 %v2769, %v3113
        %v3156 = vadd.f32 %v2770, %v3116
        %v3157 = vadd.f32 %v2771, %v3118
        %v3158 = vld [vmem:[%s244 + $0xa8] sm:$0xf]
        %s3159 = scalar_lea.vmem %s248, 72
        %v3160 = vld [vmem:[%s3159] sm:$0xf]
        %v3161 = vld [vmem:[%s3159 + $0x4] sm:$0x3]
        %v3163 = vunpack.c.l.b16 %v3158
        %v3164 = vpack.c.b16 %v3163, %v3163
        %vm3165 = vsmask.f32 4352
        %v3167 = vshrl.u32 %v2892, 16
        %v3169 = vrot.slane %v3167, 3
        %v3170 = vshll.u32 %v2892, 16
        %v3172 = vrot.slane %v3170, 4
        %v3173 = vor.u32 %v3169, %v3172
        %v3175 = vshrl.u32 %v2893, 16
        %v3177 = vrot.slane %v3175, 3
        %v3178 = vshll.u32 %v2893, 16
        %v3180 = vrot.slane %v3178, 4
        %v3181 = vor.u32 %v3177, %v3180
        %v3182 = vsel %vm3165, %v3173, %v3181
        %v3184 = vshrl.u32 %v2894, 16
        %v3186 = vrot.slane %v3184, 3
        %v3187 = vshll.u32 %v2894, 16
        %v3189 = vrot.slane %v3187, 4
        %v3190 = vor.u32 %v3186, %v3189
        %v3191 = vsel %vm3165, %v3181, %v3190
        %v3193 = vshrl.u32 %v2895, 16
        %v3195 = vrot.slane %v3193, 3
        %v3196 = vshll.u32 %v2895, 16
        %v3198 = vrot.slane %v3196, 4
        %v3199 = vor.u32 %v3195, %v3198
        %v3200 = vsel %vm3165, %v3190, %v3199
        %v3202 = vshrl.u32 %v2896, 16
        %v3204 = vrot.slane %v3202, 3
        %v3205 = vshll.u32 %v2896, 16
        %v3207 = vrot.slane %v3205, 4
        %v3208 = vor.u32 %v3204, %v3207
        %v3209 = vsel %vm3165, %v3199, %v3208
        %v3211 = vshrl.u32 %v2897, 16
        %v3213 = vrot.slane %v3211, 3
        %v3214 = vshll.u32 %v2897, 16
        %v3216 = vrot.slane %v3214, 4
        %v3217 = vor.u32 %v3213, %v3216
        %v3218 = vsel %vm3165, %v3208, %v3217
        %v3220 = vshrl.u32 %v2898, 16
        %v3222 = vrot.slane %v3220, 3
        %v3223 = vshll.u32 %v2898, 16
        %v3225 = vrot.slane %v3223, 4
        %v3226 = vor.u32 %v3222, %v3225
        %v3227 = vsel %vm3165, %v3217, %v3226
        %v3229 = vshrl.u32 %v2899, 16
        %v3231 = vrot.slane %v3229, 3
        %v3232 = vshll.u32 %v2899, 16
        %v3234 = vrot.slane %v3232, 4
        %v3235 = vor.u32 %v3231, %v3234
        %v3236 = vsel %vm3165, %v3226, %v3235
        %v3238 = vshrl.u32 %v2900, 16
        %v3240 = vrot.slane %v3238, 3
        %v3241 = vshll.u32 %v2900, 16
        %v3243 = vrot.slane %v3241, 4
        %v3244 = vor.u32 %v3240, %v3243
        %v3245 = vsel %vm3165, %v3235, %v3244
        %v3247 = vshrl.u32 %v2901, 16
        %v3249 = vrot.slane %v3247, 3
        %v3250 = vshll.u32 %v2901, 16
        %v3252 = vrot.slane %v3250, 4
        %v3253 = vor.u32 %v3249, %v3252
        %v3254 = vsel %vm3165, %v3244, %v3253
        %v3256 = vshrl.u32 %v2902, 16
        %v3258 = vrot.slane %v3256, 3
        %v3259 = vshll.u32 %v2902, 16
        %v3261 = vrot.slane %v3259, 4
        %v3262 = vor.u32 %v3258, %v3261
        %v3263 = vsel %vm3165, %v3253, %v3262
        %v3265 = vshrl.u32 %v2903, 16
        %v3267 = vrot.slane %v3265, 3
        %v3268 = vshll.u32 %v2903, 16
        %v3270 = vrot.slane %v3268, 4
        %v3271 = vor.u32 %v3267, %v3270
        %v3272 = vsel %vm3165, %v3262, %v3271
        %v3274 = vshrl.u32 %v2904, 16
        %v3276 = vrot.slane %v3274, 3
        %v3277 = vshll.u32 %v2904, 16
        %v3279 = vrot.slane %v3277, 4
        %v3280 = vor.u32 %v3276, %v3279
        %v3281 = vsel %vm3165, %v3271, %v3280
        %v3283 = vshrl.u32 %v2905, 16
        %v3285 = vrot.slane %v3283, 3
        %v3286 = vshll.u32 %v2905, 16
        %v3288 = vrot.slane %v3286, 4
        %v3289 = vor.u32 %v3285, %v3288
        %v3290 = vsel %vm3165, %v3280, %v3289
        %v3292 = vshrl.u32 %v2906, 16
        %v3294 = vrot.slane %v3292, 3
        %v3295 = vshll.u32 %v2906, 16
        %v3297 = vrot.slane %v3295, 4
        %v3298 = vor.u32 %v3294, %v3297
        %v3299 = vsel %vm3165, %v3289, %v3298
        %v3301 = vshrl.u32 %v2907, 16
        %v3303 = vrot.slane %v3301, 3
        %v3304 = vshll.u32 %v2907, 16
        %v3306 = vrot.slane %v3304, 4
        %v3307 = vor.u32 %v3303, %v3306
        %v3308 = vsel %vm3165, %v3298, %v3307
        %v3310 = vshrl.u32 %v2908, 16
        %v3312 = vrot.slane %v3310, 3
        %v3313 = vshll.u32 %v2908, 16
        %v3315 = vrot.slane %v3313, 4
        %v3316 = vor.u32 %v3312, %v3315
        %v3317 = vsel %vm3165, %v3307, %v3316
        %v3319 = vshrl.u32 %v2909, 16
        %v3321 = vrot.slane %v3319, 3
        %v3322 = vshll.u32 %v2909, 16
        %v3324 = vrot.slane %v3322, 4
        %v3325 = vor.u32 %v3321, %v3324
        %v3326 = vsel %vm3165, %v3316, %v3325
        %v3328 = vshrl.u32 %v2910, 16
        %v3330 = vrot.slane %v3328, 3
        %v3331 = vshll.u32 %v2910, 16
        %v3333 = vrot.slane %v3331, 4
        %v3334 = vor.u32 %v3330, %v3333
        %v3335 = vsel %vm3165, %v3325, %v3334
        %v3337 = vshrl.u32 %v3164, 16
        %v3339 = vrot.slane %v3337, 3
        %v3340 = vshll.u32 %v3164, 16
        %v3342 = vrot.slane %v3340, 4
        %v3343 = vor.u32 %v3339, %v3342
        %v3344 = vsel %vm3165, %v3334, %v3343
        %v3347 = vunpack.c.l.b16 %v3160
        %v3348 = vunpack.c.l.b16 %v3161
        %v3349 = vpack.c.b16 %v3348, %v3347
        %v3351 = vsel %vm560, %v3182, 0
        %v3354 = vsel %vm560, %v3191, 0
        %v3357 = vsel %vm560, %v3200, 0
        %v3360 = vsel %vm560, %v3209, 0
        %v3363 = vsel %vm560, %v3218, 0
        %v3366 = vsel %vm560, %v3227, 0
        %v3369 = vsel %vm560, %v3236, 0
        %v3372 = vsel %vm560, %v3245, 0
        %v3375 = vsel %vm560, %v3254, 0
        %v3378 = vsel %vm560, %v3263, 0
        %v3381 = vsel %vm560, %v3272, 0
        %v3384 = vsel %vm560, %v3281, 0
        %v3387 = vsel %vm560, %v3290, 0
        %v3390 = vsel %vm560, %v3299, 0
        %v3393 = vsel %vm560, %v3308, 0
        %v3396 = vsel %vm560, %v3317, 0
        %v3399 = vsel %vm560, %v3326, 0
        %v3402 = vsel %vm560, %v3335, 0
        %v3405 = vsel %vm560, %v3344, 0
        %v3408 = vsel %vm618, %v3349, 0
        %3410 = vmatpush.bf16.msra.mxu0 0
        %3411 = vmatpush.bf16.msra.mxu0 0
        %3412 = vmatpush.bf16.msra.mxu0 0
        %3413 = vmatpush.bf16.msra.mxu0 0
        %3414 = vmatpush.bf16.msra.mxu0 0
        %3415 = vmatpush.bf16.msra.mxu0 0
        %3416 = vmatpush.bf16.msra.mxu0 0
        %3417 = vmatpush.bf16.msra.mxu0 %v3408
        %3418 = vmatmul.bf16.gmra.mxu0 %v3351
        %v3419 = vpop.f32.mrf.mxu0
        %v3420 = vadd.f32 0.0, %v3419
        %v3421 = vpop.f32.mrf.mxu0
        %v3422 = vadd.f32 0.0, %v3421
        %3423 = vmatmul.bf16.gmra.mxu0 %v3354
        %v3424 = vpop.f32.mrf.mxu0
        %v3425 = vadd.f32 0.0, %v3424
        %v3426 = vpop.f32.mrf.mxu0
        %v3427 = vadd.f32 0.0, %v3426
        %3428 = vmatmul.bf16.gmra.mxu0 %v3357
        %v3429 = vpop.f32.mrf.mxu0
        %v3430 = vadd.f32 0.0, %v3429
        %v3431 = vpop.f32.mrf.mxu0
        %v3432 = vadd.f32 0.0, %v3431
        %3433 = vmatmul.bf16.gmra.mxu0 %v3360
        %v3434 = vpop.f32.mrf.mxu0
        %v3435 = vadd.f32 0.0, %v3434
        %v3436 = vpop.f32.mrf.mxu0
        %v3437 = vadd.f32 0.0, %v3436
        %3438 = vmatmul.bf16.gmra.mxu0 %v3363
        %v3439 = vpop.f32.mrf.mxu0
        %v3440 = vadd.f32 0.0, %v3439
        %v3441 = vpop.f32.mrf.mxu0
        %v3442 = vadd.f32 0.0, %v3441
        %3443 = vmatmul.bf16.gmra.mxu0 %v3366
        %v3444 = vpop.f32.mrf.mxu0
        %v3445 = vadd.f32 0.0, %v3444
        %v3446 = vpop.f32.mrf.mxu0
        %v3447 = vadd.f32 0.0, %v3446
        %3448 = vmatmul.bf16.gmra.mxu0 %v3369
        %v3449 = vpop.f32.mrf.mxu0
        %v3450 = vadd.f32 0.0, %v3449
        %v3451 = vpop.f32.mrf.mxu0
        %v3452 = vadd.f32 0.0, %v3451
        %3453 = vmatmul.bf16.gmra.mxu0 %v3372
        %v3454 = vpop.f32.mrf.mxu0
        %v3455 = vadd.f32 0.0, %v3454
        %v3456 = vpop.f32.mrf.mxu0
        %v3457 = vadd.f32 0.0, %v3456
        %3458 = vmatmul.bf16.gmra.mxu0 %v3375
        %v3459 = vpop.f32.mrf.mxu0
        %v3460 = vadd.f32 0.0, %v3459
        %v3461 = vpop.f32.mrf.mxu0
        %v3462 = vadd.f32 0.0, %v3461
        %3463 = vmatmul.bf16.gmra.mxu0 %v3378
        %v3464 = vpop.f32.mrf.mxu0
        %v3465 = vadd.f32 0.0, %v3464
        %v3466 = vpop.f32.mrf.mxu0
        %v3467 = vadd.f32 0.0, %v3466
        %3468 = vmatmul.bf16.gmra.mxu0 %v3381
        %v3469 = vpop.f32.mrf.mxu0
        %v3470 = vadd.f32 0.0, %v3469
        %v3471 = vpop.f32.mrf.mxu0
        %v3472 = vadd.f32 0.0, %v3471
        %3473 = vmatmul.bf16.gmra.mxu0 %v3384
        %v3474 = vpop.f32.mrf.mxu0
        %v3475 = vadd.f32 0.0, %v3474
        %v3476 = vpop.f32.mrf.mxu0
        %v3477 = vadd.f32 0.0, %v3476
        %3478 = vmatmul.bf16.gmra.mxu0 %v3387
        %v3479 = vpop.f32.mrf.mxu0
        %v3480 = vadd.f32 0.0, %v3479
        %v3481 = vpop.f32.mrf.mxu0
        %v3482 = vadd.f32 0.0, %v3481
        %3483 = vmatmul.bf16.gmra.mxu0 %v3390
        %v3484 = vpop.f32.mrf.mxu0
        %v3485 = vadd.f32 0.0, %v3484
        %v3486 = vpop.f32.mrf.mxu0
        %v3487 = vadd.f32 0.0, %v3486
        %3488 = vmatmul.bf16.gmra.mxu0 %v3393
        %v3489 = vpop.f32.mrf.mxu0
        %v3490 = vadd.f32 0.0, %v3489
        %v3491 = vpop.f32.mrf.mxu0
        %v3492 = vadd.f32 0.0, %v3491
        %3493 = vmatmul.bf16.gmra.mxu0 %v3396
        %v3494 = vpop.f32.mrf.mxu0
        %v3495 = vadd.f32 0.0, %v3494
        %v3496 = vpop.f32.mrf.mxu0
        %v3497 = vadd.f32 0.0, %v3496
        %3498 = vmatmul.bf16.gmra.mxu0 %v3399
        %v3499 = vpop.f32.mrf.mxu0
        %v3500 = vadd.f32 0.0, %v3499
        %v3501 = vpop.f32.mrf.mxu0
        %v3502 = vadd.f32 0.0, %v3501
        %3503 = vmatmul.bf16.gmra.mxu0 %v3402
        %v3504 = vpop.f32.mrf.mxu0
        %v3505 = vadd.f32 0.0, %v3504
        %v3506 = vpop.f32.mrf.mxu0
        %v3507 = vadd.f32 0.0, %v3506
        %3508 = vmatmul.bf16.gmra.mxu0 %v3405
        %v3509 = vpop.f32.mrf.mxu0
        %v3510 = vadd.f32 0.0, %v3509
        %v3511 = vpop.f32.mrf.mxu0
        %v3512 = vadd.f32 0.0, %v3511
        %3513 = vdwg.mxu0
        %v3514 = vadd.f32 %v3120, %v3420
        %v3515 = vadd.f32 %v3121, %v3422
        %v3516 = vadd.f32 %v3122, %v3425
        %v3517 = vadd.f32 %v3123, %v3427
        %v3518 = vadd.f32 %v3124, %v3430
        %v3519 = vadd.f32 %v3125, %v3432
        %v3520 = vadd.f32 %v3126, %v3435
        %v3521 = vadd.f32 %v3127, %v3437
        %v3522 = vadd.f32 %v3128, %v3440
        %v3523 = vadd.f32 %v3129, %v3442
        %v3524 = vadd.f32 %v3130, %v3445
        %v3525 = vadd.f32 %v3131, %v3447
        %v3526 = vadd.f32 %v3132, %v3450
        %v3527 = vadd.f32 %v3133, %v3452
        %v3528 = vadd.f32 %v3134, %v3455
        %v3529 = vadd.f32 %v3135, %v3457
        %v3530 = vadd.f32 %v3136, %v3460
        %v3531 = vadd.f32 %v3137, %v3462
        %v3532 = vadd.f32 %v3138, %v3465
        %v3533 = vadd.f32 %v3139, %v3467
        %v3534 = vadd.f32 %v3140, %v3470
        %v3535 = vadd.f32 %v3141, %v3472
        %v3536 = vadd.f32 %v3142, %v3475
        %v3537 = vadd.f32 %v3143, %v3477
        %v3538 = vadd.f32 %v3144, %v3480
        %v3539 = vadd.f32 %v3145, %v3482
        %v3540 = vadd.f32 %v3146, %v3485
        %v3541 = vadd.f32 %v3147, %v3487
        %v3542 = vadd.f32 %v3148, %v3490
        %v3543 = vadd.f32 %v3149, %v3492
        %v3544 = vadd.f32 %v3150, %v3495
        %v3545 = vadd.f32 %v3151, %v3497
        %v3546 = vadd.f32 %v3152, %v3500
        %v3547 = vadd.f32 %v3153, %v3502
        %v3548 = vadd.f32 %v3154, %v3505
        %v3549 = vadd.f32 %v3155, %v3507
        %v3550 = vadd.f32 %v3156, %v3510
        %v3551 = vadd.f32 %v3157, %v3512
        %s3552 = scalar_lea.vmem %s248, 80
        %v3553 = vld [vmem:[%s3552] sm:$0xf]
        %v3554 = vld [vmem:[%s3552 + $0x4] sm:$0x3]
        %v3555 = vpack.c.b16 %v2855, %v2854
        %v3556 = vpack.c.b16 %v2857, %v2856
        %v3557 = vpack.c.b16 %v2859, %v2858
        %v3558 = vpack.c.b16 %v2861, %v2860
        %v3559 = vpack.c.b16 %v2863, %v2862
        %v3560 = vpack.c.b16 %v2865, %v2864
        %v3561 = vpack.c.b16 %v2867, %v2866
        %v3562 = vpack.c.b16 %v2869, %v2868
        %v3563 = vpack.c.b16 %v2871, %v2870
        %v3564 = vpack.c.b16 %v2873, %v2872
        %v3565 = vpack.c.b16 %v2875, %v2874
        %v3566 = vpack.c.b16 %v2877, %v2876
        %v3567 = vpack.c.b16 %v2879, %v2878
        %v3568 = vpack.c.b16 %v2881, %v2880
        %v3569 = vpack.c.b16 %v2883, %v2882
        %v3570 = vpack.c.b16 %v2885, %v2884
        %v3571 = vpack.c.b16 %v2887, %v2886
        %v3572 = vpack.c.b16 %v2889, %v2888
        %v3573 = vpack.c.b16 %v3163, %v2890
        %v3576 = vunpack.c.l.b16 %v3553
        %v3577 = vunpack.c.l.b16 %v3554
        %v3578 = vpack.c.b16 %v3577, %v3576
        %v3580 = vsel %vm560, %v3555, 0
        %v3583 = vsel %vm560, %v3556, 0
        %v3586 = vsel %vm560, %v3557, 0
        %v3589 = vsel %vm560, %v3558, 0
        %v3592 = vsel %vm560, %v3559, 0
        %v3595 = vsel %vm560, %v3560, 0
        %v3598 = vsel %vm560, %v3561, 0
        %v3601 = vsel %vm560, %v3562, 0
        %v3604 = vsel %vm560, %v3563, 0
        %v3607 = vsel %vm560, %v3564, 0
        %v3610 = vsel %vm560, %v3565, 0
        %v3613 = vsel %vm560, %v3566, 0
        %v3616 = vsel %vm560, %v3567, 0
        %v3619 = vsel %vm560, %v3568, 0
        %v3622 = vsel %vm560, %v3569, 0
        %v3625 = vsel %vm560, %v3570, 0
        %v3628 = vsel %vm560, %v3571, 0
        %v3631 = vsel %vm560, %v3572, 0
        %v3634 = vsel %vm560, %v3573, 0
        %v3637 = vsel %vm618, %v3578, 0
        %3639 = vmatpush.bf16.msra.mxu0 0
        %3640 = vmatpush.bf16.msra.mxu0 0
        %3641 = vmatpush.bf16.msra.mxu0 0
        %3642 = vmatpush.bf16.msra.mxu0 0
        %3643 = vmatpush.bf16.msra.mxu0 0
        %3644 = vmatpush.bf16.msra.mxu0 0
        %3645 = vmatpush.bf16.msra.mxu0 0
        %3646 = vmatpush.bf16.msra.mxu0 %v3637
        %3647 = vmatmul.bf16.gmra.mxu0 %v3580
        %v3648 = vpop.f32.mrf.mxu0
        %v3649 = vadd.f32 0.0, %v3648
        %v3650 = vpop.f32.mrf.mxu0
        %v3651 = vadd.f32 0.0, %v3650
        %3652 = vmatmul.bf16.gmra.mxu0 %v3583
        %v3653 = vpop.f32.mrf.mxu0
        %v3654 = vadd.f32 0.0, %v3653
        %v3655 = vpop.f32.mrf.mxu0
        %v3656 = vadd.f32 0.0, %v3655
        %3657 = vmatmul.bf16.gmra.mxu0 %v3586
        %v3658 = vpop.f32.mrf.mxu0
        %v3659 = vadd.f32 0.0, %v3658
        %v3660 = vpop.f32.mrf.mxu0
        %v3661 = vadd.f32 0.0, %v3660
        %3662 = vmatmul.bf16.gmra.mxu0 %v3589
        %v3663 = vpop.f32.mrf.mxu0
        %v3664 = vadd.f32 0.0, %v3663
        %v3665 = vpop.f32.mrf.mxu0
        %v3666 = vadd.f32 0.0, %v3665
        %3667 = vmatmul.bf16.gmra.mxu0 %v3592
        %v3668 = vpop.f32.mrf.mxu0
        %v3669 = vadd.f32 0.0, %v3668
        %v3670 = vpop.f32.mrf.mxu0
        %v3671 = vadd.f32 0.0, %v3670
        %3672 = vmatmul.bf16.gmra.mxu0 %v3595
        %v3673 = vpop.f32.mrf.mxu0
        %v3674 = vadd.f32 0.0, %v3673
        %v3675 = vpop.f32.mrf.mxu0
        %v3676 = vadd.f32 0.0, %v3675
        %3677 = vmatmul.bf16.gmra.mxu0 %v3598
        %v3678 = vpop.f32.mrf.mxu0
        %v3679 = vadd.f32 0.0, %v3678
        %v3680 = vpop.f32.mrf.mxu0
        %v3681 = vadd.f32 0.0, %v3680
        %3682 = vmatmul.bf16.gmra.mxu0 %v3601
        %v3683 = vpop.f32.mrf.mxu0
        %v3684 = vadd.f32 0.0, %v3683
        %v3685 = vpop.f32.mrf.mxu0
        %v3686 = vadd.f32 0.0, %v3685
        %3687 = vmatmul.bf16.gmra.mxu0 %v3604
        %v3688 = vpop.f32.mrf.mxu0
        %v3689 = vadd.f32 0.0, %v3688
        %v3690 = vpop.f32.mrf.mxu0
        %v3691 = vadd.f32 0.0, %v3690
        %3692 = vmatmul.bf16.gmra.mxu0 %v3607
        %v3693 = vpop.f32.mrf.mxu0
        %v3694 = vadd.f32 0.0, %v3693
        %v3695 = vpop.f32.mrf.mxu0
        %v3696 = vadd.f32 0.0, %v3695
        %3697 = vmatmul.bf16.gmra.mxu0 %v3610
        %v3698 = vpop.f32.mrf.mxu0
        %v3699 = vadd.f32 0.0, %v3698
        %v3700 = vpop.f32.mrf.mxu0
        %v3701 = vadd.f32 0.0, %v3700
        %3702 = vmatmul.bf16.gmra.mxu0 %v3613
        %v3703 = vpop.f32.mrf.mxu0
        %v3704 = vadd.f32 0.0, %v3703
        %v3705 = vpop.f32.mrf.mxu0
        %v3706 = vadd.f32 0.0, %v3705
        %3707 = vmatmul.bf16.gmra.mxu0 %v3616
        %v3708 = vpop.f32.mrf.mxu0
        %v3709 = vadd.f32 0.0, %v3708
        %v3710 = vpop.f32.mrf.mxu0
        %v3711 = vadd.f32 0.0, %v3710
        %3712 = vmatmul.bf16.gmra.mxu0 %v3619
        %v3713 = vpop.f32.mrf.mxu0
        %v3714 = vadd.f32 0.0, %v3713
        %v3715 = vpop.f32.mrf.mxu0
        %v3716 = vadd.f32 0.0, %v3715
        %3717 = vmatmul.bf16.gmra.mxu0 %v3622
        %v3718 = vpop.f32.mrf.mxu0
        %v3719 = vadd.f32 0.0, %v3718
        %v3720 = vpop.f32.mrf.mxu0
        %v3721 = vadd.f32 0.0, %v3720
        %3722 = vmatmul.bf16.gmra.mxu0 %v3625
        %v3723 = vpop.f32.mrf.mxu0
        %v3724 = vadd.f32 0.0, %v3723
        %v3725 = vpop.f32.mrf.mxu0
        %v3726 = vadd.f32 0.0, %v3725
        %3727 = vmatmul.bf16.gmra.mxu0 %v3628
        %v3728 = vpop.f32.mrf.mxu0
        %v3729 = vadd.f32 0.0, %v3728
        %v3730 = vpop.f32.mrf.mxu0
        %v3731 = vadd.f32 0.0, %v3730
        %3732 = vmatmul.bf16.gmra.mxu0 %v3631
        %v3733 = vpop.f32.mrf.mxu0
        %v3734 = vadd.f32 0.0, %v3733
        %v3735 = vpop.f32.mrf.mxu0
        %v3736 = vadd.f32 0.0, %v3735
        %3737 = vmatmul.bf16.gmra.mxu0 %v3634
        %v3738 = vpop.f32.mrf.mxu0
        %v3739 = vadd.f32 0.0, %v3738
        %v3740 = vpop.f32.mrf.mxu0
        %v3741 = vadd.f32 0.0, %v3740
        %3742 = vdwg.mxu0
        %v3743 = vadd.f32 %v3514, %v3649
        %v3744 = vadd.f32 %v3515, %v3651
        %v3745 = vadd.f32 %v3516, %v3654
        %v3746 = vadd.f32 %v3517, %v3656
        %v3747 = vadd.f32 %v3518, %v3659
        %v3748 = vadd.f32 %v3519, %v3661
        %v3749 = vadd.f32 %v3520, %v3664
        %v3750 = vadd.f32 %v3521, %v3666
        %v3751 = vadd.f32 %v3522, %v3669
        %v3752 = vadd.f32 %v3523, %v3671
        %v3753 = vadd.f32 %v3524, %v3674
        %v3754 = vadd.f32 %v3525, %v3676
        %v3755 = vadd.f32 %v3526, %v3679
        %v3756 = vadd.f32 %v3527, %v3681
        %v3757 = vadd.f32 %v3528, %v3684
        %v3758 = vadd.f32 %v3529, %v3686
        %v3759 = vadd.f32 %v3530, %v3689
        %v3760 = vadd.f32 %v3531, %v3691
        %v3761 = vadd.f32 %v3532, %v3694
        %v3762 = vadd.f32 %v3533, %v3696
        %v3763 = vadd.f32 %v3534, %v3699
        %v3764 = vadd.f32 %v3535, %v3701
        %v3765 = vadd.f32 %v3536, %v3704
        %v3766 = vadd.f32 %v3537, %v3706
        %v3767 = vadd.f32 %v3538, %v3709
        %v3768 = vadd.f32 %v3539, %v3711
        %v3769 = vadd.f32 %v3540, %v3714
        %v3770 = vadd.f32 %v3541, %v3716
        %v3771 = vadd.f32 %v3542, %v3719
        %v3772 = vadd.f32 %v3543, %v3721
        %v3773 = vadd.f32 %v3544, %v3724
        %v3774 = vadd.f32 %v3545, %v3726
        %v3775 = vadd.f32 %v3546, %v3729
        %v3776 = vadd.f32 %v3547, %v3731
        %v3777 = vadd.f32 %v3548, %v3734
        %v3778 = vadd.f32 %v3549, %v3736
        %v3779 = vadd.f32 %v3550, %v3739
        %v3780 = vadd.f32 %v3551, %v3741
        %v3781 = vld [vmem:[%s244 + $0x14] sm:$0xf]
        %v3782 = vld [vmem:[%s244 + $0x18] sm:$0xf]
        %v3783 = vld [vmem:[%s244 + $0x1c] sm:$0xf]
        %v3784 = vld [vmem:[%s244 + $0x20] sm:$0xf]
        %v3785 = vld [vmem:[%s244 + $0x24] sm:$0xf]
        %v3786 = vld [vmem:[%s244 + $0x28] sm:$0xf]
        %v3787 = vld [vmem:[%s244 + $0x2c] sm:$0xf]
        %v3788 = vld [vmem:[%s244 + $0x30] sm:$0xf]
        %v3789 = vld [vmem:[%s244 + $0x34] sm:$0xf]
        %v3790 = vld [vmem:[%s244 + $0x38] sm:$0xf]
        %v3791 = vld [vmem:[%s244 + $0x3c] sm:$0xf]
        %v3792 = vld [vmem:[%s244 + $0x40] sm:$0xf]
        %v3793 = vld [vmem:[%s244 + $0x44] sm:$0xf]
        %v3794 = vld [vmem:[%s244 + $0x48] sm:$0xf]
        %v3795 = vld [vmem:[%s244 + $0x4c] sm:$0xf]
        %v3796 = vld [vmem:[%s244 + $0x50] sm:$0xf]
        %v3797 = vld [vmem:[%s244 + $0x54] sm:$0xf]
        %v3798 = vld [vmem:[%s244 + $0x58] sm:$0xf]
        %v3799 = vld [vmem:[%s244 + $0x5c] sm:$0xf]
        %v3800 = vld [vmem:[%s244 + $0x60] sm:$0xf]
        %v3801 = vld [vmem:[%s244 + $0x64] sm:$0xf]
        %v3802 = vld [vmem:[%s244 + $0x68] sm:$0xf]
        %v3803 = vld [vmem:[%s244 + $0x6c] sm:$0xf]
        %v3804 = vld [vmem:[%s244 + $0x70] sm:$0xf]
        %v3805 = vld [vmem:[%s244 + $0x74] sm:$0xf]
        %v3806 = vld [vmem:[%s244 + $0x78] sm:$0xf]
        %v3807 = vld [vmem:[%s244 + $0x7c] sm:$0xf]
        %v3808 = vld [vmem:[%s244 + $0x80] sm:$0xf]
        %v3809 = vld [vmem:[%s244 + $0x84] sm:$0xf]
        %v3810 = vld [vmem:[%s244 + $0x88] sm:$0xf]
        %v3811 = vld [vmem:[%s244 + $0x8c] sm:$0xf]
        %v3812 = vld [vmem:[%s244 + $0x90] sm:$0xf]
        %v3813 = vld [vmem:[%s244 + $0x94] sm:$0xf]
        %v3814 = vld [vmem:[%s244 + $0x98] sm:$0xf]
        %v3815 = vld [vmem:[%s244 + $0x9c] sm:$0xf]
        %v3816 = vld [vmem:[%s244 + $0xa0] sm:$0xf]
        %v3817 = vld [vmem:[%s244 + $0xa4] sm:$0xf]
        %v3818 = vld [vmem:[%s244 + $0xa8] sm:$0xf]
        %v3819 = vld [vmem:[%s244 + $0xac] sm:$0x1]
        %s3820 = scalar_lea.vmem %s248, 88
        %v3821 = vld [vmem:[%s3820] sm:$0xf]
        %v3822 = vld [vmem:[%s3820 + $0x4] sm:$0x3]
        %v3862 = vunpack.c.l.b16 %v3781
        %v3863 = vunpack.c.l.b16 %v3782
        %v3864 = vunpack.c.l.b16 %v3783
        %v3865 = vunpack.c.l.b16 %v3784
        %v3866 = vunpack.c.l.b16 %v3785
        %v3867 = vunpack.c.l.b16 %v3786
        %v3868 = vunpack.c.l.b16 %v3787
        %v3869 = vunpack.c.l.b16 %v3788
        %v3870 = vunpack.c.l.b16 %v3789
        %v3871 = vunpack.c.l.b16 %v3790
        %v3872 = vunpack.c.l.b16 %v3791
        %v3873 = vunpack.c.l.b16 %v3792
        %v3874 = vunpack.c.l.b16 %v3793
        %v3875 = vunpack.c.l.b16 %v3794
        %v3876 = vunpack.c.l.b16 %v3795
        %v3877 = vunpack.c.l.b16 %v3796
        %v3878 = vunpack.c.l.b16 %v3797
        %v3879 = vunpack.c.l.b16 %v3798
        %v3880 = vunpack.c.l.b16 %v3799
        %v3881 = vunpack.c.l.b16 %v3800
        %v3882 = vunpack.c.l.b16 %v3801
        %v3883 = vunpack.c.l.b16 %v3802
        %v3884 = vunpack.c.l.b16 %v3803
        %v3885 = vunpack.c.l.b16 %v3804
        %v3886 = vunpack.c.l.b16 %v3805
        %v3887 = vunpack.c.l.b16 %v3806
        %v3888 = vunpack.c.l.b16 %v3807
        %v3889 = vunpack.c.l.b16 %v3808
        %v3890 = vunpack.c.l.b16 %v3809
        %v3891 = vunpack.c.l.b16 %v3810
        %v3892 = vunpack.c.l.b16 %v3811
        %v3893 = vunpack.c.l.b16 %v3812
        %v3894 = vunpack.c.l.b16 %v3813
        %v3895 = vunpack.c.l.b16 %v3814
        %v3896 = vunpack.c.l.b16 %v3815
        %v3897 = vunpack.c.l.b16 %v3816
        %v3898 = vunpack.c.l.b16 %v3817
        %v3899 = vunpack.c.l.b16 %v3818
        %v3900 = vunpack.c.l.b16 %v3819
        %v3901 = vpack.c.b16 %v3863, %v3862
        %v3902 = vpack.c.b16 %v3865, %v3864
        %v3903 = vpack.c.b16 %v3867, %v3866
        %v3904 = vpack.c.b16 %v3869, %v3868
        %v3905 = vpack.c.b16 %v3871, %v3870
        %v3906 = vpack.c.b16 %v3873, %v3872
        %v3907 = vpack.c.b16 %v3875, %v3874
        %v3908 = vpack.c.b16 %v3877, %v3876
        %v3909 = vpack.c.b16 %v3879, %v3878
        %v3910 = vpack.c.b16 %v3881, %v3880
        %v3911 = vpack.c.b16 %v3883, %v3882
        %v3912 = vpack.c.b16 %v3885, %v3884
        %v3913 = vpack.c.b16 %v3887, %v3886
        %v3914 = vpack.c.b16 %v3889, %v3888
        %v3915 = vpack.c.b16 %v3891, %v3890
        %v3916 = vpack.c.b16 %v3893, %v3892
        %v3917 = vpack.c.b16 %v3895, %v3894
        %v3918 = vpack.c.b16 %v3897, %v3896
        %v3919 = vpack.c.b16 %v3899, %v3898
        %v3920 = vpack.c.b16 %v3900, %v3900
        %v3922 = vshrl.u32 %v3901, 16
        %v3924 = vshll.u32 %v3901, 16
        %v3926 = vrot.slane %v3924, 1
        %v3927 = vor.u32 %v3922, %v3926
        %v3929 = vshll.u32 %v3902, 16
        %v3931 = vrot.slane %v3929, 1
        %v3932 = vsel %vm398, %v3927, %v3931
        %v3933 = vshrl.u32 %v3902, 16
        %v3935 = vor.u32 %v3933, %v3931
        %v3937 = vshll.u32 %v3903, 16
        %v3939 = vrot.slane %v3937, 1
        %v3940 = vsel %vm398, %v3935, %v3939
        %v3941 = vshrl.u32 %v3903, 16
        %v3943 = vor.u32 %v3941, %v3939
        %v3945 = vshll.u32 %v3904, 16
        %v3947 = vrot.slane %v3945, 1
        %v3948 = vsel %vm398, %v3943, %v3947
        %v3949 = vshrl.u32 %v3904, 16
        %v3951 = vor.u32 %v3949, %v3947
        %v3953 = vshll.u32 %v3905, 16
        %v3955 = vrot.slane %v3953, 1
        %v3956 = vsel %vm398, %v3951, %v3955
        %v3957 = vshrl.u32 %v3905, 16
        %v3959 = vor.u32 %v3957, %v3955
        %v3961 = vshll.u32 %v3906, 16
        %v3963 = vrot.slane %v3961, 1
        %v3964 = vsel %vm398, %v3959, %v3963
        %v3965 = vshrl.u32 %v3906, 16
        %v3967 = vor.u32 %v3965, %v3963
        %v3969 = vshll.u32 %v3907, 16
        %v3971 = vrot.slane %v3969, 1
        %v3972 = vsel %vm398, %v3967, %v3971
        %v3973 = vshrl.u32 %v3907, 16
        %v3975 = vor.u32 %v3973, %v3971
        %v3977 = vshll.u32 %v3908, 16
        %v3979 = vrot.slane %v3977, 1
        %v3980 = vsel %vm398, %v3975, %v3979
        %v3981 = vshrl.u32 %v3908, 16
        %v3983 = vor.u32 %v3981, %v3979
        %v3985 = vshll.u32 %v3909, 16
        %v3987 = vrot.slane %v3985, 1
        %v3988 = vsel %vm398, %v3983, %v3987
        %v3989 = vshrl.u32 %v3909, 16
        %v3991 = vor.u32 %v3989, %v3987
        %v3993 = vshll.u32 %v3910, 16
        %v3995 = vrot.slane %v3993, 1
        %v3996 = vsel %vm398, %v3991, %v3995
        %v3997 = vshrl.u32 %v3910, 16
        %v3999 = vor.u32 %v3997, %v3995
        %v4001 = vshll.u32 %v3911, 16
        %v4003 = vrot.slane %v4001, 1
        %v4004 = vsel %vm398, %v3999, %v4003
        %v4005 = vshrl.u32 %v3911, 16
        %v4007 = vor.u32 %v4005, %v4003
        %v4009 = vshll.u32 %v3912, 16
        %v4011 = vrot.slane %v4009, 1
        %v4012 = vsel %vm398, %v4007, %v4011
        %v4013 = vshrl.u32 %v3912, 16
        %v4015 = vor.u32 %v4013, %v4011
        %v4017 = vshll.u32 %v3913, 16
        %v4019 = vrot.slane %v4017, 1
        %v4020 = vsel %vm398, %v4015, %v4019
        %v4021 = vshrl.u32 %v3913, 16
        %v4023 = vor.u32 %v4021, %v4019
        %v4025 = vshll.u32 %v3914, 16
        %v4027 = vrot.slane %v4025, 1
        %v4028 = vsel %vm398, %v4023, %v4027
        %v4029 = vshrl.u32 %v3914, 16
        %v4031 = vor.u32 %v4029, %v4027
        %v4033 = vshll.u32 %v3915, 16
        %v4035 = vrot.slane %v4033, 1
        %v4036 = vsel %vm398, %v4031, %v4035
        %v4037 = vshrl.u32 %v3915, 16
        %v4039 = vor.u32 %v4037, %v4035
        %v4041 = vshll.u32 %v3916, 16
        %v4043 = vrot.slane %v4041, 1
        %v4044 = vsel %vm398, %v4039, %v4043
        %v4045 = vshrl.u32 %v3916, 16
        %v4047 = vor.u32 %v4045, %v4043
        %v4049 = vshll.u32 %v3917, 16
        %v4051 = vrot.slane %v4049, 1
        %v4052 = vsel %vm398, %v4047, %v4051
        %v4053 = vshrl.u32 %v3917, 16
        %v4055 = vor.u32 %v4053, %v4051
        %v4057 = vshll.u32 %v3918, 16
        %v4059 = vrot.slane %v4057, 1
        %v4060 = vsel %vm398, %v4055, %v4059
        %v4061 = vshrl.u32 %v3918, 16
        %v4063 = vor.u32 %v4061, %v4059
        %v4065 = vshll.u32 %v3919, 16
        %v4067 = vrot.slane %v4065, 1
        %v4068 = vsel %vm398, %v4063, %v4067
        %v4069 = vshrl.u32 %v3919, 16
        %v4071 = vor.u32 %v4069, %v4067
        %v4073 = vshll.u32 %v3920, 16
        %v4075 = vrot.slane %v4073, 1
        %v4076 = vsel %vm398, %v4071, %v4075
        %v4079 = vunpack.c.l.b16 %v3821
        %v4080 = vunpack.c.l.b16 %v3822
        %v4081 = vpack.c.b16 %v4080, %v4079
        %v4083 = vsel %vm560, %v3932, 0
        %v4086 = vsel %vm560, %v3940, 0
        %v4089 = vsel %vm560, %v3948, 0
        %v4092 = vsel %vm560, %v3956, 0
        %v4095 = vsel %vm560, %v3964, 0
        %v4098 = vsel %vm560, %v3972, 0
        %v4101 = vsel %vm560, %v3980, 0
        %v4104 = vsel %vm560, %v3988, 0
        %v4107 = vsel %vm560, %v3996, 0
        %v4110 = vsel %vm560, %v4004, 0
        %v4113 = vsel %vm560, %v4012, 0
        %v4116 = vsel %vm560, %v4020, 0
        %v4119 = vsel %vm560, %v4028, 0
        %v4122 = vsel %vm560, %v4036, 0
        %v4125 = vsel %vm560, %v4044, 0
        %v4128 = vsel %vm560, %v4052, 0
        %v4131 = vsel %vm560, %v4060, 0
        %v4134 = vsel %vm560, %v4068, 0
        %v4137 = vsel %vm560, %v4076, 0
        %v4140 = vsel %vm618, %v4081, 0
        %4142 = vmatpush.bf16.msra.mxu0 0
        %4143 = vmatpush.bf16.msra.mxu0 0
        %4144 = vmatpush.bf16.msra.mxu0 0
        %4145 = vmatpush.bf16.msra.mxu0 0
        %4146 = vmatpush.bf16.msra.mxu0 0
        %4147 = vmatpush.bf16.msra.mxu0 0
        %4148 = vmatpush.bf16.msra.mxu0 0
        %4149 = vmatpush.bf16.msra.mxu0 %v4140
        %4150 = vmatmul.bf16.gmra.mxu0 %v4083
        %v4151 = vpop.f32.mrf.mxu0
        %v4152 = vadd.f32 0.0, %v4151
        %v4153 = vpop.f32.mrf.mxu0
        %v4154 = vadd.f32 0.0, %v4153
        %4155 = vmatmul.bf16.gmra.mxu0 %v4086
        %v4156 = vpop.f32.mrf.mxu0
        %v4157 = vadd.f32 0.0, %v4156
        %v4158 = vpop.f32.mrf.mxu0
        %v4159 = vadd.f32 0.0, %v4158
        %4160 = vmatmul.bf16.gmra.mxu0 %v4089
        %v4161 = vpop.f32.mrf.mxu0
        %v4162 = vadd.f32 0.0, %v4161
        %v4163 = vpop.f32.mrf.mxu0
        %v4164 = vadd.f32 0.0, %v4163
        %4165 = vmatmul.bf16.gmra.mxu0 %v4092
        %v4166 = vpop.f32.mrf.mxu0
        %v4167 = vadd.f32 0.0, %v4166
        %v4168 = vpop.f32.mrf.mxu0
        %v4169 = vadd.f32 0.0, %v4168
        %4170 = vmatmul.bf16.gmra.mxu0 %v4095
        %v4171 = vpop.f32.mrf.mxu0
        %v4172 = vadd.f32 0.0, %v4171
        %v4173 = vpop.f32.mrf.mxu0
        %v4174 = vadd.f32 0.0, %v4173
        %4175 = vmatmul.bf16.gmra.mxu0 %v4098
        %v4176 = vpop.f32.mrf.mxu0
        %v4177 = vadd.f32 0.0, %v4176
        %v4178 = vpop.f32.mrf.mxu0
        %v4179 = vadd.f32 0.0, %v4178
        %4180 = vmatmul.bf16.gmra.mxu0 %v4101
        %v4181 = vpop.f32.mrf.mxu0
        %v4182 = vadd.f32 0.0, %v4181
        %v4183 = vpop.f32.mrf.mxu0
        %v4184 = vadd.f32 0.0, %v4183
        %4185 = vmatmul.bf16.gmra.mxu0 %v4104
        %v4186 = vpop.f32.mrf.mxu0
        %v4187 = vadd.f32 0.0, %v4186
        %v4188 = vpop.f32.mrf.mxu0
        %v4189 = vadd.f32 0.0, %v4188
        %4190 = vmatmul.bf16.gmra.mxu0 %v4107
        %v4191 = vpop.f32.mrf.mxu0
        %v4192 = vadd.f32 0.0, %v4191
        %v4193 = vpop.f32.mrf.mxu0
        %v4194 = vadd.f32 0.0, %v4193
        %4195 = vmatmul.bf16.gmra.mxu0 %v4110
        %v4196 = vpop.f32.mrf.mxu0
        %v4197 = vadd.f32 0.0, %v4196
        %v4198 = vpop.f32.mrf.mxu0
        %v4199 = vadd.f32 0.0, %v4198
        %4200 = vmatmul.bf16.gmra.mxu0 %v4113
        %v4201 = vpop.f32.mrf.mxu0
        %v4202 = vadd.f32 0.0, %v4201
        %v4203 = vpop.f32.mrf.mxu0
        %v4204 = vadd.f32 0.0, %v4203
        %4205 = vmatmul.bf16.gmra.mxu0 %v4116
        %v4206 = vpop.f32.mrf.mxu0
        %v4207 = vadd.f32 0.0, %v4206
        %v4208 = vpop.f32.mrf.mxu0
        %v4209 = vadd.f32 0.0, %v4208
        %4210 = vmatmul.bf16.gmra.mxu0 %v4119
        %v4211 = vpop.f32.mrf.mxu0
        %v4212 = vadd.f32 0.0, %v4211
        %v4213 = vpop.f32.mrf.mxu0
        %v4214 = vadd.f32 0.0, %v4213
        %4215 = vmatmul.bf16.gmra.mxu0 %v4122
        %v4216 = vpop.f32.mrf.mxu0
        %v4217 = vadd.f32 0.0, %v4216
        %v4218 = vpop.f32.mrf.mxu0
        %v4219 = vadd.f32 0.0, %v4218
        %4220 = vmatmul.bf16.gmra.mxu0 %v4125
        %v4221 = vpop.f32.mrf.mxu0
        %v4222 = vadd.f32 0.0, %v4221
        %v4223 = vpop.f32.mrf.mxu0
        %v4224 = vadd.f32 0.0, %v4223
        %4225 = vmatmul.bf16.gmra.mxu0 %v4128
        %v4226 = vpop.f32.mrf.mxu0
        %v4227 = vadd.f32 0.0, %v4226
        %v4228 = vpop.f32.mrf.mxu0
        %v4229 = vadd.f32 0.0, %v4228
        %4230 = vmatmul.bf16.gmra.mxu0 %v4131
        %v4231 = vpop.f32.mrf.mxu0
        %v4232 = vadd.f32 0.0, %v4231
        %v4233 = vpop.f32.mrf.mxu0
        %v4234 = vadd.f32 0.0, %v4233
        %4235 = vmatmul.bf16.gmra.mxu0 %v4134
        %v4236 = vpop.f32.mrf.mxu0
        %v4237 = vadd.f32 0.0, %v4236
        %v4238 = vpop.f32.mrf.mxu0
        %v4239 = vadd.f32 0.0, %v4238
        %4240 = vmatmul.bf16.gmra.mxu0 %v4137
        %v4241 = vpop.f32.mrf.mxu0
        %v4242 = vadd.f32 0.0, %v4241
        %v4243 = vpop.f32.mrf.mxu0
        %v4244 = vadd.f32 0.0, %v4243
        %4245 = vdwg.mxu0
        %v4246 = vadd.f32 %v3743, %v4152
        %v4247 = vadd.f32 %v3744, %v4154
        %v4248 = vadd.f32 %v3745, %v4157
        %v4249 = vadd.f32 %v3746, %v4159
        %v4250 = vadd.f32 %v3747, %v4162
        %v4251 = vadd.f32 %v3748, %v4164
        %v4252 = vadd.f32 %v3749, %v4167
        %v4253 = vadd.f32 %v3750, %v4169
        %v4254 = vadd.f32 %v3751, %v4172
        %v4255 = vadd.f32 %v3752, %v4174
        %v4256 = vadd.f32 %v3753, %v4177
        %v4257 = vadd.f32 %v3754, %v4179
        %v4258 = vadd.f32 %v3755, %v4182
        %v4259 = vadd.f32 %v3756, %v4184
        %v4260 = vadd.f32 %v3757, %v4187
        %v4261 = vadd.f32 %v3758, %v4189
        %v4262 = vadd.f32 %v3759, %v4192
        %v4263 = vadd.f32 %v3760, %v4194
        %v4264 = vadd.f32 %v3761, %v4197
        %v4265 = vadd.f32 %v3762, %v4199
        %v4266 = vadd.f32 %v3763, %v4202
        %v4267 = vadd.f32 %v3764, %v4204
        %v4268 = vadd.f32 %v3765, %v4207
        %v4269 = vadd.f32 %v3766, %v4209
        %v4270 = vadd.f32 %v3767, %v4212
        %v4271 = vadd.f32 %v3768, %v4214
        %v4272 = vadd.f32 %v3769, %v4217
        %v4273 = vadd.f32 %v3770, %v4219
        %v4274 = vadd.f32 %v3771, %v4222
        %v4275 = vadd.f32 %v3772, %v4224
        %v4276 = vadd.f32 %v3773, %v4227
        %v4277 = vadd.f32 %v3774, %v4229
        %v4278 = vadd.f32 %v3775, %v4232
        %v4279 = vadd.f32 %v3776, %v4234
        %v4280 = vadd.f32 %v3777, %v4237
        %v4281 = vadd.f32 %v3778, %v4239
        %v4282 = vadd.f32 %v3779, %v4242
        %v4283 = vadd.f32 %v3780, %v4244
        %v4284 = vld [vmem:[%s244 + $0x1c] sm:$0xf]
        %v4285 = vld [vmem:[%s244 + $0x20] sm:$0xf]
        %v4286 = vld [vmem:[%s244 + $0x24] sm:$0xf]
        %v4287 = vld [vmem:[%s244 + $0x28] sm:$0xf]
        %v4288 = vld [vmem:[%s244 + $0x2c] sm:$0xf]
        %v4289 = vld [vmem:[%s244 + $0x30] sm:$0xf]
        %v4290 = vld [vmem:[%s244 + $0x34] sm:$0xf]
        %v4291 = vld [vmem:[%s244 + $0x38] sm:$0xf]
        %v4292 = vld [vmem:[%s244 + $0x3c] sm:$0xf]
        %v4293 = vld [vmem:[%s244 + $0x40] sm:$0xf]
        %v4294 = vld [vmem:[%s244 + $0x44] sm:$0xf]
        %v4295 = vld [vmem:[%s244 + $0x48] sm:$0xf]
        %v4296 = vld [vmem:[%s244 + $0x4c] sm:$0xf]
        %v4297 = vld [vmem:[%s244 + $0x50] sm:$0xf]
        %v4298 = vld [vmem:[%s244 + $0x54] sm:$0xf]
        %v4299 = vld [vmem:[%s244 + $0x58] sm:$0xf]
        %v4300 = vld [vmem:[%s244 + $0x5c] sm:$0xf]
        %v4301 = vld [vmem:[%s244 + $0x60] sm:$0xf]
        %v4302 = vld [vmem:[%s244 + $0x64] sm:$0xf]
        %v4303 = vld [vmem:[%s244 + $0x68] sm:$0xf]
        %v4304 = vld [vmem:[%s244 + $0x6c] sm:$0xf]
        %v4305 = vld [vmem:[%s244 + $0x70] sm:$0xf]
        %v4306 = vld [vmem:[%s244 + $0x74] sm:$0xf]
        %v4307 = vld [vmem:[%s244 + $0x78] sm:$0xf]
        %v4308 = vld [vmem:[%s244 + $0x7c] sm:$0xf]
        %v4309 = vld [vmem:[%s244 + $0x80] sm:$0xf]
        %v4310 = vld [vmem:[%s244 + $0x84] sm:$0xf]
        %v4311 = vld [vmem:[%s244 + $0x88] sm:$0xf]
        %v4312 = vld [vmem:[%s244 + $0x8c] sm:$0xf]
        %v4313 = vld [vmem:[%s244 + $0x90] sm:$0xf]
        %v4314 = vld [vmem:[%s244 + $0x94] sm:$0xf]
        %v4315 = vld [vmem:[%s244 + $0x98] sm:$0xf]
        %v4316 = vld [vmem:[%s244 + $0x9c] sm:$0xf]
        %v4317 = vld [vmem:[%s244 + $0xa0] sm:$0xf]
        %v4318 = vld [vmem:[%s244 + $0xa4] sm:$0xf]
        %v4319 = vld [vmem:[%s244 + $0xa8] sm:$0xf]
        %v4320 = vld [vmem:[%s244 + $0xac] sm:$0xf]
        %v4321 = vld [vmem:[%s244 + $0xb0] sm:$0xf]
        %v4322 = vld [vmem:[%s244 + $0xb4] sm:$0x1]
        %s4323 = scalar_lea.vmem %s248, 96
        %v4324 = vld [vmem:[%s4323] sm:$0xf]
        %v4325 = vld [vmem:[%s4323 + $0x4] sm:$0x3]
        %v4365 = vunpack.c.l.b16 %v4284
        %v4366 = vunpack.c.l.b16 %v4285
        %v4367 = vunpack.c.l.b16 %v4286
        %v4368 = vunpack.c.l.b16 %v4287
        %v4369 = vunpack.c.l.b16 %v4288
        %v4370 = vunpack.c.l.b16 %v4289
        %v4371 = vunpack.c.l.b16 %v4290
        %v4372 = vunpack.c.l.b16 %v4291
        %v4373 = vunpack.c.l.b16 %v4292
        %v4374 = vunpack.c.l.b16 %v4293
        %v4375 = vunpack.c.l.b16 %v4294
        %v4376 = vunpack.c.l.b16 %v4295
        %v4377 = vunpack.c.l.b16 %v4296
        %v4378 = vunpack.c.l.b16 %v4297
        %v4379 = vunpack.c.l.b16 %v4298
        %v4380 = vunpack.c.l.b16 %v4299
        %v4381 = vunpack.c.l.b16 %v4300
        %v4382 = vunpack.c.l.b16 %v4301
        %v4383 = vunpack.c.l.b16 %v4302
        %v4384 = vunpack.c.l.b16 %v4303
        %v4385 = vunpack.c.l.b16 %v4304
        %v4386 = vunpack.c.l.b16 %v4305
        %v4387 = vunpack.c.l.b16 %v4306
        %v4388 = vunpack.c.l.b16 %v4307
        %v4389 = vunpack.c.l.b16 %v4308
        %v4390 = vunpack.c.l.b16 %v4309
        %v4391 = vunpack.c.l.b16 %v4310
        %v4392 = vunpack.c.l.b16 %v4311
        %v4393 = vunpack.c.l.b16 %v4312
        %v4394 = vunpack.c.l.b16 %v4313
        %v4395 = vunpack.c.l.b16 %v4314
        %v4396 = vunpack.c.l.b16 %v4315
        %v4397 = vunpack.c.l.b16 %v4316
        %v4398 = vunpack.c.l.b16 %v4317
        %v4399 = vunpack.c.l.b16 %v4318
        %v4400 = vunpack.c.l.b16 %v4319
        %v4401 = vunpack.c.l.b16 %v4320
        %v4402 = vunpack.c.l.b16 %v4321
        %v4403 = vunpack.c.l.b16 %v4322
        %v4404 = vpack.c.b16 %v4366, %v4365
        %v4405 = vpack.c.b16 %v4368, %v4367
        %v4406 = vpack.c.b16 %v4370, %v4369
        %v4407 = vpack.c.b16 %v4372, %v4371
        %v4408 = vpack.c.b16 %v4374, %v4373
        %v4409 = vpack.c.b16 %v4376, %v4375
        %v4410 = vpack.c.b16 %v4378, %v4377
        %v4411 = vpack.c.b16 %v4380, %v4379
        %v4412 = vpack.c.b16 %v4382, %v4381
        %v4413 = vpack.c.b16 %v4384, %v4383
        %v4414 = vpack.c.b16 %v4386, %v4385
        %v4415 = vpack.c.b16 %v4388, %v4387
        %v4416 = vpack.c.b16 %v4390, %v4389
        %v4417 = vpack.c.b16 %v4392, %v4391
        %v4418 = vpack.c.b16 %v4394, %v4393
        %v4419 = vpack.c.b16 %v4396, %v4395
        %v4420 = vpack.c.b16 %v4398, %v4397
        %v4421 = vpack.c.b16 %v4400, %v4399
        %v4422 = vpack.c.b16 %v4402, %v4401
        %v4423 = vpack.c.b16 %v4403, %v4403
        %v4425 = vshrl.u32 %v4404, 16
        %v4427 = vshll.u32 %v4404, 16
        %v4429 = vrot.slane %v4427, 1
        %v4430 = vor.u32 %v4425, %v4429
        %v4432 = vshll.u32 %v4405, 16
        %v4434 = vrot.slane %v4432, 1
        %v4435 = vsel %vm398, %v4430, %v4434
        %v4436 = vshrl.u32 %v4405, 16
        %v4438 = vor.u32 %v4436, %v4434
        %v4440 = vshll.u32 %v4406, 16
        %v4442 = vrot.slane %v4440, 1
        %v4443 = vsel %vm398, %v4438, %v4442
        %v4444 = vshrl.u32 %v4406, 16
        %v4446 = vor.u32 %v4444, %v4442
        %v4448 = vshll.u32 %v4407, 16
        %v4450 = vrot.slane %v4448, 1
        %v4451 = vsel %vm398, %v4446, %v4450
        %v4452 = vshrl.u32 %v4407, 16
        %v4454 = vor.u32 %v4452, %v4450
        %v4456 = vshll.u32 %v4408, 16
        %v4458 = vrot.slane %v4456, 1
        %v4459 = vsel %vm398, %v4454, %v4458
        %v4460 = vshrl.u32 %v4408, 16
        %v4462 = vor.u32 %v4460, %v4458
        %v4464 = vshll.u32 %v4409, 16
        %v4466 = vrot.slane %v4464, 1
        %v4467 = vsel %vm398, %v4462, %v4466
        %v4468 = vshrl.u32 %v4409, 16
        %v4470 = vor.u32 %v4468, %v4466
        %v4472 = vshll.u32 %v4410, 16
        %v4474 = vrot.slane %v4472, 1
        %v4475 = vsel %vm398, %v4470, %v4474
        %v4476 = vshrl.u32 %v4410, 16
        %v4478 = vor.u32 %v4476, %v4474
        %v4480 = vshll.u32 %v4411, 16
        %v4482 = vrot.slane %v4480, 1
        %v4483 = vsel %vm398, %v4478, %v4482
        %v4484 = vshrl.u32 %v4411, 16
        %v4486 = vor.u32 %v4484, %v4482
        %v4488 = vshll.u32 %v4412, 16
        %v4490 = vrot.slane %v4488, 1
        %v4491 = vsel %vm398, %v4486, %v4490
        %v4492 = vshrl.u32 %v4412, 16
        %v4494 = vor.u32 %v4492, %v4490
        %v4496 = vshll.u32 %v4413, 16
        %v4498 = vrot.slane %v4496, 1
        %v4499 = vsel %vm398, %v4494, %v4498
        %v4500 = vshrl.u32 %v4413, 16
        %v4502 = vor.u32 %v4500, %v4498
        %v4504 = vshll.u32 %v4414, 16
        %v4506 = vrot.slane %v4504, 1
        %v4507 = vsel %vm398, %v4502, %v4506
        %v4508 = vshrl.u32 %v4414, 16
        %v4510 = vor.u32 %v4508, %v4506
        %v4512 = vshll.u32 %v4415, 16
        %v4514 = vrot.slane %v4512, 1
        %v4515 = vsel %vm398, %v4510, %v4514
        %v4516 = vshrl.u32 %v4415, 16
        %v4518 = vor.u32 %v4516, %v4514
        %v4520 = vshll.u32 %v4416, 16
        %v4522 = vrot.slane %v4520, 1
        %v4523 = vsel %vm398, %v4518, %v4522
        %v4524 = vshrl.u32 %v4416, 16
        %v4526 = vor.u32 %v4524, %v4522
        %v4528 = vshll.u32 %v4417, 16
        %v4530 = vrot.slane %v4528, 1
        %v4531 = vsel %vm398, %v4526, %v4530
        %v4532 = vshrl.u32 %v4417, 16
        %v4534 = vor.u32 %v4532, %v4530
        %v4536 = vshll.u32 %v4418, 16
        %v4538 = vrot.slane %v4536, 1
        %v4539 = vsel %vm398, %v4534, %v4538
        %v4540 = vshrl.u32 %v4418, 16
        %v4542 = vor.u32 %v4540, %v4538
        %v4544 = vshll.u32 %v4419, 16
        %v4546 = vrot.slane %v4544, 1
        %v4547 = vsel %vm398, %v4542, %v4546
        %v4548 = vshrl.u32 %v4419, 16
        %v4550 = vor.u32 %v4548, %v4546
        %v4552 = vshll.u32 %v4420, 16
        %v4554 = vrot.slane %v4552, 1
        %v4555 = vsel %vm398, %v4550, %v4554
        %v4556 = vshrl.u32 %v4420, 16
        %v4558 = vor.u32 %v4556, %v4554
        %v4560 = vshll.u32 %v4421, 16
        %v4562 = vrot.slane %v4560, 1
        %v4563 = vsel %vm398, %v4558, %v4562
        %v4564 = vshrl.u32 %v4421, 16
        %v4566 = vor.u32 %v4564, %v4562
        %v4568 = vshll.u32 %v4422, 16
        %v4570 = vrot.slane %v4568, 1
        %v4571 = vsel %vm398, %v4566, %v4570
        %v4572 = vshrl.u32 %v4422, 16
        %v4574 = vor.u32 %v4572, %v4570
        %v4576 = vshll.u32 %v4423, 16
        %v4578 = vrot.slane %v4576, 1
        %v4579 = vsel %vm398, %v4574, %v4578
        %v4582 = vunpack.c.l.b16 %v4324
        %v4583 = vunpack.c.l.b16 %v4325
        %v4584 = vpack.c.b16 %v4583, %v4582
        %v4586 = vsel %vm560, %v4435, 0
        %v4589 = vsel %vm560, %v4443, 0
        %v4592 = vsel %vm560, %v4451, 0
        %v4595 = vsel %vm560, %v4459, 0
        %v4598 = vsel %vm560, %v4467, 0
        %v4601 = vsel %vm560, %v4475, 0
        %v4604 = vsel %vm560, %v4483, 0
        %v4607 = vsel %vm560, %v4491, 0
        %v4610 = vsel %vm560, %v4499, 0
        %v4613 = vsel %vm560, %v4507, 0
        %v4616 = vsel %vm560, %v4515, 0
        %v4619 = vsel %vm560, %v4523, 0
        %v4622 = vsel %vm560, %v4531, 0
        %v4625 = vsel %vm560, %v4539, 0
        %v4628 = vsel %vm560, %v4547, 0
        %v4631 = vsel %vm560, %v4555, 0
        %v4634 = vsel %vm560, %v4563, 0
        %v4637 = vsel %vm560, %v4571, 0
        %v4640 = vsel %vm560, %v4579, 0
        %v4643 = vsel %vm618, %v4584, 0
        %4645 = vmatpush.bf16.msra.mxu0 0
        %4646 = vmatpush.bf16.msra.mxu0 0
        %4647 = vmatpush.bf16.msra.mxu0 0
        %4648 = vmatpush.bf16.msra.mxu0 0
        %4649 = vmatpush.bf16.msra.mxu0 0
        %4650 = vmatpush.bf16.msra.mxu0 0
        %4651 = vmatpush.bf16.msra.mxu0 0
        %4652 = vmatpush.bf16.msra.mxu0 %v4643
        %4653 = vmatmul.bf16.gmra.mxu0 %v4586
        %v4654 = vpop.f32.mrf.mxu0
        %v4655 = vadd.f32 0.0, %v4654
        %v4656 = vpop.f32.mrf.mxu0
        %v4657 = vadd.f32 0.0, %v4656
        %4658 = vmatmul.bf16.gmra.mxu0 %v4589
        %v4659 = vpop.f32.mrf.mxu0
        %v4660 = vadd.f32 0.0, %v4659
        %v4661 = vpop.f32.mrf.mxu0
        %v4662 = vadd.f32 0.0, %v4661
        %4663 = vmatmul.bf16.gmra.mxu0 %v4592
        %v4664 = vpop.f32.mrf.mxu0
        %v4665 = vadd.f32 0.0, %v4664
        %v4666 = vpop.f32.mrf.mxu0
        %v4667 = vadd.f32 0.0, %v4666
        %4668 = vmatmul.bf16.gmra.mxu0 %v4595
        %v4669 = vpop.f32.mrf.mxu0
        %v4670 = vadd.f32 0.0, %v4669
        %v4671 = vpop.f32.mrf.mxu0
        %v4672 = vadd.f32 0.0, %v4671
        %4673 = vmatmul.bf16.gmra.mxu0 %v4598
        %v4674 = vpop.f32.mrf.mxu0
        %v4675 = vadd.f32 0.0, %v4674
        %v4676 = vpop.f32.mrf.mxu0
        %v4677 = vadd.f32 0.0, %v4676
        %4678 = vmatmul.bf16.gmra.mxu0 %v4601
        %v4679 = vpop.f32.mrf.mxu0
        %v4680 = vadd.f32 0.0, %v4679
        %v4681 = vpop.f32.mrf.mxu0
        %v4682 = vadd.f32 0.0, %v4681
        %4683 = vmatmul.bf16.gmra.mxu0 %v4604
        %v4684 = vpop.f32.mrf.mxu0
        %v4685 = vadd.f32 0.0, %v4684
        %v4686 = vpop.f32.mrf.mxu0
        %v4687 = vadd.f32 0.0, %v4686
        %4688 = vmatmul.bf16.gmra.mxu0 %v4607
        %v4689 = vpop.f32.mrf.mxu0
        %v4690 = vadd.f32 0.0, %v4689
        %v4691 = vpop.f32.mrf.mxu0
        %v4692 = vadd.f32 0.0, %v4691
        %4693 = vmatmul.bf16.gmra.mxu0 %v4610
        %v4694 = vpop.f32.mrf.mxu0
        %v4695 = vadd.f32 0.0, %v4694
        %v4696 = vpop.f32.mrf.mxu0
        %v4697 = vadd.f32 0.0, %v4696
        %4698 = vmatmul.bf16.gmra.mxu0 %v4613
        %v4699 = vpop.f32.mrf.mxu0
        %v4700 = vadd.f32 0.0, %v4699
        %v4701 = vpop.f32.mrf.mxu0
        %v4702 = vadd.f32 0.0, %v4701
        %4703 = vmatmul.bf16.gmra.mxu0 %v4616
        %v4704 = vpop.f32.mrf.mxu0
        %v4705 = vadd.f32 0.0, %v4704
        %v4706 = vpop.f32.mrf.mxu0
        %v4707 = vadd.f32 0.0, %v4706
        %4708 = vmatmul.bf16.gmra.mxu0 %v4619
        %v4709 = vpop.f32.mrf.mxu0
        %v4710 = vadd.f32 0.0, %v4709
        %v4711 = vpop.f32.mrf.mxu0
        %v4712 = vadd.f32 0.0, %v4711
        %4713 = vmatmul.bf16.gmra.mxu0 %v4622
        %v4714 = vpop.f32.mrf.mxu0
        %v4715 = vadd.f32 0.0, %v4714
        %v4716 = vpop.f32.mrf.mxu0
        %v4717 = vadd.f32 0.0, %v4716
        %4718 = vmatmul.bf16.gmra.mxu0 %v4625
        %v4719 = vpop.f32.mrf.mxu0
        %v4720 = vadd.f32 0.0, %v4719
        %v4721 = vpop.f32.mrf.mxu0
        %v4722 = vadd.f32 0.0, %v4721
        %4723 = vmatmul.bf16.gmra.mxu0 %v4628
        %v4724 = vpop.f32.mrf.mxu0
        %v4725 = vadd.f32 0.0, %v4724
        %v4726 = vpop.f32.mrf.mxu0
        %v4727 = vadd.f32 0.0, %v4726
        %4728 = vmatmul.bf16.gmra.mxu0 %v4631
        %v4729 = vpop.f32.mrf.mxu0
        %v4730 = vadd.f32 0.0, %v4729
        %v4731 = vpop.f32.mrf.mxu0
        %v4732 = vadd.f32 0.0, %v4731
        %4733 = vmatmul.bf16.gmra.mxu0 %v4634
        %v4734 = vpop.f32.mrf.mxu0
        %v4735 = vadd.f32 0.0, %v4734
        %v4736 = vpop.f32.mrf.mxu0
        %v4737 = vadd.f32 0.0, %v4736
        %4738 = vmatmul.bf16.gmra.mxu0 %v4637
        %v4739 = vpop.f32.mrf.mxu0
        %v4740 = vadd.f32 0.0, %v4739
        %v4741 = vpop.f32.mrf.mxu0
        %v4742 = vadd.f32 0.0, %v4741
        %4743 = vmatmul.bf16.gmra.mxu0 %v4640
        %v4744 = vpop.f32.mrf.mxu0
        %v4745 = vadd.f32 0.0, %v4744
        %v4746 = vpop.f32.mrf.mxu0
        %v4747 = vadd.f32 0.0, %v4746
        %4748 = vdwg.mxu0
        %v4749 = vadd.f32 %v4246, %v4655
        %v4750 = vadd.f32 %v4247, %v4657
        %v4751 = vadd.f32 %v4248, %v4660
        %v4752 = vadd.f32 %v4249, %v4662
        %v4753 = vadd.f32 %v4250, %v4665
        %v4754 = vadd.f32 %v4251, %v4667
        %v4755 = vadd.f32 %v4252, %v4670
        %v4756 = vadd.f32 %v4253, %v4672
        %v4757 = vadd.f32 %v4254, %v4675
        %v4758 = vadd.f32 %v4255, %v4677
        %v4759 = vadd.f32 %v4256, %v4680
        %v4760 = vadd.f32 %v4257, %v4682
        %v4761 = vadd.f32 %v4258, %v4685
        %v4762 = vadd.f32 %v4259, %v4687
        %v4763 = vadd.f32 %v4260, %v4690
        %v4764 = vadd.f32 %v4261, %v4692
        %v4765 = vadd.f32 %v4262, %v4695
        %v4766 = vadd.f32 %v4263, %v4697
        %v4767 = vadd.f32 %v4264, %v4700
        %v4768 = vadd.f32 %v4265, %v4702
        %v4769 = vadd.f32 %v4266, %v4705
        %v4770 = vadd.f32 %v4267, %v4707
        %v4771 = vadd.f32 %v4268, %v4710
        %v4772 = vadd.f32 %v4269, %v4712
        %v4773 = vadd.f32 %v4270, %v4715
        %v4774 = vadd.f32 %v4271, %v4717
        %v4775 = vadd.f32 %v4272, %v4720
        %v4776 = vadd.f32 %v4273, %v4722
        %v4777 = vadd.f32 %v4274, %v4725
        %v4778 = vadd.f32 %v4275, %v4727
        %v4779 = vadd.f32 %v4276, %v4730
        %v4780 = vadd.f32 %v4277, %v4732
        %v4781 = vadd.f32 %v4278, %v4735
        %v4782 = vadd.f32 %v4279, %v4737
        %v4783 = vadd.f32 %v4280, %v4740
        %v4784 = vadd.f32 %v4281, %v4742
        %v4785 = vadd.f32 %v4282, %v4745
        %v4786 = vadd.f32 %v4283, %v4747
        %v4787 = vld [vmem:[%s244 + $0x1c] sm:$0xe]
        %s4788 = scalar_lea.vmem %s248, 104
        %v4789 = vld [vmem:[%s4788] sm:$0xf]
        %v4790 = vld [vmem:[%s4788 + $0x4] sm:$0x3]
        %v4792 = vunpack.c.l.b16 %v4787
        %v4793 = vpack.c.b16 %v4366, %v4792
        %v4794 = vrot.slane %v4793, 1
        %v4795 = vrot.slane %v4405, 1
        %v4796 = vsel %vm883, %v4794, %v4795
        %v4797 = vrot.slane %v4406, 1
        %v4798 = vsel %vm883, %v4795, %v4797
        %v4799 = vrot.slane %v4407, 1
        %v4800 = vsel %vm883, %v4797, %v4799
        %v4801 = vrot.slane %v4408, 1
        %v4802 = vsel %vm883, %v4799, %v4801
        %v4803 = vrot.slane %v4409, 1
        %v4804 = vsel %vm883, %v4801, %v4803
        %v4805 = vrot.slane %v4410, 1
        %v4806 = vsel %vm883, %v4803, %v4805
        %v4807 = vrot.slane %v4411, 1
        %v4808 = vsel %vm883, %v4805, %v4807
        %v4809 = vrot.slane %v4412, 1
        %v4810 = vsel %vm883, %v4807, %v4809
        %v4811 = vrot.slane %v4413, 1
        %v4812 = vsel %vm883, %v4809, %v4811
        %v4813 = vrot.slane %v4414, 1
        %v4814 = vsel %vm883, %v4811, %v4813
        %v4815 = vrot.slane %v4415, 1
        %v4816 = vsel %vm883, %v4813, %v4815
        %v4817 = vrot.slane %v4416, 1
        %v4818 = vsel %vm883, %v4815, %v4817
        %v4819 = vrot.slane %v4417, 1
        %v4820 = vsel %vm883, %v4817, %v4819
        %v4821 = vrot.slane %v4418, 1
        %v4822 = vsel %vm883, %v4819, %v4821
        %v4823 = vrot.slane %v4419, 1
        %v4824 = vsel %vm883, %v4821, %v4823
        %v4825 = vrot.slane %v4420, 1
        %v4826 = vsel %vm883, %v4823, %v4825
        %v4827 = vrot.slane %v4421, 1
        %v4828 = vsel %vm883, %v4825, %v4827
        %v4829 = vrot.slane %v4422, 1
        %v4830 = vsel %vm883, %v4827, %v4829
        %v4831 = vrot.slane %v4423, 1
        %v4832 = vsel %vm883, %v4829, %v4831
        %v4835 = vunpack.c.l.b16 %v4789
        %v4836 = vunpack.c.l.b16 %v4790
        %v4837 = vpack.c.b16 %v4836, %v4835
        %v4839 = vsel %vm560, %v4796, 0
        %v4842 = vsel %vm560, %v4798, 0
        %v4845 = vsel %vm560, %v4800, 0
        %v4848 = vsel %vm560, %v4802, 0
        %v4851 = vsel %vm560, %v4804, 0
        %v4854 = vsel %vm560, %v4806, 0
        %v4857 = vsel %vm560, %v4808, 0
        %v4860 = vsel %vm560, %v4810, 0
        %v4863 = vsel %vm560, %v4812, 0
        %v4866 = vsel %vm560, %v4814, 0
        %v4869 = vsel %vm560, %v4816, 0
        %v4872 = vsel %vm560, %v4818, 0
        %v4875 = vsel %vm560, %v4820, 0
        %v4878 = vsel %vm560, %v4822, 0
        %v4881 = vsel %vm560, %v4824, 0
        %v4884 = vsel %vm560, %v4826, 0
        %v4887 = vsel %vm560, %v4828, 0
        %v4890 = vsel %vm560, %v4830, 0
        %v4893 = vsel %vm560, %v4832, 0
        %v4896 = vsel %vm618, %v4837, 0
        %4898 = vmatpush.bf16.msra.mxu0 0
        %4899 = vmatpush.bf16.msra.mxu0 0
        %4900 = vmatpush.bf16.msra.mxu0 0
        %4901 = vmatpush.bf16.msra.mxu0 0
        %4902 = vmatpush.bf16.msra.mxu0 0
        %4903 = vmatpush.bf16.msra.mxu0 0
        %4904 = vmatpush.bf16.msra.mxu0 0
        %4905 = vmatpush.bf16.msra.mxu0 %v4896
        %4906 = vmatmul.bf16.gmra.mxu0 %v4839
        %v4907 = vpop.f32.mrf.mxu0
        %v4908 = vadd.f32 0.0, %v4907
        %v4909 = vpop.f32.mrf.mxu0
        %v4910 = vadd.f32 0.0, %v4909
        %4911 = vmatmul.bf16.gmra.mxu0 %v4842
        %v4912 = vpop.f32.mrf.mxu0
        %v4913 = vadd.f32 0.0, %v4912
        %v4914 = vpop.f32.mrf.mxu0
        %v4915 = vadd.f32 0.0, %v4914
        %4916 = vmatmul.bf16.gmra.mxu0 %v4845
        %v4917 = vpop.f32.mrf.mxu0
        %v4918 = vadd.f32 0.0, %v4917
        %v4919 = vpop.f32.mrf.mxu0
        %v4920 = vadd.f32 0.0, %v4919
        %4921 = vmatmul.bf16.gmra.mxu0 %v4848
        %v4922 = vpop.f32.mrf.mxu0
        %v4923 = vadd.f32 0.0, %v4922
        %v4924 = vpop.f32.mrf.mxu0
        %v4925 = vadd.f32 0.0, %v4924
        %4926 = vmatmul.bf16.gmra.mxu0 %v4851
        %v4927 = vpop.f32.mrf.mxu0
        %v4928 = vadd.f32 0.0, %v4927
        %v4929 = vpop.f32.mrf.mxu0
        %v4930 = vadd.f32 0.0, %v4929
        %4931 = vmatmul.bf16.gmra.mxu0 %v4854
        %v4932 = vpop.f32.mrf.mxu0
        %v4933 = vadd.f32 0.0, %v4932
        %v4934 = vpop.f32.mrf.mxu0
        %v4935 = vadd.f32 0.0, %v4934
        %4936 = vmatmul.bf16.gmra.mxu0 %v4857
        %v4937 = vpop.f32.mrf.mxu0
        %v4938 = vadd.f32 0.0, %v4937
        %v4939 = vpop.f32.mrf.mxu0
        %v4940 = vadd.f32 0.0, %v4939
        %4941 = vmatmul.bf16.gmra.mxu0 %v4860
        %v4942 = vpop.f32.mrf.mxu0
        %v4943 = vadd.f32 0.0, %v4942
        %v4944 = vpop.f32.mrf.mxu0
        %v4945 = vadd.f32 0.0, %v4944
        %4946 = vmatmul.bf16.gmra.mxu0 %v4863
        %v4947 = vpop.f32.mrf.mxu0
        %v4948 = vadd.f32 0.0, %v4947
        %v4949 = vpop.f32.mrf.mxu0
        %v4950 = vadd.f32 0.0, %v4949
        %4951 = vmatmul.bf16.gmra.mxu0 %v4866
        %v4952 = vpop.f32.mrf.mxu0
        %v4953 = vadd.f32 0.0, %v4952
        %v4954 = vpop.f32.mrf.mxu0
        %v4955 = vadd.f32 0.0, %v4954
        %4956 = vmatmul.bf16.gmra.mxu0 %v4869
        %v4957 = vpop.f32.mrf.mxu0
        %v4958 = vadd.f32 0.0, %v4957
        %v4959 = vpop.f32.mrf.mxu0
        %v4960 = vadd.f32 0.0, %v4959
        %4961 = vmatmul.bf16.gmra.mxu0 %v4872
        %v4962 = vpop.f32.mrf.mxu0
        %v4963 = vadd.f32 0.0, %v4962
        %v4964 = vpop.f32.mrf.mxu0
        %v4965 = vadd.f32 0.0, %v4964
        %4966 = vmatmul.bf16.gmra.mxu0 %v4875
        %v4967 = vpop.f32.mrf.mxu0
        %v4968 = vadd.f32 0.0, %v4967
        %v4969 = vpop.f32.mrf.mxu0
        %v4970 = vadd.f32 0.0, %v4969
        %4971 = vmatmul.bf16.gmra.mxu0 %v4878
        %v4972 = vpop.f32.mrf.mxu0
        %v4973 = vadd.f32 0.0, %v4972
        %v4974 = vpop.f32.mrf.mxu0
        %v4975 = vadd.f32 0.0, %v4974
        %4976 = vmatmul.bf16.gmra.mxu0 %v4881
        %v4977 = vpop.f32.mrf.mxu0
        %v4978 = vadd.f32 0.0, %v4977
        %v4979 = vpop.f32.mrf.mxu0
        %v4980 = vadd.f32 0.0, %v4979
        %4981 = vmatmul.bf16.gmra.mxu0 %v4884
        %v4982 = vpop.f32.mrf.mxu0
        %v4983 = vadd.f32 0.0, %v4982
        %v4984 = vpop.f32.mrf.mxu0
        %v4985 = vadd.f32 0.0, %v4984
        %4986 = vmatmul.bf16.gmra.mxu0 %v4887
        %v4987 = vpop.f32.mrf.mxu0
        %v4988 = vadd.f32 0.0, %v4987
        %v4989 = vpop.f32.mrf.mxu0
        %v4990 = vadd.f32 0.0, %v4989
        %4991 = vmatmul.bf16.gmra.mxu0 %v4890
        %v4992 = vpop.f32.mrf.mxu0
        %v4993 = vadd.f32 0.0, %v4992
        %v4994 = vpop.f32.mrf.mxu0
        %v4995 = vadd.f32 0.0, %v4994
        %4996 = vmatmul.bf16.gmra.mxu0 %v4893
        %v4997 = vpop.f32.mrf.mxu0
        %v4998 = vadd.f32 0.0, %v4997
        %v4999 = vpop.f32.mrf.mxu0
        %v5000 = vadd.f32 0.0, %v4999
        %5001 = vdwg.mxu0
        %v5002 = vadd.f32 %v4749, %v4908
        %v5003 = vadd.f32 %v4750, %v4910
        %v5004 = vadd.f32 %v4751, %v4913
        %v5005 = vadd.f32 %v4752, %v4915
        %v5006 = vadd.f32 %v4753, %v4918
        %v5007 = vadd.f32 %v4754, %v4920
        %v5008 = vadd.f32 %v4755, %v4923
        %v5009 = vadd.f32 %v4756, %v4925
        %v5010 = vadd.f32 %v4757, %v4928
        %v5011 = vadd.f32 %v4758, %v4930
        %v5012 = vadd.f32 %v4759, %v4933
        %v5013 = vadd.f32 %v4760, %v4935
        %v5014 = vadd.f32 %v4761, %v4938
        %v5015 = vadd.f32 %v4762, %v4940
        %v5016 = vadd.f32 %v4763, %v4943
        %v5017 = vadd.f32 %v4764, %v4945
        %v5018 = vadd.f32 %v4765, %v4948
        %v5019 = vadd.f32 %v4766, %v4950
        %v5020 = vadd.f32 %v4767, %v4953
        %v5021 = vadd.f32 %v4768, %v4955
        %v5022 = vadd.f32 %v4769, %v4958
        %v5023 = vadd.f32 %v4770, %v4960
        %v5024 = vadd.f32 %v4771, %v4963
        %v5025 = vadd.f32 %v4772, %v4965
        %v5026 = vadd.f32 %v4773, %v4968
        %v5027 = vadd.f32 %v4774, %v4970
        %v5028 = vadd.f32 %v4775, %v4973
        %v5029 = vadd.f32 %v4776, %v4975
        %v5030 = vadd.f32 %v4777, %v4978
        %v5031 = vadd.f32 %v4778, %v4980
        %v5032 = vadd.f32 %v4779, %v4983
        %v5033 = vadd.f32 %v4780, %v4985
        %v5034 = vadd.f32 %v4781, %v4988
        %v5035 = vadd.f32 %v4782, %v4990
        %v5036 = vadd.f32 %v4783, %v4993
        %v5037 = vadd.f32 %v4784, %v4995
        %v5038 = vadd.f32 %v4785, %v4998
        %v5039 = vadd.f32 %v4786, %v5000
        %v5040 = vld [vmem:[%s244 + $0xb4] sm:$0x3]
        %s5041 = scalar_lea.vmem %s248, 112
        %v5042 = vld [vmem:[%s5041] sm:$0xf]
        %v5043 = vld [vmem:[%s5041 + $0x4] sm:$0x3]
        %v5045 = vunpack.c.l.b16 %v5040
        %v5046 = vpack.c.b16 %v5045, %v5045
        %v5048 = vshrl.u32 %v4793, 16
        %v5050 = vrot.slane %v5048, 1
        %v5051 = vshll.u32 %v4793, 16
        %v5053 = vrot.slane %v5051, 2
        %v5054 = vor.u32 %v5050, %v5053
        %v5055 = vrot.slane %v4436, 1
        %v5056 = vrot.slane %v4432, 2
        %v5057 = vor.u32 %v5055, %v5056
        %v5058 = vsel %vm1137, %v5054, %v5057
        %v5059 = vrot.slane %v4444, 1
        %v5060 = vrot.slane %v4440, 2
        %v5061 = vor.u32 %v5059, %v5060
        %v5062 = vsel %vm1137, %v5057, %v5061
        %v5063 = vrot.slane %v4452, 1
        %v5064 = vrot.slane %v4448, 2
        %v5065 = vor.u32 %v5063, %v5064
        %v5066 = vsel %vm1137, %v5061, %v5065
        %v5067 = vrot.slane %v4460, 1
        %v5068 = vrot.slane %v4456, 2
        %v5069 = vor.u32 %v5067, %v5068
        %v5070 = vsel %vm1137, %v5065, %v5069
        %v5071 = vrot.slane %v4468, 1
        %v5072 = vrot.slane %v4464, 2
        %v5073 = vor.u32 %v5071, %v5072
        %v5074 = vsel %vm1137, %v5069, %v5073
        %v5075 = vrot.slane %v4476, 1
        %v5076 = vrot.slane %v4472, 2
        %v5077 = vor.u32 %v5075, %v5076
        %v5078 = vsel %vm1137, %v5073, %v5077
        %v5079 = vrot.slane %v4484, 1
        %v5080 = vrot.slane %v4480, 2
        %v5081 = vor.u32 %v5079, %v5080
        %v5082 = vsel %vm1137, %v5077, %v5081
        %v5083 = vrot.slane %v4492, 1
        %v5084 = vrot.slane %v4488, 2
        %v5085 = vor.u32 %v5083, %v5084
        %v5086 = vsel %vm1137, %v5081, %v5085
        %v5087 = vrot.slane %v4500, 1
        %v5088 = vrot.slane %v4496, 2
        %v5089 = vor.u32 %v5087, %v5088
        %v5090 = vsel %vm1137, %v5085, %v5089
        %v5091 = vrot.slane %v4508, 1
        %v5092 = vrot.slane %v4504, 2
        %v5093 = vor.u32 %v5091, %v5092
        %v5094 = vsel %vm1137, %v5089, %v5093
        %v5095 = vrot.slane %v4516, 1
        %v5096 = vrot.slane %v4512, 2
        %v5097 = vor.u32 %v5095, %v5096
        %v5098 = vsel %vm1137, %v5093, %v5097
        %v5099 = vrot.slane %v4524, 1
        %v5100 = vrot.slane %v4520, 2
        %v5101 = vor.u32 %v5099, %v5100
        %v5102 = vsel %vm1137, %v5097, %v5101
        %v5103 = vrot.slane %v4532, 1
        %v5104 = vrot.slane %v4528, 2
        %v5105 = vor.u32 %v5103, %v5104
        %v5106 = vsel %vm1137, %v5101, %v5105
        %v5107 = vrot.slane %v4540, 1
        %v5108 = vrot.slane %v4536, 2
        %v5109 = vor.u32 %v5107, %v5108
        %v5110 = vsel %vm1137, %v5105, %v5109
        %v5111 = vrot.slane %v4548, 1
        %v5112 = vrot.slane %v4544, 2
        %v5113 = vor.u32 %v5111, %v5112
        %v5114 = vsel %vm1137, %v5109, %v5113
        %v5115 = vrot.slane %v4556, 1
        %v5116 = vrot.slane %v4552, 2
        %v5117 = vor.u32 %v5115, %v5116
        %v5118 = vsel %vm1137, %v5113, %v5117
        %v5119 = vrot.slane %v4564, 1
        %v5120 = vrot.slane %v4560, 2
        %v5121 = vor.u32 %v5119, %v5120
        %v5122 = vsel %vm1137, %v5117, %v5121
        %v5123 = vrot.slane %v4572, 1
        %v5124 = vrot.slane %v4568, 2
        %v5125 = vor.u32 %v5123, %v5124
        %v5126 = vsel %vm1137, %v5121, %v5125
        %v5128 = vshrl.u32 %v5046, 16
        %v5130 = vrot.slane %v5128, 1
        %v5131 = vshll.u32 %v5046, 16
        %v5133 = vrot.slane %v5131, 2
        %v5134 = vor.u32 %v5130, %v5133
        %v5135 = vsel %vm1137, %v5125, %v5134
        %v5138 = vunpack.c.l.b16 %v5042
        %v5139 = vunpack.c.l.b16 %v5043
        %v5140 = vpack.c.b16 %v5139, %v5138
        %v5142 = vsel %vm560, %v5058, 0
        %v5145 = vsel %vm560, %v5062, 0
        %v5148 = vsel %vm560, %v5066, 0
        %v5151 = vsel %vm560, %v5070, 0
        %v5154 = vsel %vm560, %v5074, 0
        %v5157 = vsel %vm560, %v5078, 0
        %v5160 = vsel %vm560, %v5082, 0
        %v5163 = vsel %vm560, %v5086, 0
        %v5166 = vsel %vm560, %v5090, 0
        %v5169 = vsel %vm560, %v5094, 0
        %v5172 = vsel %vm560, %v5098, 0
        %v5175 = vsel %vm560, %v5102, 0
        %v5178 = vsel %vm560, %v5106, 0
        %v5181 = vsel %vm560, %v5110, 0
        %v5184 = vsel %vm560, %v5114, 0
        %v5187 = vsel %vm560, %v5118, 0
        %v5190 = vsel %vm560, %v5122, 0
        %v5193 = vsel %vm560, %v5126, 0
        %v5196 = vsel %vm560, %v5135, 0
        %v5199 = vsel %vm618, %v5140, 0
        %5201 = vmatpush.bf16.msra.mxu0 0
        %5202 = vmatpush.bf16.msra.mxu0 0
        %5203 = vmatpush.bf16.msra.mxu0 0
        %5204 = vmatpush.bf16.msra.mxu0 0
        %5205 = vmatpush.bf16.msra.mxu0 0
        %5206 = vmatpush.bf16.msra.mxu0 0
        %5207 = vmatpush.bf16.msra.mxu0 0
        %5208 = vmatpush.bf16.msra.mxu0 %v5199
        %5209 = vmatmul.bf16.gmra.mxu0 %v5142
        %v5210 = vpop.f32.mrf.mxu0
        %v5211 = vadd.f32 0.0, %v5210
        %v5212 = vpop.f32.mrf.mxu0
        %v5213 = vadd.f32 0.0, %v5212
        %5214 = vmatmul.bf16.gmra.mxu0 %v5145
        %v5215 = vpop.f32.mrf.mxu0
        %v5216 = vadd.f32 0.0, %v5215
        %v5217 = vpop.f32.mrf.mxu0
        %v5218 = vadd.f32 0.0, %v5217
        %5219 = vmatmul.bf16.gmra.mxu0 %v5148
        %v5220 = vpop.f32.mrf.mxu0
        %v5221 = vadd.f32 0.0, %v5220
        %v5222 = vpop.f32.mrf.mxu0
        %v5223 = vadd.f32 0.0, %v5222
        %5224 = vmatmul.bf16.gmra.mxu0 %v5151
        %v5225 = vpop.f32.mrf.mxu0
        %v5226 = vadd.f32 0.0, %v5225
        %v5227 = vpop.f32.mrf.mxu0
        %v5228 = vadd.f32 0.0, %v5227
        %5229 = vmatmul.bf16.gmra.mxu0 %v5154
        %v5230 = vpop.f32.mrf.mxu0
        %v5231 = vadd.f32 0.0, %v5230
        %v5232 = vpop.f32.mrf.mxu0
        %v5233 = vadd.f32 0.0, %v5232
        %5234 = vmatmul.bf16.gmra.mxu0 %v5157
        %v5235 = vpop.f32.mrf.mxu0
        %v5236 = vadd.f32 0.0, %v5235
        %v5237 = vpop.f32.mrf.mxu0
        %v5238 = vadd.f32 0.0, %v5237
        %5239 = vmatmul.bf16.gmra.mxu0 %v5160
        %v5240 = vpop.f32.mrf.mxu0
        %v5241 = vadd.f32 0.0, %v5240
        %v5242 = vpop.f32.mrf.mxu0
        %v5243 = vadd.f32 0.0, %v5242
        %5244 = vmatmul.bf16.gmra.mxu0 %v5163
        %v5245 = vpop.f32.mrf.mxu0
        %v5246 = vadd.f32 0.0, %v5245
        %v5247 = vpop.f32.mrf.mxu0
        %v5248 = vadd.f32 0.0, %v5247
        %5249 = vmatmul.bf16.gmra.mxu0 %v5166
        %v5250 = vpop.f32.mrf.mxu0
        %v5251 = vadd.f32 0.0, %v5250
        %v5252 = vpop.f32.mrf.mxu0
        %v5253 = vadd.f32 0.0, %v5252
        %5254 = vmatmul.bf16.gmra.mxu0 %v5169
        %v5255 = vpop.f32.mrf.mxu0
        %v5256 = vadd.f32 0.0, %v5255
        %v5257 = vpop.f32.mrf.mxu0
        %v5258 = vadd.f32 0.0, %v5257
        %5259 = vmatmul.bf16.gmra.mxu0 %v5172
        %v5260 = vpop.f32.mrf.mxu0
        %v5261 = vadd.f32 0.0, %v5260
        %v5262 = vpop.f32.mrf.mxu0
        %v5263 = vadd.f32 0.0, %v5262
        %5264 = vmatmul.bf16.gmra.mxu0 %v5175
        %v5265 = vpop.f32.mrf.mxu0
        %v5266 = vadd.f32 0.0, %v5265
        %v5267 = vpop.f32.mrf.mxu0
        %v5268 = vadd.f32 0.0, %v5267
        %5269 = vmatmul.bf16.gmra.mxu0 %v5178
        %v5270 = vpop.f32.mrf.mxu0
        %v5271 = vadd.f32 0.0, %v5270
        %v5272 = vpop.f32.mrf.mxu0
        %v5273 = vadd.f32 0.0, %v5272
        %5274 = vmatmul.bf16.gmra.mxu0 %v5181
        %v5275 = vpop.f32.mrf.mxu0
        %v5276 = vadd.f32 0.0, %v5275
        %v5277 = vpop.f32.mrf.mxu0
        %v5278 = vadd.f32 0.0, %v5277
        %5279 = vmatmul.bf16.gmra.mxu0 %v5184
        %v5280 = vpop.f32.mrf.mxu0
        %v5281 = vadd.f32 0.0, %v5280
        %v5282 = vpop.f32.mrf.mxu0
        %v5283 = vadd.f32 0.0, %v5282
        %5284 = vmatmul.bf16.gmra.mxu0 %v5187
        %v5285 = vpop.f32.mrf.mxu0
        %v5286 = vadd.f32 0.0, %v5285
        %v5287 = vpop.f32.mrf.mxu0
        %v5288 = vadd.f32 0.0, %v5287
        %5289 = vmatmul.bf16.gmra.mxu0 %v5190
        %v5290 = vpop.f32.mrf.mxu0
        %v5291 = vadd.f32 0.0, %v5290
        %v5292 = vpop.f32.mrf.mxu0
        %v5293 = vadd.f32 0.0, %v5292
        %5294 = vmatmul.bf16.gmra.mxu0 %v5193
        %v5295 = vpop.f32.mrf.mxu0
        %v5296 = vadd.f32 0.0, %v5295
        %v5297 = vpop.f32.mrf.mxu0
        %v5298 = vadd.f32 0.0, %v5297
        %5299 = vmatmul.bf16.gmra.mxu0 %v5196
        %v5300 = vpop.f32.mrf.mxu0
        %v5301 = vadd.f32 0.0, %v5300
        %v5302 = vpop.f32.mrf.mxu0
        %v5303 = vadd.f32 0.0, %v5302
        %5304 = vdwg.mxu0
        %v5305 = vadd.f32 %v5002, %v5211
        %v5306 = vadd.f32 %v5003, %v5213
        %v5307 = vadd.f32 %v5004, %v5216
        %v5308 = vadd.f32 %v5005, %v5218
        %v5309 = vadd.f32 %v5006, %v5221
        %v5310 = vadd.f32 %v5007, %v5223
        %v5311 = vadd.f32 %v5008, %v5226
        %v5312 = vadd.f32 %v5009, %v5228
        %v5313 = vadd.f32 %v5010, %v5231
        %v5314 = vadd.f32 %v5011, %v5233
        %v5315 = vadd.f32 %v5012, %v5236
        %v5316 = vadd.f32 %v5013, %v5238
        %v5317 = vadd.f32 %v5014, %v5241
        %v5318 = vadd.f32 %v5015, %v5243
        %v5319 = vadd.f32 %v5016, %v5246
        %v5320 = vadd.f32 %v5017, %v5248
        %v5321 = vadd.f32 %v5018, %v5251
        %v5322 = vadd.f32 %v5019, %v5253
        %v5323 = vadd.f32 %v5020, %v5256
        %v5324 = vadd.f32 %v5021, %v5258
        %v5325 = vadd.f32 %v5022, %v5261
        %v5326 = vadd.f32 %v5023, %v5263
        %v5327 = vadd.f32 %v5024, %v5266
        %v5328 = vadd.f32 %v5025, %v5268
        %v5329 = vadd.f32 %v5026, %v5271
        %v5330 = vadd.f32 %v5027, %v5273
        %v5331 = vadd.f32 %v5028, %v5276
        %v5332 = vadd.f32 %v5029, %v5278
        %v5333 = vadd.f32 %v5030, %v5281
        %v5334 = vadd.f32 %v5031, %v5283
        %v5335 = vadd.f32 %v5032, %v5286
        %v5336 = vadd.f32 %v5033, %v5288
        %v5337 = vadd.f32 %v5034, %v5291
        %v5338 = vadd.f32 %v5035, %v5293
        %v5339 = vadd.f32 %v5036, %v5296
        %v5340 = vadd.f32 %v5037, %v5298
        %v5341 = vadd.f32 %v5038, %v5301
        %v5342 = vadd.f32 %v5039, %v5303
        %v5343 = vld [vmem:[%s244 + $0x1c] sm:$0xc]
        %s5344 = scalar_lea.vmem %s248, 120
        %v5345 = vld [vmem:[%s5344] sm:$0xf]
        %v5346 = vld [vmem:[%s5344 + $0x4] sm:$0x3]
        %v5348 = vunpack.c.l.b16 %v5343
        %v5349 = vpack.c.b16 %v4366, %v5348
        %v5350 = vrot.slane %v5349, 2
        %v5351 = vrot.slane %v4405, 2
        %v5352 = vsel %vm1967, %v5350, %v5351
        %v5353 = vrot.slane %v4406, 2
        %v5354 = vsel %vm1967, %v5351, %v5353
        %v5355 = vrot.slane %v4407, 2
        %v5356 = vsel %vm1967, %v5353, %v5355
        %v5357 = vrot.slane %v4408, 2
        %v5358 = vsel %vm1967, %v5355, %v5357
        %v5359 = vrot.slane %v4409, 2
        %v5360 = vsel %vm1967, %v5357, %v5359
        %v5361 = vrot.slane %v4410, 2
        %v5362 = vsel %vm1967, %v5359, %v5361
        %v5363 = vrot.slane %v4411, 2
        %v5364 = vsel %vm1967, %v5361, %v5363
        %v5365 = vrot.slane %v4412, 2
        %v5366 = vsel %vm1967, %v5363, %v5365
        %v5367 = vrot.slane %v4413, 2
        %v5368 = vsel %vm1967, %v5365, %v5367
        %v5369 = vrot.slane %v4414, 2
        %v5370 = vsel %vm1967, %v5367, %v5369
        %v5371 = vrot.slane %v4415, 2
        %v5372 = vsel %vm1967, %v5369, %v5371
        %v5373 = vrot.slane %v4416, 2
        %v5374 = vsel %vm1967, %v5371, %v5373
        %v5375 = vrot.slane %v4417, 2
        %v5376 = vsel %vm1967, %v5373, %v5375
        %v5377 = vrot.slane %v4418, 2
        %v5378 = vsel %vm1967, %v5375, %v5377
        %v5379 = vrot.slane %v4419, 2
        %v5380 = vsel %vm1967, %v5377, %v5379
        %v5381 = vrot.slane %v4420, 2
        %v5382 = vsel %vm1967, %v5379, %v5381
        %v5383 = vrot.slane %v4421, 2
        %v5384 = vsel %vm1967, %v5381, %v5383
        %v5385 = vrot.slane %v4422, 2
        %v5386 = vsel %vm1967, %v5383, %v5385
        %v5387 = vrot.slane %v5046, 2
        %v5388 = vsel %vm1967, %v5385, %v5387
        %v5391 = vunpack.c.l.b16 %v5345
        %v5392 = vunpack.c.l.b16 %v5346
        %v5393 = vpack.c.b16 %v5392, %v5391
        %v5395 = vsel %vm560, %v5352, 0
        %v5398 = vsel %vm560, %v5354, 0
        %v5401 = vsel %vm560, %v5356, 0
        %v5404 = vsel %vm560, %v5358, 0
        %v5407 = vsel %vm560, %v5360, 0
        %v5410 = vsel %vm560, %v5362, 0
        %v5413 = vsel %vm560, %v5364, 0
        %v5416 = vsel %vm560, %v5366, 0
        %v5419 = vsel %vm560, %v5368, 0
        %v5422 = vsel %vm560, %v5370, 0
        %v5425 = vsel %vm560, %v5372, 0
        %v5428 = vsel %vm560, %v5374, 0
        %v5431 = vsel %vm560, %v5376, 0
        %v5434 = vsel %vm560, %v5378, 0
        %v5437 = vsel %vm560, %v5380, 0
        %v5440 = vsel %vm560, %v5382, 0
        %v5443 = vsel %vm560, %v5384, 0
        %v5446 = vsel %vm560, %v5386, 0
        %v5449 = vsel %vm560, %v5388, 0
        %v5452 = vsel %vm618, %v5393, 0
        %5454 = vmatpush.bf16.msra.mxu0 0
        %5455 = vmatpush.bf16.msra.mxu0 0
        %5456 = vmatpush.bf16.msra.mxu0 0
        %5457 = vmatpush.bf16.msra.mxu0 0
        %5458 = vmatpush.bf16.msra.mxu0 0
        %5459 = vmatpush.bf16.msra.mxu0 0
        %5460 = vmatpush.bf16.msra.mxu0 0
        %5461 = vmatpush.bf16.msra.mxu0 %v5452
        %5462 = vmatmul.bf16.gmra.mxu0 %v5395
        %v5463 = vpop.f32.mrf.mxu0
        %v5464 = vadd.f32 0.0, %v5463
        %v5465 = vpop.f32.mrf.mxu0
        %v5466 = vadd.f32 0.0, %v5465
        %5467 = vmatmul.bf16.gmra.mxu0 %v5398
        %v5468 = vpop.f32.mrf.mxu0
        %v5469 = vadd.f32 0.0, %v5468
        %v5470 = vpop.f32.mrf.mxu0
        %v5471 = vadd.f32 0.0, %v5470
        %5472 = vmatmul.bf16.gmra.mxu0 %v5401
        %v5473 = vpop.f32.mrf.mxu0
        %v5474 = vadd.f32 0.0, %v5473
        %v5475 = vpop.f32.mrf.mxu0
        %v5476 = vadd.f32 0.0, %v5475
        %5477 = vmatmul.bf16.gmra.mxu0 %v5404
        %v5478 = vpop.f32.mrf.mxu0
        %v5479 = vadd.f32 0.0, %v5478
        %v5480 = vpop.f32.mrf.mxu0
        %v5481 = vadd.f32 0.0, %v5480
        %5482 = vmatmul.bf16.gmra.mxu0 %v5407
        %v5483 = vpop.f32.mrf.mxu0
        %v5484 = vadd.f32 0.0, %v5483
        %v5485 = vpop.f32.mrf.mxu0
        %v5486 = vadd.f32 0.0, %v5485
        %5487 = vmatmul.bf16.gmra.mxu0 %v5410
        %v5488 = vpop.f32.mrf.mxu0
        %v5489 = vadd.f32 0.0, %v5488
        %v5490 = vpop.f32.mrf.mxu0
        %v5491 = vadd.f32 0.0, %v5490
        %5492 = vmatmul.bf16.gmra.mxu0 %v5413
        %v5493 = vpop.f32.mrf.mxu0
        %v5494 = vadd.f32 0.0, %v5493
        %v5495 = vpop.f32.mrf.mxu0
        %v5496 = vadd.f32 0.0, %v5495
        %5497 = vmatmul.bf16.gmra.mxu0 %v5416
        %v5498 = vpop.f32.mrf.mxu0
        %v5499 = vadd.f32 0.0, %v5498
        %v5500 = vpop.f32.mrf.mxu0
        %v5501 = vadd.f32 0.0, %v5500
        %5502 = vmatmul.bf16.gmra.mxu0 %v5419
        %v5503 = vpop.f32.mrf.mxu0
        %v5504 = vadd.f32 0.0, %v5503
        %v5505 = vpop.f32.mrf.mxu0
        %v5506 = vadd.f32 0.0, %v5505
        %5507 = vmatmul.bf16.gmra.mxu0 %v5422
        %v5508 = vpop.f32.mrf.mxu0
        %v5509 = vadd.f32 0.0, %v5508
        %v5510 = vpop.f32.mrf.mxu0
        %v5511 = vadd.f32 0.0, %v5510
        %5512 = vmatmul.bf16.gmra.mxu0 %v5425
        %v5513 = vpop.f32.mrf.mxu0
        %v5514 = vadd.f32 0.0, %v5513
        %v5515 = vpop.f32.mrf.mxu0
        %v5516 = vadd.f32 0.0, %v5515
        %5517 = vmatmul.bf16.gmra.mxu0 %v5428
        %v5518 = vpop.f32.mrf.mxu0
        %v5519 = vadd.f32 0.0, %v5518
        %v5520 = vpop.f32.mrf.mxu0
        %v5521 = vadd.f32 0.0, %v5520
        %5522 = vmatmul.bf16.gmra.mxu0 %v5431
        %v5523 = vpop.f32.mrf.mxu0
        %v5524 = vadd.f32 0.0, %v5523
        %v5525 = vpop.f32.mrf.mxu0
        %v5526 = vadd.f32 0.0, %v5525
        %5527 = vmatmul.bf16.gmra.mxu0 %v5434
        %v5528 = vpop.f32.mrf.mxu0
        %v5529 = vadd.f32 0.0, %v5528
        %v5530 = vpop.f32.mrf.mxu0
        %v5531 = vadd.f32 0.0, %v5530
        %5532 = vmatmul.bf16.gmra.mxu0 %v5437
        %v5533 = vpop.f32.mrf.mxu0
        %v5534 = vadd.f32 0.0, %v5533
        %v5535 = vpop.f32.mrf.mxu0
        %v5536 = vadd.f32 0.0, %v5535
        %5537 = vmatmul.bf16.gmra.mxu0 %v5440
        %v5538 = vpop.f32.mrf.mxu0
        %v5539 = vadd.f32 0.0, %v5538
        %v5540 = vpop.f32.mrf.mxu0
        %v5541 = vadd.f32 0.0, %v5540
        %5542 = vmatmul.bf16.gmra.mxu0 %v5443
        %v5543 = vpop.f32.mrf.mxu0
        %v5544 = vadd.f32 0.0, %v5543
        %v5545 = vpop.f32.mrf.mxu0
        %v5546 = vadd.f32 0.0, %v5545
        %5547 = vmatmul.bf16.gmra.mxu0 %v5446
        %v5548 = vpop.f32.mrf.mxu0
        %v5549 = vadd.f32 0.0, %v5548
        %v5550 = vpop.f32.mrf.mxu0
        %v5551 = vadd.f32 0.0, %v5550
        %5552 = vmatmul.bf16.gmra.mxu0 %v5449
        %v5553 = vpop.f32.mrf.mxu0
        %v5554 = vadd.f32 0.0, %v5553
        %v5555 = vpop.f32.mrf.mxu0
        %v5556 = vadd.f32 0.0, %v5555
        %5557 = vdwg.mxu0
        %v5558 = vadd.f32 %v5305, %v5464
        %v5559 = vadd.f32 %v5306, %v5466
        %v5560 = vadd.f32 %v5307, %v5469
        %v5561 = vadd.f32 %v5308, %v5471
        %v5562 = vadd.f32 %v5309, %v5474
        %v5563 = vadd.f32 %v5310, %v5476
        %v5564 = vadd.f32 %v5311, %v5479
        %v5565 = vadd.f32 %v5312, %v5481
        %v5566 = vadd.f32 %v5313, %v5484
        %v5567 = vadd.f32 %v5314, %v5486
        %v5568 = vadd.f32 %v5315, %v5489
        %v5569 = vadd.f32 %v5316, %v5491
        %v5570 = vadd.f32 %v5317, %v5494
        %v5571 = vadd.f32 %v5318, %v5496
        %v5572 = vadd.f32 %v5319, %v5499
        %v5573 = vadd.f32 %v5320, %v5501
        %v5574 = vadd.f32 %v5321, %v5504
        %v5575 = vadd.f32 %v5322, %v5506
        %v5576 = vadd.f32 %v5323, %v5509
        %v5577 = vadd.f32 %v5324, %v5511
        %v5578 = vadd.f32 %v5325, %v5514
        %v5579 = vadd.f32 %v5326, %v5516
        %v5580 = vadd.f32 %v5327, %v5519
        %v5581 = vadd.f32 %v5328, %v5521
        %v5582 = vadd.f32 %v5329, %v5524
        %v5583 = vadd.f32 %v5330, %v5526
        %v5584 = vadd.f32 %v5331, %v5529
        %v5585 = vadd.f32 %v5332, %v5531
        %v5586 = vadd.f32 %v5333, %v5534
        %v5587 = vadd.f32 %v5334, %v5536
        %v5588 = vadd.f32 %v5335, %v5539
        %v5589 = vadd.f32 %v5336, %v5541
        %v5590 = vadd.f32 %v5337, %v5544
        %v5591 = vadd.f32 %v5338, %v5546
        %v5592 = vadd.f32 %v5339, %v5549
        %v5593 = vadd.f32 %v5340, %v5551
        %v5594 = vadd.f32 %v5341, %v5554
        %v5595 = vadd.f32 %v5342, %v5556
        %v5596 = vld [vmem:[%s251] sm:$0x1]
        %v5598 = vperm.slane %v5596, 0
        %v5600 = vmul.f32 %v5558, %v5598
        %v5601 = vmul.f32 %v5559, %v5598
        %v5602 = vmul.f32 %v5560, %v5598
        %v5603 = vmul.f32 %v5561, %v5598
        %v5604 = vmul.f32 %v5562, %v5598
        %v5605 = vmul.f32 %v5563, %v5598
        %v5606 = vmul.f32 %v5564, %v5598
        %v5607 = vmul.f32 %v5565, %v5598
        %v5608 = vmul.f32 %v5566, %v5598
        %v5609 = vmul.f32 %v5567, %v5598
        %v5610 = vmul.f32 %v5568, %v5598
        %v5611 = vmul.f32 %v5569, %v5598
        %v5612 = vmul.f32 %v5570, %v5598
        %v5613 = vmul.f32 %v5571, %v5598
        %v5614 = vmul.f32 %v5572, %v5598
        %v5615 = vmul.f32 %v5573, %v5598
        %v5616 = vmul.f32 %v5574, %v5598
        %v5617 = vmul.f32 %v5575, %v5598
        %v5618 = vmul.f32 %v5576, %v5598
        %v5619 = vmul.f32 %v5577, %v5598
        %v5620 = vmul.f32 %v5578, %v5598
        %v5621 = vmul.f32 %v5579, %v5598
        %v5622 = vmul.f32 %v5580, %v5598
        %v5623 = vmul.f32 %v5581, %v5598
        %v5624 = vmul.f32 %v5582, %v5598
        %v5625 = vmul.f32 %v5583, %v5598
        %v5626 = vmul.f32 %v5584, %v5598
        %v5627 = vmul.f32 %v5585, %v5598
        %v5628 = vmul.f32 %v5586, %v5598
        %v5629 = vmul.f32 %v5587, %v5598
        %v5630 = vmul.f32 %v5588, %v5598
        %v5631 = vmul.f32 %v5589, %v5598
        %v5632 = vmul.f32 %v5590, %v5598
        %v5633 = vmul.f32 %v5591, %v5598
        %v5634 = vmul.f32 %v5592, %v5598
        %v5635 = vmul.f32 %v5593, %v5598
        %v5636 = vmul.f32 %v5594, %v5598
        %v5637 = vmul.f32 %v5595, %v5598
        %v5638 = vld [vmem:[%s254] sm:$0x1]
        %v5640 = vperm.slane %v5638, 0
        %v5642 = vadd.f32 %v5600, %v5640
        %v5643 = vadd.f32 %v5601, %v5640
        %v5644 = vadd.f32 %v5602, %v5640
        %v5645 = vadd.f32 %v5603, %v5640
        %v5646 = vadd.f32 %v5604, %v5640
        %v5647 = vadd.f32 %v5605, %v5640
        %v5648 = vadd.f32 %v5606, %v5640
        %v5649 = vadd.f32 %v5607, %v5640
        %v5650 = vadd.f32 %v5608, %v5640
        %v5651 = vadd.f32 %v5609, %v5640
        %v5652 = vadd.f32 %v5610, %v5640
        %v5653 = vadd.f32 %v5611, %v5640
        %v5654 = vadd.f32 %v5612, %v5640
        %v5655 = vadd.f32 %v5613, %v5640
        %v5656 = vadd.f32 %v5614, %v5640
        %v5657 = vadd.f32 %v5615, %v5640
        %v5658 = vadd.f32 %v5616, %v5640
        %v5659 = vadd.f32 %v5617, %v5640
        %v5660 = vadd.f32 %v5618, %v5640
        %v5661 = vadd.f32 %v5619, %v5640
        %v5662 = vadd.f32 %v5620, %v5640
        %v5663 = vadd.f32 %v5621, %v5640
        %v5664 = vadd.f32 %v5622, %v5640
        %v5665 = vadd.f32 %v5623, %v5640
        %v5666 = vadd.f32 %v5624, %v5640
        %v5667 = vadd.f32 %v5625, %v5640
        %v5668 = vadd.f32 %v5626, %v5640
        %v5669 = vadd.f32 %v5627, %v5640
        %v5670 = vadd.f32 %v5628, %v5640
        %v5671 = vadd.f32 %v5629, %v5640
        %v5672 = vadd.f32 %v5630, %v5640
        %v5673 = vadd.f32 %v5631, %v5640
        %v5674 = vadd.f32 %v5632, %v5640
        %v5675 = vadd.f32 %v5633, %v5640
        %v5676 = vadd.f32 %v5634, %v5640
        %v5677 = vadd.f32 %v5635, %v5640
        %v5678 = vadd.f32 %v5636, %v5640
        %v5679 = vadd.f32 %v5637, %v5640
        %v5680 = vmax.f32 %v5642, 0.0
        %v5681 = vmax.f32 %v5643, 0.0
        %v5682 = vmax.f32 %v5644, 0.0
        %v5683 = vmax.f32 %v5645, 0.0
        %v5684 = vmax.f32 %v5646, 0.0
        %v5685 = vmax.f32 %v5647, 0.0
        %v5686 = vmax.f32 %v5648, 0.0
        %v5687 = vmax.f32 %v5649, 0.0
        %v5688 = vmax.f32 %v5650, 0.0
        %v5689 = vmax.f32 %v5651, 0.0
        %v5690 = vmax.f32 %v5652, 0.0
        %v5691 = vmax.f32 %v5653, 0.0
        %v5692 = vmax.f32 %v5654, 0.0
        %v5693 = vmax.f32 %v5655, 0.0
        %v5694 = vmax.f32 %v5656, 0.0
        %v5695 = vmax.f32 %v5657, 0.0
        %v5696 = vmax.f32 %v5658, 0.0
        %v5697 = vmax.f32 %v5659, 0.0
        %v5698 = vmax.f32 %v5660, 0.0
        %v5699 = vmax.f32 %v5661, 0.0
        %v5700 = vmax.f32 %v5662, 0.0
        %v5701 = vmax.f32 %v5663, 0.0
        %v5702 = vmax.f32 %v5664, 0.0
        %v5703 = vmax.f32 %v5665, 0.0
        %v5704 = vmax.f32 %v5666, 0.0
        %v5705 = vmax.f32 %v5667, 0.0
        %v5706 = vmax.f32 %v5668, 0.0
        %v5707 = vmax.f32 %v5669, 0.0
        %v5708 = vmax.f32 %v5670, 0.0
        %v5709 = vmax.f32 %v5671, 0.0
        %v5710 = vmax.f32 %v5672, 0.0
        %v5711 = vmax.f32 %v5673, 0.0
        %v5712 = vmax.f32 %v5674, 0.0
        %v5713 = vmax.f32 %v5675, 0.0
        %v5714 = vmax.f32 %v5676, 0.0
        %v5715 = vmax.f32 %v5677, 0.0
        %v5716 = vmax.f32 %v5678, 0.0
        %v5717 = vmax.f32 %v5679, 0.0
        %v5718 = vpack.c.bf16 %v5680, %v5680
        %v5719 = vpack.c.bf16 %v5681, %v5681
        %v5720 = vpack.c.bf16 %v5682, %v5682
        %v5721 = vpack.c.bf16 %v5683, %v5683
        %v5722 = vpack.c.bf16 %v5684, %v5684
        %v5723 = vpack.c.bf16 %v5685, %v5685
        %v5724 = vpack.c.bf16 %v5686, %v5686
        %v5725 = vpack.c.bf16 %v5687, %v5687
        %v5726 = vpack.c.bf16 %v5688, %v5688
        %v5727 = vpack.c.bf16 %v5689, %v5689
        %v5728 = vpack.c.bf16 %v5690, %v5690
        %v5729 = vpack.c.bf16 %v5691, %v5691
        %v5730 = vpack.c.bf16 %v5692, %v5692
        %v5731 = vpack.c.bf16 %v5693, %v5693
        %v5732 = vpack.c.bf16 %v5694, %v5694
        %v5733 = vpack.c.bf16 %v5695, %v5695
        %v5734 = vpack.c.bf16 %v5696, %v5696
        %v5735 = vpack.c.bf16 %v5697, %v5697
        %v5736 = vpack.c.bf16 %v5698, %v5698
        %v5737 = vpack.c.bf16 %v5699, %v5699
        %v5738 = vpack.c.bf16 %v5700, %v5700
        %v5739 = vpack.c.bf16 %v5701, %v5701
        %v5740 = vpack.c.bf16 %v5702, %v5702
        %v5741 = vpack.c.bf16 %v5703, %v5703
        %v5742 = vpack.c.bf16 %v5704, %v5704
        %v5743 = vpack.c.bf16 %v5705, %v5705
        %v5744 = vpack.c.bf16 %v5706, %v5706
        %v5745 = vpack.c.bf16 %v5707, %v5707
        %v5746 = vpack.c.bf16 %v5708, %v5708
        %v5747 = vpack.c.bf16 %v5709, %v5709
        %v5748 = vpack.c.bf16 %v5710, %v5710
        %v5749 = vpack.c.bf16 %v5711, %v5711
        %v5750 = vpack.c.bf16 %v5712, %v5712
        %v5751 = vpack.c.bf16 %v5713, %v5713
        %v5752 = vpack.c.bf16 %v5714, %v5714
        %v5753 = vpack.c.bf16 %v5715, %v5715
        %v5754 = vpack.c.bf16 %v5716, %v5716
        %v5755 = vpack.c.bf16 %v5717, %v5717
        %5756 = vst [vmem:[%s239] sm:$0xf] %v5718
        %5757 = vst [vmem:[%s239 + $0x4] sm:$0xf] %v5719
        %5758 = vst [vmem:[%s239 + $0x8] sm:$0xf] %v5720
        %5759 = vst [vmem:[%s239 + $0xc] sm:$0xf] %v5721
        %5760 = vst [vmem:[%s239 + $0x10] sm:$0xf] %v5722
        %5761 = vst [vmem:[%s239 + $0x14] sm:$0xf] %v5723
        %5762 = vst [vmem:[%s239 + $0x18] sm:$0xf] %v5724
        %5763 = vst [vmem:[%s239 + $0x1c] sm:$0xf] %v5725
        %5764 = vst [vmem:[%s239 + $0x20] sm:$0xf] %v5726
        %5765 = vst [vmem:[%s239 + $0x24] sm:$0xf] %v5727
        %5766 = vst [vmem:[%s239 + $0x28] sm:$0xf] %v5728
        %5767 = vst [vmem:[%s239 + $0x2c] sm:$0xf] %v5729
        %5768 = vst [vmem:[%s239 + $0x30] sm:$0xf] %v5730
        %5769 = vst [vmem:[%s239 + $0x34] sm:$0xf] %v5731
        %5770 = vst [vmem:[%s239 + $0x38] sm:$0xf] %v5732
        %5771 = vst [vmem:[%s239 + $0x3c] sm:$0xf] %v5733
        %5772 = vst [vmem:[%s239 + $0x40] sm:$0xf] %v5734
        %5773 = vst [vmem:[%s239 + $0x44] sm:$0xf] %v5735
        %5774 = vst [vmem:[%s239 + $0x48] sm:$0xf] %v5736
        %5775 = vst [vmem:[%s239 + $0x4c] sm:$0xf] %v5737
        %5776 = vst [vmem:[%s239 + $0x50] sm:$0xf] %v5738
        %5777 = vst [vmem:[%s239 + $0x54] sm:$0xf] %v5739
        %5778 = vst [vmem:[%s239 + $0x58] sm:$0xf] %v5740
        %5779 = vst [vmem:[%s239 + $0x5c] sm:$0xf] %v5741
        %5780 = vst [vmem:[%s239 + $0x60] sm:$0xf] %v5742
        %5781 = vst [vmem:[%s239 + $0x64] sm:$0xf] %v5743
        %5782 = vst [vmem:[%s239 + $0x68] sm:$0xf] %v5744
        %5783 = vst [vmem:[%s239 + $0x6c] sm:$0xf] %v5745
        %5784 = vst [vmem:[%s239 + $0x70] sm:$0xf] %v5746
        %5785 = vst [vmem:[%s239 + $0x74] sm:$0xf] %v5747
        %5786 = vst [vmem:[%s239 + $0x78] sm:$0xf] %v5748
        %5787 = vst [vmem:[%s239 + $0x7c] sm:$0xf] %v5749
        %5788 = vst [vmem:[%s239 + $0x80] sm:$0xf] %v5750
        %5789 = vst [vmem:[%s239 + $0x84] sm:$0xf] %v5751
        %5790 = vst [vmem:[%s239 + $0x88] sm:$0xf] %v5752
        %5791 = vst [vmem:[%s239 + $0x8c] sm:$0xf] %v5753
        %5792 = vst [vmem:[%s239 + $0x90] sm:$0xf] %v5754
        %5793 = vst [vmem:[%s239 + $0x94] sm:$0xf] %v5755
        %s5794 = sand.u32 %s144, 1
        %s5795 = scalar_lea.sflag [#allocation3], %s5794
        %s5796 = sand.u32 %s144, 1
        %s5797 = smul.addr %s5796, 152
        %s5798 = scalar_lea.vmem [#allocation2], %s5797
        // Predicated region
        $region37: #{tpu_custom_call.1} parent=35 // pred_check
          %p5799 = pneg %p154
        $region38: #{tpu_custom_call.1} parent=35 // pred_check_branch
          %5801 = sbr.rel (%p5799) target = $region40
        $region39: #{tpu_custom_call.1} parent=35 // pred_region
          %5803 = vsyncadd %s5795, 0
          %s5804 = smul.addr %s22, 38
          %s5805 = sadd.s32 %s23, %s5804
          %s5806 = smul.addr %s5805, 4
          %s5807 = scalar_lea.hbm %s4, %s5806
          %s5808 = sshll.u32 %s5798, 4
          %s5809 = int_to_ptr.vmem [resolvable:$true] %s5808
          %s5810 = sshll.u32 %s5807, 4
          %s5811 = int_to_ptr.hbm [resolvable:$true] %s5810
          %5816 = dma.vmem_to_hbm [thread:$0]  %s5809, 2432, %s5811, %s5795, 64, 64, 4
        $region40: #{tpu_custom_call.1} parent=35 // pred_fallthru
          _
      $region36: #{tpu_custom_call.1} parent=5 // pred_fallthru
        _
      %p5817 = scmp.le.s32.totalorder 2, %s13
      // Predicated region
      $region41: #{tpu_custom_call.1} parent=5 // pred_check
        %p5818 = pneg %p5817
      $region42: #{tpu_custom_call.1} parent=5 // pred_check_branch
        %5820 = sbr.rel (%p5818) target = $region44
      $region43: #{tpu_custom_call.1} parent=5 // pred_region
        %s5821 = ssub.s32 %s13, 2
        // Predicated region
        $region45: #{tpu_custom_call.1} parent=43 // pred_check
          %p5822 = pneg %p160
        $region46: #{tpu_custom_call.1} parent=43 // pred_check_branch
          %5824 = sbr.rel (%p5822) target = $region48
        $region47: #{tpu_custom_call.1} parent=43 // pred_region
          %s5825 = sand.u32 %s145, 1
          %s5826 = scalar_lea.sflag [#allocation3], %s5825
          %s5827 = sand.u32 %s145, 1
          %s5828 = smul.addr %s5827, 152
          %s5829 = scalar_lea.vmem [#allocation2], %s5828
          %5831 = dma.done %s5826, 2432
        $region48: #{tpu_custom_call.1} parent=43 // pred_fallthru
          _
      $region44: #{tpu_custom_call.1} parent=5 // pred_fallthru
        _
    $region6: #{tpu_custom_call.1} parent=1 // loop_footer
      %s17 = sadd.s32 1, %s13
    $region7: #{tpu_custom_call.1} parent=1 // loop_footer_branch
      %12 = sbr.rel target = $region3
    $region8: #{tpu_custom_call.1} parent=1 // loop_exit
      _
    %5832 = vsyncpa [#allocation3], 1
    %s5833 = scalar_lea.sflag [#allocation3], 1
    %5834 = vsyncpa %s5833, 1

</llo_original>
